<compile_context>
chip_gen: v7x
topology: tpu7x:2x2x1
jax: 0.10.0
libtpu: 0.0.40
codegen_flags: <defaults>
</compile_context>

<pallas_src>
import math
import functools

import jax
import jax.numpy as jnp
from jax import lax
from jax.experimental import pallas as pl
from jax.experimental.pallas import tpu as pltpu

EPS = 1e-6
VMEM_LIMIT = 48 * 1024 * 1024   # fits v5e/v6e (128 MiB) and v7x (64 MiB) VMEM


def _pick(dim, pref):
    """Preferred tile size if it evenly divides `dim`, else the full dim."""
    return pref if dim % pref == 0 else dim


# ------------------- fused RMSNorm + matmul (+ SiLU) kernel ------------------

def _norm_matmul_kernel(x_ref, g_ref, w_ref, o_ref, *, silu, compute_dtype):
    x = x_ref[...].astype(jnp.float32)                         # (tm, C)
    ms = jnp.mean(x * x, axis=-1, keepdims=True)
    xn = (x * lax.rsqrt(ms + EPS)) * g_ref[...].astype(jnp.float32)
    y = jnp.dot(xn.astype(compute_dtype), w_ref[...],
                preferred_element_type=jnp.float32)            # (tm, tn)
    if silu:
        y = y * jax.nn.sigmoid(y)
    o_ref[...] = y.astype(o_ref.dtype)


def norm_matmul(x2d, g, w, *, silu, compute_dtype, block_m=256, block_n=256):
    """RMSNorm(x2d) @ w  (optionally followed by SiLU).  x2d: (M, C), w: (C, N)."""
    M, C = x2d.shape
    Cw, N = w.shape
    assert Cw == C
    tm, tn = _pick(M, block_m), _pick(N, block_n)
    return pl.pallas_call(
        functools.partial(_norm_matmul_kernel, silu=silu,
                          compute_dtype=compute_dtype),
        out_shape=jax.ShapeDtypeStruct((M, N), compute_dtype),
        grid=(M // tm, N // tn),
        in_specs=[pl.BlockSpec((tm, C), lambda i, j: (i, 0)),   # full row (norm)
                  pl.BlockSpec((1, C), lambda i, j: (0, 0)),
                  pl.BlockSpec((C, tn), lambda i, j: (0, j))],
        out_specs=pl.BlockSpec((tm, tn), lambda i, j: (i, j)),
        compiler_params=pltpu.CompilerParams(
            dimension_semantics=("parallel", "parallel"),
            vmem_limit_bytes=VMEM_LIMIT),
    )(x2d, g, w)


# ----------------- K-tiled matmul with fused residual add -------------------

def _matmul_res_kernel(x_ref, w_ref, r_ref, o_ref, acc_ref, *, compute_dtype):
    k = pl.program_id(2)

    @pl.when(k == 0)
    def _init():
        acc_ref[...] = jnp.zeros_like(acc_ref)

    acc_ref[...] += jnp.dot(x_ref[...].astype(compute_dtype), w_ref[...],
                            preferred_element_type=jnp.float32)

    @pl.when(k == pl.num_programs(2) - 1)
    def _finalize():
        o_ref[...] = (acc_ref[...] + r_ref[...].astype(jnp.float32)
                      ).astype(o_ref.dtype)


def matmul_residual(x2d, w, res, *, compute_dtype,
                    block_m=256, block_n=256, block_k=512):
    """x2d @ w + res.  x2d: (M, K), w: (K, N), res: (M, N)."""
    M, K = x2d.shape
    Kw, N = w.shape
    assert Kw == K and res.shape == (M, N)
    tm, tn, tk = _pick(M, block_m), _pick(N, block_n), _pick(K, block_k)
    return pl.pallas_call(
        functools.partial(_matmul_res_kernel, compute_dtype=compute_dtype),
        out_shape=jax.ShapeDtypeStruct((M, N), res.dtype),
        grid=(M // tm, N // tn, K // tk),
        in_specs=[pl.BlockSpec((tm, tk), lambda i, j, k: (i, k)),
                  pl.BlockSpec((tk, tn), lambda i, j, k: (k, j)),
                  pl.BlockSpec((tm, tn), lambda i, j, k: (i, j))],
        out_specs=pl.BlockSpec((tm, tn), lambda i, j, k: (i, j)),
        scratch_shapes=[pltpu.VMEM((tm, tn), jnp.float32)],
        compiler_params=pltpu.CompilerParams(
            dimension_semantics=("parallel", "parallel", "arbitrary"),
            vmem_limit_bytes=VMEM_LIMIT),
    )(x2d, w, res)


# --------------- flash attention with in-kernel (rotate-half) RoPE ----------

def _flash_attn_kernel(q_ref, k_ref, v_ref, cq_ref, sq_ref, ck_ref, sk_ref,
                       o_ref, q_sc, m_sc, l_sc, acc_sc,
                       *, tq, tkv, d2, scale, compute_dtype, approx_recip):
    iq = pl.program_id(2)
    ik = pl.program_id(3)
    q_start = iq * tq
    kv_start = ik * tkv

    @pl.when(ik == 0)
    def _init():
        m_sc[...] = jnp.full_like(m_sc, -jnp.inf)
        l_sc[...] = jnp.zeros_like(l_sc)
        acc_sc[...] = jnp.zeros_like(acc_sc)
        # RoPE-rotate (and scale) the query tile ONCE per (b, h, q-tile); the
        # cached result is reused for every KV step of the online softmax.
        # q/k columns were permuted offline into [real | imag] halves per head,
        # so the split below is a contiguous, lane-dense static slice.
        q = q_ref[0].astype(jnp.float32)             # (tq, Dh)
        cq, sq = cq_ref[...], sq_ref[...]            # (tq, D2)
        q_re, q_im = q[:, :d2], q[:, d2:]
        q_rot = jnp.concatenate(
            [q_re * cq - q_im * sq, q_re * sq + q_im * cq], axis=-1) * scale
        q_sc[...] = q_rot.astype(q_sc.dtype)

    # Skip KV tiles that lie entirely above the causal diagonal.
    @pl.when(kv_start <= q_start + (tq - 1))
    def _compute():
        k = k_ref[0].astype(jnp.float32)             # (tkv, Dh)
        ck, sk = ck_ref[...], sk_ref[...]            # (tkv, D2)
        k_re, k_im = k[:, :d2], k[:, d2:]
        k_rot = jnp.concatenate(
            [k_re * ck - k_im * sk, k_re * sk + k_im * ck], axis=-1)

        s = lax.dot_general(q_sc[...], k_rot.astype(compute_dtype),
                            (((1,), (1,)), ((), ())),
                            preferred_element_type=jnp.float32)   # (tq, tkv)

        row = q_start + lax.broadcasted_iota(jnp.int32, (tq, tkv), 0)
        col = kv_start + lax.broadcasted_iota(jnp.int32, (tq, tkv), 1)
        s = jnp.where(col <= row, s, -jnp.inf)

        m_prev = m_sc[...]
        m_new = jnp.maximum(m_prev, jnp.max(s, axis=-1, keepdims=True))
        alpha = jnp.exp(m_prev - m_new)
        p = jnp.exp(s - m_new)
        l_sc[...] = alpha * l_sc[...] + jnp.sum(p, axis=-1, keepdims=True)
        acc_sc[...] = alpha * acc_sc[...] + jnp.dot(
            p.astype(compute_dtype), v_ref[0],
            preferred_element_type=jnp.float32)
        m_sc[...] = m_new

    @pl.when(ik == pl.num_programs(3) - 1)
    def _finalize():
        o_ref[0] = (acc_sc[...] *
                    pl.reciprocal(l_sc[...], approx=approx_recip)
                    ).astype(o_ref.dtype)


def flash_attention(qkv, cos, sin, *, n_heads, compute_dtype,
                    block_q=128, block_kv=128):
    """Causal RoPE attention.  qkv: (B, T, 3C) fused projection output."""
    B, T, C3 = qkv.shape
    C = C3 // 3
    H = n_heads
    Dh = C // H
    D2 = Dh // 2
    tq, tkv = _pick(T, block_q), _pick(T, block_kv)
    scale = 1.0 / math.sqrt(Dh)

    # q/k/v are read straight out of the fused QKV buffer via head index_maps
    # (no host-side slicing / transposes / HBM copies).
    q_spec = pl.BlockSpec((1, tq, Dh), lambda b, h, iq, ik: (b, iq, h))
    k_spec = pl.BlockSpec((1, tkv, Dh), lambda b, h, iq, ik: (b, ik, H + h))
    v_spec = pl.BlockSpec((1, tkv, Dh), lambda b, h, iq, ik: (b, ik, 2 * H + h))
    cq_spec = pl.BlockSpec((tq, D2), lambda b, h, iq, ik: (iq, 0))
    ck_spec = pl.BlockSpec((tkv, D2), lambda b, h, iq, ik: (ik, 0))
    o_spec = pl.BlockSpec((1, tq, Dh), lambda b, h, iq, ik: (b, iq, h))

    return pl.pallas_call(
        functools.partial(_flash_attn_kernel, tq=tq, tkv=tkv, d2=D2,
                          scale=scale, compute_dtype=compute_dtype,
                          approx_recip=(compute_dtype != jnp.float32)),
        out_shape=jax.ShapeDtypeStruct((B, T, C), compute_dtype),
        grid=(B, H, T // tq, T // tkv),
        in_specs=[q_spec, k_spec, v_spec, cq_spec, cq_spec, ck_spec, ck_spec],
        out_specs=o_spec,
        scratch_shapes=[pltpu.VMEM((tq, Dh), compute_dtype),   # cached RoPE(q)
                        pltpu.VMEM((tq, 1), jnp.float32),
                        pltpu.VMEM((tq, 1), jnp.float32),
                        pltpu.VMEM((tq, Dh), jnp.float32)],
        compiler_params=pltpu.CompilerParams(
            dimension_semantics=("parallel", "parallel", "parallel", "arbitrary"),
            vmem_limit_bytes=VMEM_LIMIT),
    )(qkv, qkv, qkv, cos, sin, cos, sin)


# ------------------------- parameter preparation ----------------------------

def _rope_half_permutation(C, n_heads):
    """Per-head column permutation: interleaved (re, im) pairs -> [re | im]."""
    Dh = C // n_heads
    idx = []
    for h in range(n_heads):
        base = h * Dh
        idx += list(range(base, base + Dh, 2))       # even  -> real half
        idx += list(range(base + 1, base + Dh, 2))   # odd   -> imag half
    return jnp.asarray(idx, dtype=jnp.int32)


def prepare_params(raw, n_heads, compute_dtype):
    """Fuse wq/wk/wv, apply the RoPE rotate-half column permutation (one-time,
    offline), and cast the GEMM weights to the MXU compute dtype."""
    C = raw["wq"].shape[0]
    perm = _rope_half_permutation(C, n_heads)
    wqkv = jnp.concatenate(
        [raw["wq"][:, perm], raw["wk"][:, perm], raw["wv"]], axis=1)
    return {
        "norm1_w": raw["norm1_w"].reshape(1, -1).astype(jnp.float32),
        "norm2_w": raw["norm2_w"].reshape(1, -1).astype(jnp.float32),
        "wqkv": wqkv.astype(compute_dtype),
        "wo": raw["wo"].astype(compute_dtype),
        "fc1": raw["fc1"].astype(compute_dtype),
        "fc2": raw["fc2"].astype(compute_dtype),
    }


# ------------------------------ Block forward -------------------------------

def block_forward(params, x, cos, sin, *, n_heads,
                  compute_dtype=jnp.float32, block_q=128, block_kv=128):
    B, T, C = x.shape
    x2d = x.reshape(B * T, C)

    # 1) fused RMSNorm + QKV projection  (one launch, one read of x)
    qkv = norm_matmul(x2d, params["norm1_w"], params["wqkv"],
                      silu=False, compute_dtype=compute_dtype)
    qkv = qkv.reshape(B, T, 3 * C)                      # free reshape

    # 2) flash attention with in-kernel RoPE (reads q/k/v from qkv directly)
    y = flash_attention(qkv, cos, sin, n_heads=n_heads,
                        compute_dtype=compute_dtype,
                        block_q=block_q, block_kv=block_kv)   # (B, T, C)

    # 3) output projection + fused residual add
    x2d = matmul_residual(y.reshape(B * T, C), params["wo"], x2d,
                          compute_dtype=compute_dtype)

    # 4) fused RMSNorm + fc1 + SiLU
    h = norm_matmul(x2d, params["norm2_w"], params["fc1"],
                    silu=True, compute_dtype=compute_dtype)

    # 5) fc2 projection + fused residual add
    out = matmul_residual(h, params["fc2"], x2d, compute_dtype=compute_dtype)
    return out.reshape(B, T, C)


# ------------------------------ JAX reference -------------------------------

def ref_block(raw, x, cos, sin, n_heads):
    B, T, C = x.shape
    H, Dh = n_heads, C // n_heads

    def rms(z, w):
        return w * (z * lax.rsqrt(jnp.mean(z * z, -1, keepdims=True) + EPS))

    def rope(z):  # interleaved real/imag pairs along the last dim
        zr, zi = z[..., 0::2], z[..., 1::2]
        out = jnp.stack([zr * cos - zi * sin, zr * sin + zi * cos], axis=-1)
        return out.reshape(z.shape)

    h = rms(x, raw["norm1_w"])
    q = (h @ raw["wq"]).reshape(B, T, H, Dh).transpose(0, 2, 1, 3)
    k = (h @ raw["wk"]).reshape(B, T, H, Dh).transpose(0, 2, 1, 3)
    v = (h @ raw["wv"]).reshape(B, T, H, Dh).transpose(0, 2, 1, 3)
    q, k = rope(q), rope(k)
    s = jnp.einsum("bhqd,bhkd->bhqk", q, k) / math.sqrt(Dh)
    s = jnp.where(jnp.tril(jnp.ones((T, T), bool)), s, -jnp.inf)
    p = jax.nn.softmax(s, axis=-1)
    y = jnp.einsum("bhqk,bhkd->bhqd", p, v).transpose(0, 2, 1, 3).reshape(B, T, C)
    x = x + y @ raw["wo"]
    h2 = rms(x, raw["norm2_w"])
    f = h2 @ raw["fc1"]
    f = f * jax.nn.sigmoid(f)
    return x + f @ raw["fc2"]


# ---------------------------------- main -------------------------------------

if __name__ == "__main__":
    # Small, but lane-dense: head_dim = 128 (realistic), T tiled into several
    # q/kv blocks so the online-softmax + causal-skip paths are exercised.
    B, T, C, H = 2, 32, 256, 2
    Dh = C // H

    key = jax.random.PRNGKey(0)
    ks = jax.random.split(key, 10)

    def init(k, shape, fan_in):  # nn.Linear default U(-1/sqrt(in), 1/sqrt(in))
        bound = 1.0 / math.sqrt(fan_in)
        return jax.random.uniform(k, shape, jnp.float32, -bound, bound)

    raw = {
        "norm1_w": 1.0 + 0.1 * jax.random.normal(ks[7], (C,), jnp.float32),
        "norm2_w": 1.0 + 0.1 * jax.random.normal(ks[8], (C,), jnp.float32),
        "wq": init(ks[0], (C, C), C),
        "wk": init(ks[1], (C, C), C),
        "wv": init(ks[2], (C, C), C),
        "wo": init(ks[3], (C, C), C),
        "fc1": init(ks[4], (C, 4 * C), C),
        "fc2": init(ks[5], (4 * C, C), 4 * C),
    }
    x = jax.random.normal(ks[6], (B, T, C), jnp.float32)

    # Llama-style rotary tables: cos/sin of m * theta_j, shape (T, Dh // 2).
    inv_freq = 1.0 / (10000.0 ** (jnp.arange(0, Dh, 2, dtype=jnp.float32) / Dh))
    angles = jnp.outer(jnp.arange(T, dtype=jnp.float32), inv_freq)
    cos, sin = jnp.cos(angles), jnp.sin(angles)

    ref = ref_block(raw, x, cos, sin, H)

    # f32 run (tight check) and bf16 MXU fast path (looser check, f32 accum).
    for dt, tol in ((jnp.float32, 1e-4), (jnp.bfloat16, 5e-2)):
        prep = prepare_params(raw, H, dt)
        fwd = jax.jit(functools.partial(
            block_forward, n_heads=H, compute_dtype=dt, block_q=16, block_kv=8))
        out = jax.block_until_ready(fwd(prep, x, cos, sin))
        assert out.shape == (B, T, C)
        err = float(jnp.max(jnp.abs(out.astype(jnp.float32) - ref)))
        assert jnp.allclose(out.astype(jnp.float32), ref,
                            atol=tol, rtol=tol), (str(dt), err)

    print("KERNEL_OK")
</pallas_src>

<mosaic_0001>
module attributes {stable_mosaic.version = 11 : i64} {
  func.func @_norm_matmul_kernel(%arg0: i32, %arg1: i32, %arg2: memref<64x256xf32, #tpu.memory_space<vmem>>, %arg3: memref<1x256xf32, #tpu.memory_space<vmem>>, %arg4: memref<256x256xf32, #tpu.memory_space<vmem>>, %arg5: memref<64x256xf32, #tpu.memory_space<vmem>>) attributes {dimension_semantics = [#tpu.dimension_semantics<parallel>, #tpu.dimension_semantics<parallel>], iteration_bounds = array<i64: 1, 4>, scalar_prefetch = 0 : i64, scratch_operands = 0 : i64, tpu.core_type = #tpu.core_type<tc>, window_params = [{transform_indices = @transform_0, window_bounds = array<i64: 64, 256>}, {pipeline_mode = #tpu.pipeline_mode<synchronous>, transform_indices = @transform_1, window_bounds = array<i64: 1, 256>}, {transform_indices = @transform_2, window_bounds = array<i64: 256, 256>}, {transform_indices = @transform_3, window_bounds = array<i64: 64, 256>}]} {
    %c0 = arith.constant 0 : index
    %c0_0 = arith.constant 0 : index
    %0 = vector.load %arg2[%c0, %c0_0] : memref<64x256xf32, #tpu.memory_space<vmem>>, vector<64x256xf32>
    %1 = arith.mulf %0, %0 : vector<64x256xf32>
    %cst = arith.constant dense<0.000000e+00> : vector<64xf32>
    %2 = vector.multi_reduction <add>, %1, %cst [1] : vector<64x256xf32> to vector<64xf32>
    %3 = vector.shape_cast %2 : vector<64xf32> to vector<64x1xf32>
    %cst_1 = arith.constant 2.560000e+02 : f32
    %4 = vector.broadcast %cst_1 : f32 to vector<64x1xf32>
    %5 = arith.divf %3, %4 : vector<64x1xf32>
    %cst_2 = arith.constant 9.99999997E-7 : f32
    %6 = vector.broadcast %cst_2 : f32 to vector<64x1xf32>
    %7 = arith.addf %5, %6 : vector<64x1xf32>
    %8 = math.rsqrt %7 : vector<64x1xf32>
    %9 = vector.broadcast %8 : vector<64x1xf32> to vector<64x256xf32>
    %10 = arith.mulf %0, %9 : vector<64x256xf32>
    %c0_3 = arith.constant 0 : index
    %c0_4 = arith.constant 0 : index
    %11 = vector.load %arg3[%c0_3, %c0_4] : memref<1x256xf32, #tpu.memory_space<vmem>>, vector<1x256xf32>
    %12 = vector.broadcast %11 : vector<1x256xf32> to vector<64x256xf32>
    %13 = arith.mulf %10, %12 : vector<64x256xf32>
    %c0_5 = arith.constant 0 : index
    %c0_6 = arith.constant 0 : index
    %14 = vector.load %arg4[%c0_5, %c0_6] : memref<256x256xf32, #tpu.memory_space<vmem>>, vector<256x256xf32>
    %cst_7 = arith.constant dense<0.000000e+00> : vector<64x256xf32>
    %15 = tpu.matmul %13, %14, %cst_7 {dimension_numbers = #tpu.dot_dimension_numbers<[1], [0], [0], [1], [0, 0, 1, 1], [], []>} : vector<64x256xf32>, vector<256x256xf32>, vector<64x256xf32> -> vector<64x256xf32>
    %16 = arith.negf %15 : vector<64x256xf32>
    %17 = math.exp %16 : vector<64x256xf32>
    %cst_8 = arith.constant 1.000000e+00 : f32
    %18 = vector.broadcast %cst_8 : f32 to vector<64x256xf32>
    %19 = arith.addf %18, %17 : vector<64x256xf32>
    %20 = arith.divf %18, %19 : vector<64x256xf32>
    %21 = arith.mulf %15, %20 : vector<64x256xf32>
    %c0_9 = arith.constant 0 : index
    %c0_10 = arith.constant 0 : index
    %22 = vector.load %arg5[%c0_9, %c0_10] : memref<64x256xf32, #tpu.memory_space<vmem>>, vector<64x256xf32>
    tpu.vector_store %arg5[%c0_9, %c0_10], %21 {strides = array<i32>} : memref<64x256xf32, #tpu.memory_space<vmem>>, vector<64x256xf32>,
    return
  }
  func.func @transform_0(%arg0: i32, %arg1: i32) -> (i32, i32) {
    %c0_i32 = arith.constant 0 : i32
    %c0_i32_0 = arith.constant 0 : i32
    return %arg0, %c0_i32 : i32, i32
  }
  func.func @transform_1(%arg0: i32, %arg1: i32) -> (i32, i32) {
    %c0_i32 = arith.constant 0 : i32
    %c0_i32_0 = arith.constant 0 : i32
    %c0_i32_1 = arith.constant 0 : i32
    return %c0_i32, %c0_i32_0 : i32, i32
  }
  func.func @transform_2(%arg0: i32, %arg1: i32) -> (i32, i32) {
    %c0_i32 = arith.constant 0 : i32
    %c0_i32_0 = arith.constant 0 : i32
    return %c0_i32, %arg1 : i32, i32
  }
  func.func @transform_3(%arg0: i32, %arg1: i32) -> (i32, i32) {
    %c0_i32 = arith.constant 0 : i32
    return %arg0, %arg1 : i32, i32
  }
}

module attributes {stable_mosaic.version = 11 : i64} {
  func.func @_flash_attn_kernel(%arg0: i32, %arg1: i32, %arg2: i32, %arg3: i32, %arg4: memref<1x16x128xf32, #tpu.memory_space<vmem>>, %arg5: memref<1x8x128xf32, #tpu.memory_space<vmem>>, %arg6: memref<1x8x128xf32, #tpu.memory_space<vmem>>, %arg7: memref<16x64xf32, #tpu.memory_space<vmem>>, %arg8: memref<16x64xf32, #tpu.memory_space<vmem>>, %arg9: memref<8x64xf32, #tpu.memory_space<vmem>>, %arg10: memref<8x64xf32, #tpu.memory_space<vmem>>, %arg11: memref<1x16x128xf32, #tpu.memory_space<vmem>>, %arg12: memref<16x128xf32, #tpu.memory_space<vmem>>, %arg13: memref<16x1xf32, #tpu.memory_space<vmem>>, %arg14: memref<16x1xf32, #tpu.memory_space<vmem>>, %arg15: memref<16x128xf32, #tpu.memory_space<vmem>>) attributes {dimension_semantics = [#tpu.dimension_semantics<parallel>, #tpu.dimension_semantics<parallel>, #tpu.dimension_semantics<parallel>, #tpu.dimension_semantics<arbitrary>], iteration_bounds = array<i64: 2, 2, 2, 4>, scalar_prefetch = 0 : i64, scratch_operands = 4 : i64, tpu.core_type = #tpu.core_type<tc>, window_params = [{transform_indices = @transform_0, window_bounds = array<i64: 1, 16, 128>}, {transform_indices = @transform_1, window_bounds = array<i64: 1, 8, 128>}, {transform_indices = @transform_2, window_bounds = array<i64: 1, 8, 128>}, {transform_indices = @transform_3, window_bounds = array<i64: 16, 64>}, {transform_indices = @transform_4, window_bounds = array<i64: 16, 64>}, {transform_indices = @transform_5, window_bounds = array<i64: 8, 64>}, {transform_indices = @transform_6, window_bounds = array<i64: 8, 64>}, {transform_indices = @transform_7, window_bounds = array<i64: 1, 16, 128>}]} {
    %c16_i32 = arith.constant 16 : i32
    %0 = arith.muli %arg2, %c16_i32 : i32
    %c8_i32 = arith.constant 8 : i32
    %1 = arith.muli %arg3, %c8_i32 : i32
    %c0_i32 = arith.constant 0 : i32
    %2 = arith.cmpi eq, %arg3, %c0_i32 : i32
    %3 = arith.extui %2 : i1 to i32
    %c0_i32_0 = arith.constant 0 : i32
    %4 = arith.cmpi ne, %3, %c0_i32_0 : i32
    scf.if %4 {
      %cst = arith.constant 0xFF800000 : f32
      %12 = vector.broadcast %cst : f32 to vector<16x1xf32>
      %c0 = arith.constant 0 : index
      %c0_3 = arith.constant 0 : index
      %13 = vector.load %arg13[%c0, %c0_3] : memref<16x1xf32, #tpu.memory_space<vmem>>, vector<16x1xf32>
      tpu.vector_store %arg13[%c0, %c0_3], %12 {strides = array<i32>} : memref<16x1xf32, #tpu.memory_space<vmem>>, vector<16x1xf32>,
      %cst_4 = arith.constant 0.000000e+00 : f32
      %14 = vector.broadcast %cst_4 : f32 to vector<16x1xf32>
      %c0_5 = arith.constant 0 : index
      %c0_6 = arith.constant 0 : index
      %15 = vector.load %arg14[%c0_5, %c0_6] : memref<16x1xf32, #tpu.memory_space<vmem>>, vector<16x1xf32>
      tpu.vector_store %arg14[%c0_5, %c0_6], %14 {strides = array<i32>} : memref<16x1xf32, #tpu.memory_space<vmem>>, vector<16x1xf32>,
      %cst_7 = arith.constant 0.000000e+00 : f32
      %16 = vector.broadcast %cst_7 : f32 to vector<16x128xf32>
      %c0_8 = arith.constant 0 : index
      %c0_9 = arith.constant 0 : index
      %17 = vector.load %arg15[%c0_8, %c0_9] : memref<16x128xf32, #tpu.memory_space<vmem>>, vector<16x128xf32>
      tpu.vector_store %arg15[%c0_8, %c0_9], %16 {strides = array<i32>} : memref<16x128xf32, #tpu.memory_space<vmem>>, vector<16x128xf32>,
      %c0_10 = arith.constant 0 : index
      %c0_11 = arith.constant 0 : index
      %c0_12 = arith.constant 0 : index
      %18 = vector.load %arg4[%c0_10, %c0_11, %c0_12] : memref<1x16x128xf32, #tpu.memory_space<vmem>>, vector<1x16x128xf32>
      %19 = vector.shape_cast %18 : vector<1x16x128xf32> to vector<16x128xf32>
      %c0_13 = arith.constant 0 : index
      %c0_14 = arith.constant 0 : index
      %20 = vector.load %arg7[%c0_13, %c0_14] : memref<16x64xf32, #tpu.memory_space<vmem>>, vector<16x64xf32>
      %c0_15 = arith.constant 0 : index
      %c0_16 = arith.constant 0 : index
      %21 = vector.load %arg8[%c0_15, %c0_16] : memref<16x64xf32, #tpu.memory_space<vmem>>, vector<16x64xf32>
      %22 = vector.extract_strided_slice %19 {offsets = [0, 0], sizes = [16, 64], strides = [1, 1]} : vector<16x128xf32> to vector<16x64xf32>
      %23 = vector.extract_strided_slice %19 {offsets = [0, 64], sizes = [16, 64], strides = [1, 1]} : vector<16x128xf32> to vector<16x64xf32>
      %24 = arith.mulf %22, %20 : vector<16x64xf32>
      %25 = arith.mulf %23, %21 : vector<16x64xf32>
      %26 = arith.subf %24, %25 : vector<16x64xf32>
      %27 = arith.mulf %22, %21 : vector<16x64xf32>
      %28 = arith.mulf %23, %20 : vector<16x64xf32>
      %29 = arith.addf %27, %28 : vector<16x64xf32>
      %30 = tpu.concatenate %26, %29 in 1 : vector<16x64xf32>, vector<16x64xf32> -> vector<16x128xf32>
      %cst_17 = arith.constant 0.0883883461 : f32
      %31 = vector.broadcast %cst_17 : f32 to vector<16x128xf32>
      %32 = arith.mulf %30, %31 : vector<16x128xf32>
      %c0_18 = arith.constant 0 : index
      %c0_19 = arith.constant 0 : index
      %33 = vector.load %arg12[%c0_18, %c0_19] : memref<16x128xf32, #tpu.memory_space<vmem>>, vector<16x128xf32>
      tpu.vector_store %arg12[%c0_18, %c0_19], %32 {strides = array<i32>} : memref<16x128xf32, #tpu.memory_space<vmem>>, vector<16x128xf32>,
    } else {
    }
    %c15_i32 = arith.constant 15 : i32
    %5 = arith.addi %0, %c15_i32 : i32
    %6 = arith.cmpi sle, %1, %5 : i32
    %7 = arith.extui %6 : i1 to i32
    %c0_i32_1 = arith.constant 0 : i32
    %8 = arith.cmpi ne, %7, %c0_i32_1 : i32
    scf.if %8 {
      %c0 = arith.constant 0 : index
      %c0_3 = arith.constant 0 : index
      %c0_4 = arith.constant 0 : index
      %12 = vector.load %arg5[%c0, %c0_3, %c0_4] : memref<1x8x128xf32, #tpu.memory_space<vmem>>, vector<1x8x128xf32>
      %13 = vector.shape_cast %12 : vector<1x8x128xf32> to vector<8x128xf32>
      %c0_5 = arith.constant 0 : index
      %c0_6 = arith.constant 0 : index
      %14 = vector.load %arg9[%c0_5, %c0_6] : memref<8x64xf32, #tpu.memory_space<vmem>>, vector<8x64xf32>
      %c0_7 = arith.constant 0 : index
      %c0_8 = arith.constant 0 : index
      %15 = vector.load %arg10[%c0_7, %c0_8] : memref<8x64xf32, #tpu.memory_space<vmem>>, vector<8x64xf32>
      %16 = vector.extract_strided_slice %13 {offsets = [0, 0], sizes = [8, 64], strides = [1, 1]} : vector<8x128xf32> to vector<8x64xf32>
      %17 = vector.extract_strided_slice %13 {offsets = [0, 64], sizes = [8, 64], strides = [1, 1]} : vector<8x128xf32> to vector<8x64xf32>
      %18 = arith.mulf %16, %14 : vector<8x64xf32>
      %19 = arith.mulf %17, %15 : vector<8x64xf32>
      %20 = arith.subf %18, %19 : vector<8x64xf32>
      %21 = arith.mulf %16, %15 : vector<8x64xf32>
      %22 = arith.mulf %17, %14 : vector<8x64xf32>
      %23 = arith.addf %21, %22 : vector<8x64xf32>
      %24 = tpu.concatenate %20, %23 in 1 : vector<8x64xf32>, vector<8x64xf32> -> vector<8x128xf32>
      %c0_9 = arith.constant 0 : index
      %c0_10 = arith.constant 0 : index
      %25 = vector.load %arg12[%c0_9, %c0_10] : memref<16x128xf32, #tpu.memory_space<vmem>>, vector<16x128xf32>
      %cst = arith.constant dense<0.000000e+00> : vector<16x8xf32>
      %26 = tpu.matmul %25, %24, %cst {dimension_numbers = #tpu.dot_dimension_numbers<[1], [1], [0], [0], [0, 0, 1, 0], [], []>} : vector<16x128xf32>, vector<8x128xf32>, vector<16x8xf32> -> vector<16x8xf32>
      %27 = tpu.iota {dimensions = array<i32: 0>} : vector<16x8xi32>
      %28 = vector.broadcast %0 : i32 to vector<16x8xi32>
      %29 = arith.addi %28, %27 : vector<16x8xi32>
      %30 = tpu.iota {dimensions = array<i32: 1>} : vector<16x8xi32>
      %31 = vector.broadcast %1 : i32 to vector<16x8xi32>
      %32 = arith.addi %31, %30 : vector<16x8xi32>
      %33 = arith.cmpi sle, %32, %29 : vector<16x8xi32>
      %cst_11 = arith.constant 0xFF800000 : f32
      %34 = vector.broadcast %cst_11 : f32 to vector<16x8xf32>
      %35 = arith.select %33, %26, %34 : vector<16x8xi1>, vector<16x8xf32>
      %c0_12 = arith.constant 0 : index
      %c0_13 = arith.constant 0 : index
      %36 = vector.load %arg13[%c0_12, %c0_13] : memref<16x1xf32, #tpu.memory_space<vmem>>, vector<16x1xf32>
      %cst_14 = arith.constant dense<0xFF800000> : vector<16xf32>
      %37 = vector.multi_reduction <maximumf>, %35, %cst_14 [1] : vector<16x8xf32> to vector<16xf32>
      %38 = vector.shape_cast %37 : vector<16xf32> to vector<16x1xf32>
      %39 = arith.maximumf %36, %38 : vector<16x1xf32>
      %40 = arith.subf %36, %39 : vector<16x1xf32>
      %41 = math.exp %40 : vector<16x1xf32>
      %42 = vector.broadcast %39 : vector<16x1xf32> to vector<16x8xf32>
      %43 = arith.subf %35, %42 : vector<16x8xf32>
      %44 = math.exp %43 : vector<16x8xf32>
      %c0_15 = arith.constant 0 : index
      %c0_16 = arith.constant 0 : index
      %45 = vector.load %arg14[%c0_15, %c0_16] : memref<16x1xf32, #tpu.memory_space<vmem>>, vector<16x1xf32>
      %46 = arith.mulf %41, %45 : vector<16x1xf32>
      %cst_17 = arith.constant dense<0.000000e+00> : vector<16xf32>
      %47 = vector.multi_reduction <add>, %44, %cst_17 [1] : vector<16x8xf32> to vector<16xf32>
      %48 = vector.shape_cast %47 : vector<16xf32> to vector<16x1xf32>
      %49 = arith.addf %46, %48 : vector<16x1xf32>
      %c0_18 = arith.constant 0 : index
      %c0_19 = arith.constant 0 : index
      %50 = vector.load %arg14[%c0_18, %c0_19] : memref<16x1xf32, #tpu.memory_space<vmem>>, vector<16x1xf32>
      tpu.vector_store %arg14[%c0_18, %c0_19], %49 {strides = array<i32>} : memref<16x1xf32, #tpu.memory_space<vmem>>, vector<16x1xf32>,
      %c0_20 = arith.constant 0 : index
      %c0_21 = arith.constant 0 : index
      %51 = vector.load %arg15[%c0_20, %c0_21] : memref<16x128xf32, #tpu.memory_space<vmem>>, vector<16x128xf32>
      %52 = vector.broadcast %41 : vector<16x1xf32> to vector<16x128xf32>
      %53 = arith.mulf %52, %51 : vector<16x128xf32>
      %c0_22 = arith.constant 0 : index
      %c0_23 = arith.constant 0 : index
      %c0_24 = arith.constant 0 : index
      %54 = vector.load %arg6[%c0_22, %c0_23, %c0_24] : memref<1x8x128xf32, #tpu.memory_space<vmem>>, vector<1x8x128xf32>
      %55 = vector.shape_cast %54 : vector<1x8x128xf32> to vector<8x128xf32>
      %cst_25 = arith.constant dense<0.000000e+00> : vector<16x128xf32>
      %56 = tpu.matmul %44, %55, %cst_25 {dimension_numbers = #tpu.dot_dimension_numbers<[1], [0], [0], [1], [0, 0, 1, 1], [], []>} : vector<16x8xf32>, vector<8x128xf32>, vector<16x128xf32> -> vector<16x128xf32>
      %57 = arith.addf %53, %56 : vector<16x128xf32>
      %c0_26 = arith.constant 0 : index
      %c0_27 = arith.constant 0 : index
      %58 = vector.load %arg15[%c0_26, %c0_27] : memref<16x128xf32, #tpu.memory_space<vmem>>, vector<16x128xf32>
      tpu.vector_store %arg15[%c0_26, %c0_27], %57 {strides = array<i32>} : memref<16x128xf32, #tpu.memory_space<vmem>>, vector<16x128xf32>,
      %c0_28 = arith.constant 0 : index
      %c0_29 = arith.constant 0 : index
      %59 = vector.load %arg13[%c0_28, %c0_29] : memref<16x1xf32, #tpu.memory_space<vmem>>, vector<16x1xf32>
      tpu.vector_store %arg13[%c0_28, %c0_29], %39 {strides = array<i32>} : memref<16x1xf32, #tpu.memory_space<vmem>>, vector<16x1xf32>,
    } else {
    }
    %c3_i32 = arith.constant 3 : i32
    %9 = arith.cmpi eq, %arg3, %c3_i32 : i32
    %10 = arith.extui %9 : i1 to i32
    %c0_i32_2 = arith.constant 0 : i32
    %11 = arith.cmpi ne, %10, %c0_i32_2 : i32
    scf.if %11 {
      %c0 = arith.constant 0 : index
      %c0_3 = arith.constant 0 : index
      %12 = vector.load %arg15[%c0, %c0_3] : memref<16x128xf32, #tpu.memory_space<vmem>>, vector<16x128xf32>
      %c0_4 = arith.constant 0 : index
      %c0_5 = arith.constant 0 : index
      %13 = vector.load %arg14[%c0_4, %c0_5] : memref<16x1xf32, #tpu.memory_space<vmem>>, vector<16x1xf32>
      %14 = tpu.reciprocal %13 : vector<16x1xf32> -> vector<16x1xf32>
      %15 = vector.broadcast %14 : vector<16x1xf32> to vector<16x128xf32>
      %16 = arith.mulf %12, %15 : vector<16x128xf32>
      %c0_6 = arith.constant 0 : index
      %c0_7 = arith.constant 0 : index
      %c0_8 = arith.constant 0 : index
      %17 = vector.load %arg11[%c0_6, %c0_7, %c0_8] : memref<1x16x128xf32, #tpu.memory_space<vmem>>, vector<1x16x128xf32>
      %18 = vector.shape_cast %17 : vector<1x16x128xf32> to vector<16x128xf32>
      %19 = vector.shape_cast %16 : vector<16x128xf32> to vector<1x16x128xf32>
      tpu.vector_store %arg11[%c0_6, %c0_7, %c0_8], %19 {strides = array<i32>} : memref<1x16x128xf32, #tpu.memory_space<vmem>>, vector<1x16x128xf32>,
    } else {
    }
    return
  }
  func.func @transform_0(%arg0: i32, %arg1: i32, %arg2: i32, %arg3: i32) -> (i32, i32, i32) {
    %c0_i32 = arith.constant 0 : i32
    return %arg0, %arg2, %arg1 : i32, i32, i32
  }
  func.func @transform_1(%arg0: i32, %arg1: i32, %arg2: i32, %arg3: i32) -> (i32, i32, i32) {
    %c2_i32 = arith.constant 2 : i32
    %0 = arith.addi %c2_i32, %arg1 : i32
    %c0_i32 = arith.constant 0 : i32
    return %arg0, %arg3, %0 : i32, i32, i32
  }
  func.func @transform_2(%arg0: i32, %arg1: i32, %arg2: i32, %arg3: i32) -> (i32, i32, i32) {
    %c4_i32 = arith.constant 4 : i32
    %0 = arith.addi %c4_i32, %arg1 : i32
    %c0_i32 = arith.constant 0 : i32
    return %arg0, %arg3, %0 : i32, i32, i32
  }
  func.func @transform_3(%arg0: i32, %arg1: i32, %arg2: i32, %arg3: i32) -> (i32, i32) {
    %c0_i32 = arith.constant 0 : i32
    %c0_i32_0 = arith.constant 0 : i32
    return %arg2, %c0_i32 : i32, i32
  }
  func.func @transform_4(%arg0: i32, %arg1: i32, %arg2: i32, %arg3: i32) -> (i32, i32) {
    %c0_i32 = arith.constant 0 : i32
    %c0_i32_0 = arith.constant 0 : i32
    return %arg2, %c0_i32 : i32, i32
  }
  func.func @transform_5(%arg0: i32, %arg1: i32, %arg2: i32, %arg3: i32) -> (i32, i32) {
    %c0_i32 = arith.constant 0 : i32
    %c0_i32_0 = arith.constant 0 : i32
    return %arg3, %c0_i32 : i32, i32
  }
  func.func @transform_6(%arg0: i32, %arg1: i32, %arg2: i32, %arg3: i32) -> (i32, i32) {
    %c0_i32 = arith.constant 0 : i32
    %c0_i32_0 = arith.constant 0 : i32
    return %arg3, %c0_i32 : i32, i32
  }
  func.func @transform_7(%arg0: i32, %arg1: i32, %arg2: i32, %arg3: i32) -> (i32, i32, i32) {
    %c0_i32 = arith.constant 0 : i32
    return %arg0, %arg2, %arg1 : i32, i32, i32
  }
}

module attributes {stable_mosaic.version = 11 : i64} {
  func.func @_norm_matmul_kernel(%arg0: i32, %arg1: i32, %arg2: memref<64x256xf32, #tpu.memory_space<vmem>>, %arg3: memref<1x256xf32, #tpu.memory_space<vmem>>, %arg4: memref<256x256xf32, #tpu.memory_space<vmem>>, %arg5: memref<64x256xf32, #tpu.memory_space<vmem>>) attributes {dimension_semantics = [#tpu.dimension_semantics<parallel>, #tpu.dimension_semantics<parallel>], iteration_bounds = array<i64: 1, 3>, scalar_prefetch = 0 : i64, scratch_operands = 0 : i64, tpu.core_type = #tpu.core_type<tc>, window_params = [{transform_indices = @transform_0, window_bounds = array<i64: 64, 256>}, {pipeline_mode = #tpu.pipeline_mode<synchronous>, transform_indices = @transform_1, window_bounds = array<i64: 1, 256>}, {transform_indices = @transform_2, window_bounds = array<i64: 256, 256>}, {transform_indices = @transform_3, window_bounds = array<i64: 64, 256>}]} {
    %c0 = arith.constant 0 : index
    %c0_0 = arith.constant 0 : index
    %0 = vector.load %arg2[%c0, %c0_0] : memref<64x256xf32, #tpu.memory_space<vmem>>, vector<64x256xf32>
    %1 = arith.mulf %0, %0 : vector<64x256xf32>
    %cst = arith.constant dense<0.000000e+00> : vector<64xf32>
    %2 = vector.multi_reduction <add>, %1, %cst [1] : vector<64x256xf32> to vector<64xf32>
    %3 = vector.shape_cast %2 : vector<64xf32> to vector<64x1xf32>
    %cst_1 = arith.constant 2.560000e+02 : f32
    %4 = vector.broadcast %cst_1 : f32 to vector<64x1xf32>
    %5 = arith.divf %3, %4 : vector<64x1xf32>
    %cst_2 = arith.constant 9.99999997E-7 : f32
    %6 = vector.broadcast %cst_2 : f32 to vector<64x1xf32>
    %7 = arith.addf %5, %6 : vector<64x1xf32>
    %8 = math.rsqrt %7 : vector<64x1xf32>
    %9 = vector.broadcast %8 : vector<64x1xf32> to vector<64x256xf32>
    %10 = arith.mulf %0, %9 : vector<64x256xf32>
    %c0_3 = arith.constant 0 : index
    %c0_4 = arith.constant 0 : index
    %11 = vector.load %arg3[%c0_3, %c0_4] : memref<1x256xf32, #tpu.memory_space<vmem>>, vector<1x256xf32>
    %12 = vector.broadcast %11 : vector<1x256xf32> to vector<64x256xf32>
    %13 = arith.mulf %10, %12 : vector<64x256xf32>
    %c0_5 = arith.constant 0 : index
    %c0_6 = arith.constant 0 : index
    %14 = vector.load %arg4[%c0_5, %c0_6] : memref<256x256xf32, #tpu.memory_space<vmem>>, vector<256x256xf32>
    %cst_7 = arith.constant dense<0.000000e+00> : vector<64x256xf32>
    %15 = tpu.matmul %13, %14, %cst_7 {dimension_numbers = #tpu.dot_dimension_numbers<[1], [0], [0], [1], [0, 0, 1, 1], [], []>} : vector<64x256xf32>, vector<256x256xf32>, vector<64x256xf32> -> vector<64x256xf32>
    %c0_8 = arith.constant 0 : index
    %c0_9 = arith.constant 0 : index
    %16 = vector.load %arg5[%c0_8, %c0_9] : memref<64x256xf32, #tpu.memory_space<vmem>>, vector<64x256xf32>
    tpu.vector_store %arg5[%c0_8, %c0_9], %15 {strides = array<i32>} : memref<64x256xf32, #tpu.memory_space<vmem>>, vector<64x256xf32>,
    return
  }
  func.func @transform_0(%arg0: i32, %arg1: i32) -> (i32, i32) {
    %c0_i32 = arith.constant 0 : i32
    %c0_i32_0 = arith.constant 0 : i32
    return %arg0, %c0_i32 : i32, i32
  }
  func.func @transform_1(%arg0: i32, %arg1: i32) -> (i32, i32) {
    %c0_i32 = arith.constant 0 : i32
    %c0_i32_0 = arith.constant 0 : i32
    %c0_i32_1 = arith.constant 0 : i32
    return %c0_i32, %c0_i32_0 : i32, i32
  }
  func.func @transform_2(%arg0: i32, %arg1: i32) -> (i32, i32) {
    %c0_i32 = arith.constant 0 : i32
    %c0_i32_0 = arith.constant 0 : i32
    return %c0_i32, %arg1 : i32, i32
  }
  func.func @transform_3(%arg0: i32, %arg1: i32) -> (i32, i32) {
    %c0_i32 = arith.constant 0 : i32
    return %arg0, %arg1 : i32, i32
  }
}

module attributes {stable_mosaic.version = 11 : i64} {
  func.func @_matmul_res_kernel(%arg0: i32, %arg1: i32, %arg2: i32, %arg3: memref<64x256xf32, #tpu.memory_space<vmem>>, %arg4: memref<256x256xf32, #tpu.memory_space<vmem>>, %arg5: memref<64x256xf32, #tpu.memory_space<vmem>>, %arg6: memref<64x256xf32, #tpu.memory_space<vmem>>, %arg7: memref<64x256xf32, #tpu.memory_space<vmem>>) attributes {dimension_semantics = [#tpu.dimension_semantics<parallel>, #tpu.dimension_semantics<parallel>, #tpu.dimension_semantics<arbitrary>], iteration_bounds = array<i64: 1, 1, 1>, scalar_prefetch = 0 : i64, scratch_operands = 1 : i64, tpu.core_type = #tpu.core_type<tc>, window_params = [{transform_indices = @transform_0, window_bounds = array<i64: 64, 256>}, {transform_indices = @transform_1, window_bounds = array<i64: 256, 256>}, {transform_indices = @transform_2, window_bounds = array<i64: 64, 256>}, {transform_indices = @transform_3, window_bounds = array<i64: 64, 256>}]} {
    %c0_i32 = arith.constant 0 : i32
    %0 = arith.cmpi eq, %arg2, %c0_i32 : i32
    %1 = arith.extui %0 : i1 to i32
    %c0_i32_0 = arith.constant 0 : i32
    %2 = arith.cmpi ne, %1, %c0_i32_0 : i32
    scf.if %2 {
      %cst_10 = arith.constant 0.000000e+00 : f32
      %12 = vector.broadcast %cst_10 : f32 to vector<64x256xf32>
      %c0_11 = arith.constant 0 : index
      %c0_12 = arith.constant 0 : index
      %13 = vector.load %arg7[%c0_11, %c0_12] : memref<64x256xf32, #tpu.memory_space<vmem>>, vector<64x256xf32>
      tpu.vector_store %arg7[%c0_11, %c0_12], %12 {strides = array<i32>} : memref<64x256xf32, #tpu.memory_space<vmem>>, vector<64x256xf32>,
    } else {
    }
    %c0 = arith.constant 0 : index
    %c0_1 = arith.constant 0 : index
    %3 = vector.load %arg7[%c0, %c0_1] : memref<64x256xf32, #tpu.memory_space<vmem>>, vector<64x256xf32>
    %c0_2 = arith.constant 0 : index
    %c0_3 = arith.constant 0 : index
    %4 = vector.load %arg3[%c0_2, %c0_3] : memref<64x256xf32, #tpu.memory_space<vmem>>, vector<64x256xf32>
    %c0_4 = arith.constant 0 : index
    %c0_5 = arith.constant 0 : index
    %5 = vector.load %arg4[%c0_4, %c0_5] : memref<256x256xf32, #tpu.memory_space<vmem>>, vector<256x256xf32>
    %cst = arith.constant dense<0.000000e+00> : vector<64x256xf32>
    %6 = tpu.matmul %4, %5, %cst {dimension_numbers = #tpu.dot_dimension_numbers<[1], [0], [0], [1], [0, 0, 1, 1], [], []>} : vector<64x256xf32>, vector<256x256xf32>, vector<64x256xf32> -> vector<64x256xf32>
    %7 = arith.addf %3, %6 : vector<64x256xf32>
    %c0_6 = arith.constant 0 : index
    %c0_7 = arith.constant 0 : index
    %8 = vector.load %arg7[%c0_6, %c0_7] : memref<64x256xf32, #tpu.memory_space<vmem>>, vector<64x256xf32>
    tpu.vector_store %arg7[%c0_6, %c0_7], %7 {strides = array<i32>} : memref<64x256xf32, #tpu.memory_space<vmem>>, vector<64x256xf32>,
    %c0_i32_8 = arith.constant 0 : i32
    %9 = arith.cmpi eq, %arg2, %c0_i32_8 : i32
    %10 = arith.extui %9 : i1 to i32
    %c0_i32_9 = arith.constant 0 : i32
    %11 = arith.cmpi ne, %10, %c0_i32_9 : i32
    scf.if %11 {
      %c0_10 = arith.constant 0 : index
      %c0_11 = arith.constant 0 : index
      %12 = vector.load %arg7[%c0_10, %c0_11] : memref<64x256xf32, #tpu.memory_space<vmem>>, vector<64x256xf32>
      %c0_12 = arith.constant 0 : index
      %c0_13 = arith.constant 0 : index
      %13 = vector.load %arg5[%c0_12, %c0_13] : memref<64x256xf32, #tpu.memory_space<vmem>>, vector<64x256xf32>
      %14 = arith.addf %12, %13 : vector<64x256xf32>
      %c0_14 = arith.constant 0 : index
      %c0_15 = arith.constant 0 : index
      %15 = vector.load %arg6[%c0_14, %c0_15] : memref<64x256xf32, #tpu.memory_space<vmem>>, vector<64x256xf32>
      tpu.vector_store %arg6[%c0_14, %c0_15], %14 {strides = array<i32>} : memref<64x256xf32, #tpu.memory_space<vmem>>, vector<64x256xf32>,
    } else {
    }
    return
  }
  func.func @transform_0(%arg0: i32, %arg1: i32, %arg2: i32) -> (i32, i32) {
    %c0_i32 = arith.constant 0 : i32
    return %arg0, %arg2 : i32, i32
  }
  func.func @transform_1(%arg0: i32, %arg1: i32, %arg2: i32) -> (i32, i32) {
    %c0_i32 = arith.constant 0 : i32
    return %arg2, %arg1 : i32, i32
  }
  func.func @transform_2(%arg0: i32, %arg1: i32, %arg2: i32) -> (i32, i32) {
    %c0_i32 = arith.constant 0 : i32
    return %arg0, %arg1 : i32, i32
  }
  func.func @transform_3(%arg0: i32, %arg1: i32, %arg2: i32) -> (i32, i32) {
    %c0_i32 = arith.constant 0 : i32
    return %arg0, %arg1 : i32, i32
  }
}

module attributes {stable_mosaic.version = 11 : i64} {
  func.func @_matmul_res_kernel(%arg0: i32, %arg1: i32, %arg2: i32, %arg3: memref<64x512xf32, #tpu.memory_space<vmem>>, %arg4: memref<512x256xf32, #tpu.memory_space<vmem>>, %arg5: memref<64x256xf32, #tpu.memory_space<vmem>>, %arg6: memref<64x256xf32, #tpu.memory_space<vmem>>, %arg7: memref<64x256xf32, #tpu.memory_space<vmem>>) attributes {dimension_semantics = [#tpu.dimension_semantics<parallel>, #tpu.dimension_semantics<parallel>, #tpu.dimension_semantics<arbitrary>], iteration_bounds = array<i64: 1, 1, 2>, scalar_prefetch = 0 : i64, scratch_operands = 1 : i64, tpu.core_type = #tpu.core_type<tc>, window_params = [{transform_indices = @transform_0, window_bounds = array<i64: 64, 512>}, {transform_indices = @transform_1, window_bounds = array<i64: 512, 256>}, {transform_indices = @transform_2, window_bounds = array<i64: 64, 256>}, {transform_indices = @transform_3, window_bounds = array<i64: 64, 256>}]} {
    %c0_i32 = arith.constant 0 : i32
    %0 = arith.cmpi eq, %arg2, %c0_i32 : i32
    %1 = arith.extui %0 : i1 to i32
    %c0_i32_0 = arith.constant 0 : i32
    %2 = arith.cmpi ne, %1, %c0_i32_0 : i32
    scf.if %2 {
      %cst_9 = arith.constant 0.000000e+00 : f32
      %12 = vector.broadcast %cst_9 : f32 to vector<64x256xf32>
      %c0_10 = arith.constant 0 : index
      %c0_11 = arith.constant 0 : index
      %13 = vector.load %arg7[%c0_10, %c0_11] : memref<64x256xf32, #tpu.memory_space<vmem>>, vector<64x256xf32>
      tpu.vector_store %arg7[%c0_10, %c0_11], %12 {strides = array<i32>} : memref<64x256xf32, #tpu.memory_space<vmem>>, vector<64x256xf32>,
    } else {
    }
    %c0 = arith.constant 0 : index
    %c0_1 = arith.constant 0 : index
    %3 = vector.load %arg7[%c0, %c0_1] : memref<64x256xf32, #tpu.memory_space<vmem>>, vector<64x256xf32>
    %c0_2 = arith.constant 0 : index
    %c0_3 = arith.constant 0 : index
    %4 = vector.load %arg3[%c0_2, %c0_3] : memref<64x512xf32, #tpu.memory_space<vmem>>, vector<64x512xf32>
    %c0_4 = arith.constant 0 : index
    %c0_5 = arith.constant 0 : index
    %5 = vector.load %arg4[%c0_4, %c0_5] : memref<512x256xf32, #tpu.memory_space<vmem>>, vector<512x256xf32>
    %cst = arith.constant dense<0.000000e+00> : vector<64x256xf32>
    %6 = tpu.matmul %4, %5, %cst {dimension_numbers = #tpu.dot_dimension_numbers<[1], [0], [0], [1], [0, 0, 1, 1], [], []>} : vector<64x512xf32>, vector<512x256xf32>, vector<64x256xf32> -> vector<64x256xf32>
    %7 = arith.addf %3, %6 : vector<64x256xf32>
    %c0_6 = arith.constant 0 : index
    %c0_7 = arith.constant 0 : index
    %8 = vector.load %arg7[%c0_6, %c0_7] : memref<64x256xf32, #tpu.memory_space<vmem>>, vector<64x256xf32>
    tpu.vector_store %arg7[%c0_6, %c0_7], %7 {strides = array<i32>} : memref<64x256xf32, #tpu.memory_space<vmem>>, vector<64x256xf32>,
    %c1_i32 = arith.constant 1 : i32
    %9 = arith.cmpi eq, %arg2, %c1_i32 : i32
    %10 = arith.extui %9 : i1 to i32
    %c0_i32_8 = arith.constant 0 : i32
    %11 = arith.cmpi ne, %10, %c0_i32_8 : i32
    scf.if %11 {
      %c0_9 = arith.constant 0 : index
      %c0_10 = arith.constant 0 : index
      %12 = vector.load %arg7[%c0_9, %c0_10] : memref<64x256xf32, #tpu.memory_space<vmem>>, vector<64x256xf32>
      %c0_11 = arith.constant 0 : index
      %c0_12 = arith.constant 0 : index
      %13 = vector.load %arg5[%c0_11, %c0_12] : memref<64x256xf32, #tpu.memory_space<vmem>>, vector<64x256xf32>
      %14 = arith.addf %12, %13 : vector<64x256xf32>
      %c0_13 = arith.constant 0 : index
      %c0_14 = arith.constant 0 : index
      %15 = vector.load %arg6[%c0_13, %c0_14] : memref<64x256xf32, #tpu.memory_space<vmem>>, vector<64x256xf32>
      tpu.vector_store %arg6[%c0_13, %c0_14], %14 {strides = array<i32>} : memref<64x256xf32, #tpu.memory_space<vmem>>, vector<64x256xf32>,
    } else {
    }
    return
  }
  func.func @transform_0(%arg0: i32, %arg1: i32, %arg2: i32) -> (i32, i32) {
    %c0_i32 = arith.constant 0 : i32
    return %arg0, %arg2 : i32, i32
  }
  func.func @transform_1(%arg0: i32, %arg1: i32, %arg2: i32) -> (i32, i32) {
    %c0_i32 = arith.constant 0 : i32
    return %arg2, %arg1 : i32, i32
  }
  func.func @transform_2(%arg0: i32, %arg1: i32, %arg2: i32) -> (i32, i32) {
    %c0_i32 = arith.constant 0 : i32
    return %arg0, %arg1 : i32, i32
  }
  func.func @transform_3(%arg0: i32, %arg1: i32, %arg2: i32) -> (i32, i32) {
    %c0_i32 = arith.constant 0 : i32
    return %arg0, %arg1 : i32, i32
  }
}

</mosaic_0001>

<llo_original>
// kernel: block_forward.6
$region0: #{block_forward.6}
  #allocation0 [shape = 'u32[]', space=smem, size = 0x4, offset = 0x4, fixed_abs, tag = 'smem constant byte address 0x4 - core index']
  #allocation1 [shape = 'u32[144,128]{1,0:T(1,128)}', space=vmem, size = 0x12000, scoped, tag = 'internal scratch']
  #allocation2 [shape = 'f32[16,128]{1,0:T(8,128)}', space=vmem, size = 0x2000, scoped, tag = 'scratch operand']
  #allocation3 [shape = 'f32[16,1]{1,0:T(8,128)}', space=vmem, size = 0x2000, scoped, tag = 'scratch operand']
  #allocation4 [shape = 'f32[16,1]{1,0:T(8,128)}', space=vmem, size = 0x2000, scoped, tag = 'scratch operand']
  #allocation5 [shape = 'f32[16,128]{1,0:T(8,128)}', space=vmem, size = 0x2000, scoped, tag = 'scratch operand']
  %s0 = inlined_call_operand.vmem [shape: f32[2,32,768], index: 0, kind: input, shape index: {}, may-alias: {0,1,2}]
  %s1 = inlined_call_operand.vmem [shape: f32[2,32,768], index: 1, kind: input, shape index: {}, may-alias: {0,1,2}]
  %s2 = inlined_call_operand.vmem [shape: f32[2,32,768], index: 2, kind: input, shape index: {}, may-alias: {0,1,2}]
  %s3 = inlined_call_operand.vmem [shape: f32[32,64], index: 3, kind: input, shape index: {}, may-alias: {3,5}]
  %s4 = inlined_call_operand.vmem [shape: f32[32,64], index: 4, kind: input, shape index: {}, may-alias: {4,6}]
  %s5 = inlined_call_operand.vmem [shape: f32[32,64], index: 5, kind: input, shape index: {}, may-alias: {3,5}]
  %s6 = inlined_call_operand.vmem [shape: f32[32,64], index: 6, kind: input, shape index: {}, may-alias: {4,6}]
  %s7 = inlined_call_operand.vmem [shape: f32[2,32,256], index: 7, kind: output, shape index: {}]
  %s8 = sld [smem:[#allocation0]]
  $region145: #{block_forward.6} parent=0
    _
  %s10 = ssub.s32 1, %s8
  %s11 = scalar_select 0, %s10, %s8
  $region1: #{block_forward.6} parent=0
    #allocation6 [shape = 'u8[16384]{0}', space=vmem, size = 0x4000, scoped, tag = 'input window, operand 0']
    #allocation7 [shape = 'u8[16384]{0}', space=vmem, size = 0x4000, scoped, tag = 'output window, operand 0']
    loop: start=0, step=1, limit=34
    $region2: #{block_forward.6} parent=1 // loop_pre_header
      _
    $region3: #{block_forward.6} parent=1 // loop_header
      %s13 = sphi 0, %s17
      %p14 = scmp.ge.s32.totalorder %s13, 34
      %s20 = sphi 0, %s46
      %s21 = sphi 0, %s42
      %s22 = sphi 0, %s38
      %s23 = sphi 0, %s34
      %s24 = sphi 0, %s20
      %s25 = sphi 0, %s21
      %s26 = sphi 0, %s22
      %s27 = sphi 0, %s23
      %s28 = sphi 0, %s24
      %s29 = sphi 0, %s25
      %s30 = sphi 0, %s26
      %s31 = sphi 0, %s27
      %s53 = sphi 0, %s55
      %s56 = sphi 0, %s53
      %s57 = sphi 0, %s56
      %s73 = sphi 0, %s57
      %s85 = sphi 0, %s87
      %s88 = sphi 0, %s85
      %s89 = sphi 0, %s88
      %s105 = sphi 0, %s89
      %s117 = sphi 0, %s119
      %s120 = sphi 0, %s117
      %s121 = sphi 0, %s120
      %s137 = sphi 0, %s121
      %s143 = sphi 0, %s145
      %s146 = sphi 0, %s143
      %s147 = sphi 0, %s146
      %s163 = sphi 0, %s147
      %s169 = sphi 0, %s171
      %s172 = sphi 0, %s169
      %s173 = sphi 0, %s172
      %s189 = sphi 0, %s173
      %s195 = sphi 0, %s197
      %s198 = sphi 0, %s195
      %s199 = sphi 0, %s198
      %s215 = sphi 0, %s199
      %s221 = sphi 0, %s223
      %s224 = sphi 0, %s221
      %s225 = sphi 0, %s224
      %s241 = sphi 0, %s225
      %s251 = sphi 0, %s253
      %s254 = sphi 0, %s251
      %s255 = sphi 0, %s254
      %s271 = sphi 0, %s255
    $region4: #{block_forward.6} parent=1 // loop_header_branch
      %16 = sbr.rel (%p14) target = $region8
    $region5: #{block_forward.6} parent=1 // loop_body
      %s18 = ssub.s32 %s13, 1
      %s19 = ssub.s32 %s13, 2
      %s32 = sadd.s32 1, %s23
      %p33 = scmp.ge.s32.totalorder %s32, 4
      %s34 = scalar_select %p33, 0, %s32
      %s35 = sadd.s32 1, %s22
      %s36 = scalar_select %p33, %s35, %s22
      %p37 = scmp.ge.s32.totalorder %s36, 2
      %s38 = scalar_select %p37, 0, %s36
      %s39 = sadd.s32 1, %s21
      %s40 = scalar_select %p37, %s39, %s21
      %p41 = scmp.ge.s32.totalorder %s40, 2
      %s42 = scalar_select %p41, 0, %s40
      %s43 = sadd.s32 1, %s20
      %s44 = scalar_select %p41, %s43, %s20
      %p45 = scmp.ge.s32.totalorder %s44, 2
      %s46 = scalar_select %p45, 0, %s44
      %s47 = ssub.s32 %s20, %s46
      %s48 = ssub.s32 %s22, %s38
      %s49 = sor.u32 %s47, %s48
      %s50 = ssub.s32 %s21, %s42
      %s51 = sor.u32 %s49, %s50
      %p52 = scmp.eq.s32.totalorder %s51, 0
      %s54 = sadd.s32 %s53, 1
      %s55 = scalar_select %p52, %s53, %s54
      %p58 = pneg %p52
      %p59 = scmp.eq.s32.totalorder %s13, 31
      %p60 = por %p58, %p59
      %p61 = scmp.ne.s32.totalorder %s53, %s56
      %p62 = scmp.eq.s32.totalorder %s13, 0
      %p63 = por %p61, %p62
      %p64 = scmp.ne.s32.totalorder %s53, %s56
      %p65 = scmp.eq.s32.totalorder %s18, 31
      %p66 = por %p64, %p65
      %p67 = scmp.ne.s32.totalorder %s56, %s57
      %p68 = scmp.eq.s32.totalorder %s18, 0
      %p69 = por %p67, %p68
      %p70 = scmp.ne.s32.totalorder %s56, %s57
      %p71 = scmp.eq.s32.totalorder %s19, 31
      %p72 = por %p70, %p71
      %p74 = scmp.ne.s32.totalorder %s57, %s73
      %p75 = scmp.eq.s32.totalorder %s19, 0
      %p76 = por %p74, %p75
      %s77 = sadd.s32 %s21, 2
      %s78 = sadd.s32 %s42, 2
      %s79 = ssub.s32 %s20, %s46
      %s80 = ssub.s32 %s23, %s34
      %s81 = sor.u32 %s79, %s80
      %s82 = ssub.s32 %s77, %s78
      %s83 = sor.u32 %s81, %s82
      %p84 = scmp.eq.s32.totalorder %s83, 0
      %s86 = sadd.s32 %s85, 1
      %s87 = scalar_select %p84, %s85, %s86
      %p90 = pneg %p84
      %p91 = scmp.eq.s32.totalorder %s13, 31
      %p92 = por %p90, %p91
      %p93 = scmp.ne.s32.totalorder %s85, %s88
      %p94 = scmp.eq.s32.totalorder %s13, 0
      %p95 = por %p93, %p94
      %p96 = scmp.ne.s32.totalorder %s85, %s88
      %p97 = scmp.eq.s32.totalorder %s18, 31
      %p98 = por %p96, %p97
      %p99 = scmp.ne.s32.totalorder %s88, %s89
      %p100 = scmp.eq.s32.totalorder %s18, 0
      %p101 = por %p99, %p100
      %p102 = scmp.ne.s32.totalorder %s88, %s89
      %p103 = scmp.eq.s32.totalorder %s19, 31
      %p104 = por %p102, %p103
      %p106 = scmp.ne.s32.totalorder %s89, %s105
      %p107 = scmp.eq.s32.totalorder %s19, 0
      %p108 = por %p106, %p107
      %s109 = sadd.s32 %s21, 4
      %s110 = sadd.s32 %s42, 4
      %s111 = ssub.s32 %s20, %s46
      %s112 = ssub.s32 %s23, %s34
      %s113 = sor.u32 %s111, %s112
      %s114 = ssub.s32 %s109, %s110
      %s115 = sor.u32 %s113, %s114
      %p116 = scmp.eq.s32.totalorder %s115, 0
      %s118 = sadd.s32 %s117, 1
      %s119 = scalar_select %p116, %s117, %s118
      %p122 = pneg %p116
      %p123 = scmp.eq.s32.totalorder %s13, 31
      %p124 = por %p122, %p123
      %p125 = scmp.ne.s32.totalorder %s117, %s120
      %p126 = scmp.eq.s32.totalorder %s13, 0
      %p127 = por %p125, %p126
      %p128 = scmp.ne.s32.totalorder %s117, %s120
      %p129 = scmp.eq.s32.totalorder %s18, 31
      %p130 = por %p128, %p129
      %p131 = scmp.ne.s32.totalorder %s120, %s121
      %p132 = scmp.eq.s32.totalorder %s18, 0
      %p133 = por %p131, %p132
      %p134 = scmp.ne.s32.totalorder %s120, %s121
      %p135 = scmp.eq.s32.totalorder %s19, 31
      %p136 = por %p134, %p135
      %p138 = scmp.ne.s32.totalorder %s121, %s137
      %p139 = scmp.eq.s32.totalorder %s19, 0
      %p140 = por %p138, %p139
      %s141 = ssub.s32 %s22, %s38
      %p142 = scmp.eq.s32.totalorder %s141, 0
      %s144 = sadd.s32 %s143, 1
      %s145 = scalar_select %p142, %s143, %s144
      %p148 = pneg %p142
      %p149 = scmp.eq.s32.totalorder %s13, 31
      %p150 = por %p148, %p149
      %p151 = scmp.ne.s32.totalorder %s143, %s146
      %p152 = scmp.eq.s32.totalorder %s13, 0
      %p153 = por %p151, %p152
      %p154 = scmp.ne.s32.totalorder %s143, %s146
      %p155 = scmp.eq.s32.totalorder %s18, 31
      %p156 = por %p154, %p155
      %p157 = scmp.ne.s32.totalorder %s146, %s147
      %p158 = scmp.eq.s32.totalorder %s18, 0
      %p159 = por %p157, %p158
      %p160 = scmp.ne.s32.totalorder %s146, %s147
      %p161 = scmp.eq.s32.totalorder %s19, 31
      %p162 = por %p160, %p161
      %p164 = scmp.ne.s32.totalorder %s147, %s163
      %p165 = scmp.eq.s32.totalorder %s19, 0
      %p166 = por %p164, %p165
      %s167 = ssub.s32 %s22, %s38
      %p168 = scmp.eq.s32.totalorder %s167, 0
      %s170 = sadd.s32 %s169, 1
      %s171 = scalar_select %p168, %s169, %s170
      %p174 = pneg %p168
      %p175 = scmp.eq.s32.totalorder %s13, 31
      %p176 = por %p174, %p175
      %p177 = scmp.ne.s32.totalorder %s169, %s172
      %p178 = scmp.eq.s32.totalorder %s13, 0
      %p179 = por %p177, %p178
      %p180 = scmp.ne.s32.totalorder %s169, %s172
      %p181 = scmp.eq.s32.totalorder %s18, 31
      %p182 = por %p180, %p181
      %p183 = scmp.ne.s32.totalorder %s172, %s173
      %p184 = scmp.eq.s32.totalorder %s18, 0
      %p185 = por %p183, %p184
      %p186 = scmp.ne.s32.totalorder %s172, %s173
      %p187 = scmp.eq.s32.totalorder %s19, 31
      %p188 = por %p186, %p187
      %p190 = scmp.ne.s32.totalorder %s173, %s189
      %p191 = scmp.eq.s32.totalorder %s19, 0
      %p192 = por %p190, %p191
      %s193 = ssub.s32 %s23, %s34
      %p194 = scmp.eq.s32.totalorder %s193, 0
      %s196 = sadd.s32 %s195, 1
      %s197 = scalar_select %p194, %s195, %s196
      %p200 = pneg %p194
      %p201 = scmp.eq.s32.totalorder %s13, 31
      %p202 = por %p200, %p201
      %p203 = scmp.ne.s32.totalorder %s195, %s198
      %p204 = scmp.eq.s32.totalorder %s13, 0
      %p205 = por %p203, %p204
      %p206 = scmp.ne.s32.totalorder %s195, %s198
      %p207 = scmp.eq.s32.totalorder %s18, 31
      %p208 = por %p206, %p207
      %p209 = scmp.ne.s32.totalorder %s198, %s199
      %p210 = scmp.eq.s32.totalorder %s18, 0
      %p211 = por %p209, %p210
      %p212 = scmp.ne.s32.totalorder %s198, %s199
      %p213 = scmp.eq.s32.totalorder %s19, 31
      %p214 = por %p212, %p213
      %p216 = scmp.ne.s32.totalorder %s199, %s215
      %p217 = scmp.eq.s32.totalorder %s19, 0
      %p218 = por %p216, %p217
      %s219 = ssub.s32 %s23, %s34
      %p220 = scmp.eq.s32.totalorder %s219, 0
      %s222 = sadd.s32 %s221, 1
      %s223 = scalar_select %p220, %s221, %s222
      %p226 = pneg %p220
      %p227 = scmp.eq.s32.totalorder %s13, 31
      %p228 = por %p226, %p227
      %p229 = scmp.ne.s32.totalorder %s221, %s224
      %p230 = scmp.eq.s32.totalorder %s13, 0
      %p231 = por %p229, %p230
      %p232 = scmp.ne.s32.totalorder %s221, %s224
      %p233 = scmp.eq.s32.totalorder %s18, 31
      %p234 = por %p232, %p233
      %p235 = scmp.ne.s32.totalorder %s224, %s225
      %p236 = scmp.eq.s32.totalorder %s18, 0
      %p237 = por %p235, %p236
      %p238 = scmp.ne.s32.totalorder %s224, %s225
      %p239 = scmp.eq.s32.totalorder %s19, 31
      %p240 = por %p238, %p239
      %p242 = scmp.ne.s32.totalorder %s225, %s241
      %p243 = scmp.eq.s32.totalorder %s19, 0
      %p244 = por %p242, %p243
      %s245 = ssub.s32 %s20, %s46
      %s246 = ssub.s32 %s22, %s38
      %s247 = sor.u32 %s245, %s246
      %s248 = ssub.s32 %s21, %s42
      %s249 = sor.u32 %s247, %s248
      %p250 = scmp.eq.s32.totalorder %s249, 0
      %s252 = sadd.s32 %s251, 1
      %s253 = scalar_select %p250, %s251, %s252
      %p256 = pneg %p250
      %p257 = scmp.eq.s32.totalorder %s13, 31
      %p258 = por %p256, %p257
      %p259 = scmp.ne.s32.totalorder %s251, %s254
      %p260 = scmp.eq.s32.totalorder %s13, 0
      %p261 = por %p259, %p260
      %p262 = scmp.ne.s32.totalorder %s251, %s254
      %p263 = scmp.eq.s32.totalorder %s18, 31
      %p264 = por %p262, %p263
      %p265 = scmp.ne.s32.totalorder %s254, %s255
      %p266 = scmp.eq.s32.totalorder %s18, 0
      %p267 = por %p265, %p266
      %p268 = scmp.ne.s32.totalorder %s254, %s255
      %p269 = scmp.eq.s32.totalorder %s19, 31
      %p270 = por %p268, %p269
      %p272 = scmp.ne.s32.totalorder %s255, %s271
      %p273 = scmp.eq.s32.totalorder %s19, 0
      %p274 = por %p272, %p273
      %p275 = scmp.le.s32.totalorder 1, %s13
      %p276 = scmp.lt.s32.totalorder %s13, 33
      %p277 = pnand %p275, %p276
      %p278 = pneg %p277
      // Predicated region
      $region9: #{block_forward.6} parent=5 // pred_check
        _
      $region10: #{block_forward.6} parent=5 // pred_check_branch
        %280 = sbr.rel (%p277) target = $region12
      $region11: #{block_forward.6} parent=5 // pred_region
        %s281 = ssub.s32 %s13, 1
      $region12: #{block_forward.6} parent=5 // pred_fallthru
        _
      %p282 = scmp.lt.s32.totalorder %s13, 32
      // Predicated region
      $region13: #{block_forward.6} parent=5 // pred_check
        %p283 = pneg %p282
      $region14: #{block_forward.6} parent=5 // pred_check_branch
        %285 = sbr.rel (%p283) target = $region16
      $region15: #{block_forward.6} parent=5 // pred_region
        // Predicated region
        $region17: #{block_forward.6} parent=15 // pred_check
          %p286 = pneg %p63
        $region18: #{block_forward.6} parent=15 // pred_check_branch
          %288 = sbr.rel (%p286) target = $region20
        $region19: #{block_forward.6} parent=15 // pred_region
          %s289 = sand.u32 %s53, 1
          %s290 = sand.u32 %s53, 1
          %s291 = smul.addr %s290, 16
          %s292 = scalar_lea.vmem [#allocation6], %s291
          %s293 = smul.u32 2, %s22
          %s294 = smul.addr %s293, 6
          %s295 = sadd.s32 %s21, %s294
          %s296 = smul.addr %s20, 24
          %s297 = sadd.s32 %s295, %s296
          %s298 = smul.addr %s297, 8
          %s299 = scalar_lea.vmem %s0, %s298
          // Predicated region
          $region21: #{block_forward.6} parent=19 // pred_check
            _
          $region22: #{block_forward.6} parent=19 // pred_check_branch
            %301 = sbr.rel (0) target = $region24
          $region23: #{block_forward.6} parent=19 // pred_region
            // Predicated region
            $region25: #{block_forward.6} parent=23 // pred_check
              _
            $region26: #{block_forward.6} parent=23 // pred_check_branch
              %303 = sbr.rel (0) target = $region28
            $region27: #{block_forward.6} parent=23 // pred_region
              // Predicated region
              $region40: #{block_forward.6} parent=27 // pred_check
                _
              $region41: #{block_forward.6} parent=27 // pred_check_branch
                %320 = sbr.rel (0) target = $region43
              $region42: #{block_forward.6} parent=27 // pred_region
                loop: start=0, step=1, limit=1
                $region44: #{block_forward.6} parent=42 // loop_pre_header
                  _
                $region45: #{block_forward.6} parent=42 // loop_header
                  %s322 = sphi 0, %s326
                  %p323 = scmp.ge.s32.totalorder %s322, 1
                  %s327 = sphi %s299, %s299
                  %s328 = sphi %s292, %s292
                $region46: #{block_forward.6} parent=42 // loop_header_branch
                  %325 = sbr.rel (%p323) target = $region50
                $region47: #{block_forward.6} parent=42 // loop_body
                  %v329 = vld [vmem:[%s327] sm:$0xff]
                  %330 = vst [vmem:[%s328] sm:$0xff] %v329
                  %v331 = vld [vmem:[%s327 + $0x30] sm:$0xff]
                  %332 = vst [vmem:[%s328 + $0x8] sm:$0xff] %v331
                $region48: #{block_forward.6} parent=42 // loop_footer
                  %s326 = sadd.s32 1, %s322
                $region49: #{block_forward.6} parent=42 // loop_footer_branch
                  %321 = sbr.rel target = $region45
                $region50: #{block_forward.6} parent=42 // loop_exit
                  _
              $region43: #{block_forward.6} parent=27 // pred_fallthru
                _
              // Predicated region
              $region51: #{block_forward.6} parent=27 // pred_check
                _
              $region52: #{block_forward.6} parent=27 // pred_check_branch
                %334 = sbr.rel target = $region54
              $region53: #{block_forward.6} parent=27 // pred_region
                _
              $region54: #{block_forward.6} parent=27 // pred_fallthru
                _
            $region28: #{block_forward.6} parent=23 // pred_fallthru
              _
            // Predicated region
            $region29: #{block_forward.6} parent=23 // pred_check
              _
            $region30: #{block_forward.6} parent=23 // pred_check_branch
              %305 = sbr.rel target = $region32
            $region31: #{block_forward.6} parent=23 // pred_region
              loop: start=0, step=1, limit=1
              $region33: #{block_forward.6} parent=31 // loop_pre_header
                _
              $region34: #{block_forward.6} parent=31 // loop_header
                %s308 = sphi 0, %s312
                %p309 = scmp.ge.s32.totalorder %s308, 1
                %s313 = sphi %s299, %s299
                %s314 = sphi %s292, %s292
              $region35: #{block_forward.6} parent=31 // loop_header_branch
                %311 = sbr.rel (%p309) target = $region39
              $region36: #{block_forward.6} parent=31 // loop_body
                %v315 = vld [vmem:[%s313] sm:$0xff]
                %316 = vst [vmem:[%s314] sm:$0xff] %v315
                %v317 = vld [vmem:[%s313 + $0x30] sm:$0xff]
                %318 = vst [vmem:[%s314 + $0x8] sm:$0xff] %v317
              $region37: #{block_forward.6} parent=31 // loop_footer
                %s312 = sadd.s32 1, %s308
              $region38: #{block_forward.6} parent=31 // loop_footer_branch
                %307 = sbr.rel target = $region34
              $region39: #{block_forward.6} parent=31 // loop_exit
                _
            $region32: #{block_forward.6} parent=23 // pred_fallthru
              _
          $region24: #{block_forward.6} parent=19 // pred_fallthru
            _
          %335 = vnop
        $region20: #{block_forward.6} parent=15 // pred_fallthru
          _
        // Predicated region
        $region55: #{block_forward.6} parent=15 // pred_check
          %p336 = pneg %p95
        $region56: #{block_forward.6} parent=15 // pred_check_branch
          %338 = sbr.rel (%p336) target = $region58
        $region57: #{block_forward.6} parent=15 // pred_region
          %s339 = sadd.s32 %s21, 2
          %p340 = scmp.lt.s32.totalorder %s20, 1
          %s341 = scalar_select %p340, %s20, 1
          %p342 = scmp.lt.s32.totalorder %s23, 3
          %s343 = scalar_select %p342, %s23, 3
          %p344 = scmp.lt.s32.totalorder %s339, 5
          %s345 = scalar_select %p344, %s339, 5
          %s346 = smul.addr %s343, 6
          %s347 = sadd.s32 %s345, %s346
          %s348 = smul.addr %s341, 24
          %s349 = sadd.s32 %s347, %s348
          %s350 = smul.addr %s349, 8
          %s351 = scalar_lea.vmem %s1, %s350
          %s352 = sadd.s32 %s21, 2
        $region58: #{block_forward.6} parent=15 // pred_fallthru
          _
        // Predicated region
        $region59: #{block_forward.6} parent=15 // pred_check
          %p353 = pneg %p127
        $region60: #{block_forward.6} parent=15 // pred_check_branch
          %355 = sbr.rel (%p353) target = $region62
        $region61: #{block_forward.6} parent=15 // pred_region
          %s356 = sadd.s32 %s21, 4
          %p357 = scmp.lt.s32.totalorder %s20, 1
          %s358 = scalar_select %p357, %s20, 1
          %p359 = scmp.lt.s32.totalorder %s23, 3
          %s360 = scalar_select %p359, %s23, 3
          %p361 = scmp.lt.s32.totalorder %s356, 5
          %s362 = scalar_select %p361, %s356, 5
          %s363 = smul.addr %s360, 6
          %s364 = sadd.s32 %s362, %s363
          %s365 = smul.addr %s358, 24
          %s366 = sadd.s32 %s364, %s365
          %s367 = smul.addr %s366, 8
          %s368 = scalar_lea.vmem %s2, %s367
          %s369 = sadd.s32 %s21, 4
        $region62: #{block_forward.6} parent=15 // pred_fallthru
          _
        // Predicated region
        $region63: #{block_forward.6} parent=15 // pred_check
          %p370 = pneg %p153
        $region64: #{block_forward.6} parent=15 // pred_check_branch
          %372 = sbr.rel (%p370) target = $region66
        $region65: #{block_forward.6} parent=15 // pred_region
          %s373 = smul.u32 2, %s22
          %p374 = scmp.lt.s32.totalorder %s373, 3
          %s375 = scalar_select %p374, %s373, 3
          %s376 = smul.addr %s375, 8
          %s377 = scalar_lea.vmem %s3, %s376
          %s378 = smul.u32 2, %s22
        $region66: #{block_forward.6} parent=15 // pred_fallthru
          _
        // Predicated region
        $region67: #{block_forward.6} parent=15 // pred_check
          %p379 = pneg %p179
        $region68: #{block_forward.6} parent=15 // pred_check_branch
          %381 = sbr.rel (%p379) target = $region70
        $region69: #{block_forward.6} parent=15 // pred_region
          %s382 = smul.u32 2, %s22
          %p383 = scmp.lt.s32.totalorder %s382, 3
          %s384 = scalar_select %p383, %s382, 3
          %s385 = smul.addr %s384, 8
          %s386 = scalar_lea.vmem %s4, %s385
          %s387 = smul.u32 2, %s22
        $region70: #{block_forward.6} parent=15 // pred_fallthru
          _
        // Predicated region
        $region71: #{block_forward.6} parent=15 // pred_check
          %p388 = pneg %p205
        $region72: #{block_forward.6} parent=15 // pred_check_branch
          %390 = sbr.rel (%p388) target = $region74
        $region73: #{block_forward.6} parent=15 // pred_region
          %p391 = scmp.lt.s32.totalorder %s23, 3
          %s392 = scalar_select %p391, %s23, 3
          %s393 = smul.addr %s392, 8
          %s394 = scalar_lea.vmem %s5, %s393
        $region74: #{block_forward.6} parent=15 // pred_fallthru
          _
        // Predicated region
        $region75: #{block_forward.6} parent=15 // pred_check
          %p395 = pneg %p231
        $region76: #{block_forward.6} parent=15 // pred_check_branch
          %397 = sbr.rel (%p395) target = $region78
        $region77: #{block_forward.6} parent=15 // pred_region
          %p398 = scmp.lt.s32.totalorder %s23, 3
          %s399 = scalar_select %p398, %s23, 3
          %s400 = smul.addr %s399, 8
          %s401 = scalar_lea.vmem %s6, %s400
        $region78: #{block_forward.6} parent=15 // pred_fallthru
          _
      $region16: #{block_forward.6} parent=5 // pred_fallthru
        _
      %p402 = scmp.le.s32.totalorder 1, %s13
      %p403 = scmp.lt.s32.totalorder %s13, 33
      %p404 = pnand %p402, %p403
      %p405 = pneg %p404
      // Predicated region
      $region79: #{block_forward.6} parent=5 // pred_check
        _
      $region80: #{block_forward.6} parent=5 // pred_check_branch
        %407 = sbr.rel (%p404) target = $region82
      $region81: #{block_forward.6} parent=5 // pred_region
        %s408 = ssub.s32 %s13, 1
        %s409 = sand.u32 %s56, 1
        %s410 = sand.u32 %s56, 1
        %s411 = smul.addr %s410, 16
        %s412 = scalar_lea.vmem [#allocation6], %s411
        // Predicated region
        $region83: #{block_forward.6} parent=81 // pred_check
          %p413 = pneg %p69
        $region84: #{block_forward.6} parent=81 // pred_check_branch
          %415 = sbr.rel (%p413) target = $region86
        $region85: #{block_forward.6} parent=81 // pred_region
          _
        $region86: #{block_forward.6} parent=81 // pred_fallthru
          _
        %s416 = sand.u32 %s56, 1
        %s417 = sand.u32 %s56, 1
        %s418 = smul.addr %s417, 16
        %s419 = scalar_lea.vmem [#allocation6], %s418
        %p420 = pneg %p69
        %p421 = pneg %p66
        %s422 = sadd.s32 %s25, 2
        %p423 = scmp.lt.s32.totalorder %s24, 1
        %s424 = scalar_select %p423, %s24, 1
        %p425 = scmp.lt.s32.totalorder %s27, 3
        %s426 = scalar_select %p425, %s27, 3
        %p427 = scmp.lt.s32.totalorder %s422, 5
        %s428 = scalar_select %p427, %s422, 5
        %s429 = smul.addr %s426, 6
        %s430 = sadd.s32 %s428, %s429
        %s431 = smul.addr %s424, 24
        %s432 = sadd.s32 %s430, %s431
        %s433 = smul.addr %s432, 8
        %s434 = scalar_lea.vmem %s1, %s433
        %p435 = pneg %p101
        %p436 = pneg %p98
        %s437 = sadd.s32 %s25, 4
        %p438 = scmp.lt.s32.totalorder %s24, 1
        %s439 = scalar_select %p438, %s24, 1
        %p440 = scmp.lt.s32.totalorder %s27, 3
        %s441 = scalar_select %p440, %s27, 3
        %p442 = scmp.lt.s32.totalorder %s437, 5
        %s443 = scalar_select %p442, %s437, 5
        %s444 = smul.addr %s441, 6
        %s445 = sadd.s32 %s443, %s444
        %s446 = smul.addr %s439, 24
        %s447 = sadd.s32 %s445, %s446
        %s448 = smul.addr %s447, 8
        %s449 = scalar_lea.vmem %s2, %s448
        %p450 = pneg %p133
        %p451 = pneg %p130
        %s452 = smul.u32 2, %s26
        %p453 = scmp.lt.s32.totalorder %s452, 3
        %s454 = scalar_select %p453, %s452, 3
        %s455 = smul.addr %s454, 8
        %s456 = scalar_lea.vmem %s3, %s455
        %p457 = pneg %p159
        %p458 = pneg %p156
        %s459 = smul.u32 2, %s26
        %p460 = scmp.lt.s32.totalorder %s459, 3
        %s461 = scalar_select %p460, %s459, 3
        %s462 = smul.addr %s461, 8
        %s463 = scalar_lea.vmem %s4, %s462
        %p464 = pneg %p185
        %p465 = pneg %p182
        %p466 = scmp.lt.s32.totalorder %s27, 3
        %s467 = scalar_select %p466, %s27, 3
        %s468 = smul.addr %s467, 8
        %s469 = scalar_lea.vmem %s5, %s468
        %p470 = pneg %p211
        %p471 = pneg %p208
        %p472 = scmp.lt.s32.totalorder %s27, 3
        %s473 = scalar_select %p472, %s27, 3
        %s474 = smul.addr %s473, 8
        %s475 = scalar_lea.vmem %s6, %s474
        %p476 = pneg %p237
        %p477 = pneg %p234
        %p478 = pneg %p267
        %p479 = pneg %p264
        %s480 = sand.u32 %s254, 1
        %s481 = sand.u32 %s254, 1
        %s482 = smul.addr %s481, 16
        %s483 = scalar_lea.vmem [#allocation7], %s482
        %s484 = smul.u32 2, %s26
        %s485 = sadd.s32 %s25, 2
        %p486 = scmp.lt.s32.totalorder %s24, 1
        %s487 = scalar_select %p486, %s24, 1
        %p488 = scmp.lt.s32.totalorder %s27, 3
        %s489 = scalar_select %p488, %s27, 3
        %p490 = scmp.lt.s32.totalorder %s485, 5
        %s491 = scalar_select %p490, %s485, 5
        %s492 = smul.addr %s489, 6
        %s493 = sadd.s32 %s491, %s492
        %s494 = smul.addr %s487, 24
        %s495 = sadd.s32 %s493, %s494
        %s496 = smul.addr %s495, 8
        %s497 = scalar_lea.vmem %s1, %s496
        %s498 = sadd.s32 %s25, 2
        %s499 = sadd.s32 %s25, 4
        %p500 = scmp.lt.s32.totalorder %s24, 1
        %s501 = scalar_select %p500, %s24, 1
        %p502 = scmp.lt.s32.totalorder %s27, 3
        %s503 = scalar_select %p502, %s27, 3
        %p504 = scmp.lt.s32.totalorder %s499, 5
        %s505 = scalar_select %p504, %s499, 5
        %s506 = smul.addr %s503, 6
        %s507 = sadd.s32 %s505, %s506
        %s508 = smul.addr %s501, 24
        %s509 = sadd.s32 %s507, %s508
        %s510 = smul.addr %s509, 8
        %s511 = scalar_lea.vmem %s2, %s510
        %s512 = sadd.s32 %s25, 4
        %s513 = smul.u32 2, %s26
        %p514 = scmp.lt.s32.totalorder %s513, 3
        %s515 = scalar_select %p514, %s513, 3
        %s516 = smul.addr %s515, 8
        %s517 = scalar_lea.vmem %s3, %s516
        %s518 = smul.u32 2, %s26
        %s519 = smul.u32 2, %s26
        %p520 = scmp.lt.s32.totalorder %s519, 3
        %s521 = scalar_select %p520, %s519, 3
        %s522 = smul.addr %s521, 8
        %s523 = scalar_lea.vmem %s4, %s522
        %s524 = smul.u32 2, %s26
        %p525 = scmp.lt.s32.totalorder %s27, 3
        %s526 = scalar_select %p525, %s27, 3
        %s527 = smul.addr %s526, 8
        %s528 = scalar_lea.vmem %s5, %s527
        %p529 = scmp.lt.s32.totalorder %s27, 3
        %s530 = scalar_select %p529, %s27, 3
        %s531 = smul.addr %s530, 8
        %s532 = scalar_lea.vmem %s6, %s531
        %s533 = smul.u32 2, %s26
        %s534 = smul.u32 %s26, 16
        %s535 = smul.u32 %s27, 8
        %p536 = scmp.eq.s32.totalorder %s27, 0
        // Predicated region
        $region87: #{block_forward.6} parent=81 // pred_check
          %p537 = pneg %p536
        $region88: #{block_forward.6} parent=81 // pred_check_branch
          %539 = sbr.rel (%p537) target = $region90
        $region89: #{block_forward.6} parent=81 // pred_region
          %vm540 = vcmask 7168
          %541 = vst.msk [vmem:[#allocation3] sm:$0xff] %vm540, -inf
          %542 = vst.msk [vmem:[#allocation3 + $0x8] sm:$0xff] %vm540, -inf
          %543 = vst.msk [vmem:[#allocation4] sm:$0xff] %vm540, 0.0
          %544 = vst.msk [vmem:[#allocation4 + $0x8] sm:$0xff] %vm540, 0.0
          %545 = vst [vmem:[#allocation5] sm:$0xff] 0.0
          %546 = vst [vmem:[#allocation5 + $0x8] sm:$0xff] 0.0
          %v547 = vld [vmem:[%s412] sm:$0xff]
          %v548 = vld [vmem:[%s412 + $0x8] sm:$0xff]
          %v549 = vld [vmem:[%s517] sm:$0xff]
          %v550 = vld [vmem:[%s517 + $0x8] sm:$0xff]
          %v551 = vld [vmem:[%s523] sm:$0xff]
          %v552 = vld [vmem:[%s523 + $0x8] sm:$0xff]
          %v553 = vmul.f32 %v547, %v549
          %v554 = vmul.f32 %v548, %v550
          %557 = vrot.lane.b32.xlu0 %v551, 64
          %v558 = vpop.permute.xlu0 %557
          %559 = vrot.lane.b32.xlu0 %v552, 64
          %v560 = vpop.permute.xlu0 %559
          %v563 = vmul.f32 %v547, %v558
          %v564 = vmul.f32 %v548, %v560
          %567 = vrot.lane.b32.xlu0 %v563, 64
          %v568 = vpop.permute.xlu0 %567
          %569 = vrot.lane.b32.xlu0 %v564, 64
          %v570 = vpop.permute.xlu0 %569
          %v573 = vsub.f32 %v553, %v568
          %v574 = vsub.f32 %v554, %v570
          %v575 = vmul.f32 %v547, %v551
          %v576 = vmul.f32 %v548, %v552
          %579 = vrot.lane.b32.xlu0 %v549, 64
          %v580 = vpop.permute.xlu0 %579
          %581 = vrot.lane.b32.xlu0 %v550, 64
          %v582 = vpop.permute.xlu0 %581
          %v585 = vmul.f32 %v547, %v580
          %v586 = vmul.f32 %v548, %v582
          %589 = vrot.lane.b32.xlu0 %v585, 64
          %v590 = vpop.permute.xlu0 %589
          %591 = vrot.lane.b32.xlu0 %v586, 64
          %v592 = vpop.permute.xlu0 %591
          %v595 = vadd.f32 %v575, %v590
          %v596 = vadd.f32 %v576, %v592
          %599 = vrot.lane.b32.xlu0 %v595, 64
          %v600 = vpop.permute.xlu0 %599
          %601 = vrot.lane.b32.xlu0 %v596, 64
          %v602 = vpop.permute.xlu0 %601
          %vm605 = vcmask 523264
          %v606 = vsel %vm605, %v573, %v600
          %v607 = vsel %vm605, %v574, %v602
          %v608 = vmul.f32 %v606, 0.088388346
          %v609 = vmul.f32 %v607, 0.088388346
          %610 = vst [vmem:[#allocation2] sm:$0xff] %v608
          %611 = vst [vmem:[#allocation2 + $0x8] sm:$0xff] %v609
        $region90: #{block_forward.6} parent=81 // pred_fallthru
          _
        %s612 = sadd.s32 %s534, 15
        %p613 = scmp.le.s32.totalorder %s535, %s612
        // Predicated region
        $region91: #{block_forward.6} parent=81 // pred_check
          %p614 = pneg %p613
        $region92: #{block_forward.6} parent=81 // pred_check_branch
          %616 = sbr.rel (%p614) target = $region94
        $region93: #{block_forward.6} parent=81 // pred_region
          %v617 = vld [vmem:[%s497] sm:$0xff]
          %v618 = vld [vmem:[%s528] sm:$0xff]
          %v619 = vld [vmem:[%s532] sm:$0xff]
          %v620 = vmul.f32 %v617, %v618
          %622 = vrot.lane.b32.xlu0 %v619, 64
          %v623 = vpop.permute.xlu0 %622
          %v625 = vmul.f32 %v617, %v623
          %627 = vrot.lane.b32.xlu0 %v625, 64
          %v628 = vpop.permute.xlu0 %627
          %v630 = vsub.f32 %v620, %v628
          %v631 = vmul.f32 %v617, %v619
          %633 = vrot.lane.b32.xlu0 %v618, 64
          %v634 = vpop.permute.xlu0 %633
          %v636 = vmul.f32 %v617, %v634
          %638 = vrot.lane.b32.xlu0 %v636, 64
          %v639 = vpop.permute.xlu0 %638
          %v641 = vadd.f32 %v631, %v639
          %643 = vrot.lane.b32.xlu0 %v641, 64
          %v644 = vpop.permute.xlu0 %643
          %vm646 = vcmask 523264
          %v647 = vsel %vm646, %v630, %v644
          %v648 = vld [vmem:[#allocation2] sm:$0xff]
          %v649 = vld [vmem:[#allocation2 + $0x8] sm:$0xff]
          %650 = vmatprep.subr.mxu0 0.0
          %651 = vmatpush1.xpose.msra.mxu0 %v647
          %652 = vmatprep.subr.mxu0 0.0
          %653 = vmatpush1.xpose.msra.mxu0 0.0
          %654 = vmatprep.subr.mxu0 0.0
          %655 = vmatpush1.xpose.msra.mxu0 0.0
          %656 = vmatprep.subr.mxu0 0.0
          %657 = vmatpush1.xpose.msra.mxu0 0.0
          %658 = vmatprep.subr.mxu0 0.0
          %659 = vmatpush1.xpose.msra.mxu0 0.0
          %660 = vmatprep.subr.mxu0 0.0
          %661 = vmatpush1.xpose.msra.mxu0 0.0
          %662 = vmatprep.subr.mxu0 0.0
          %663 = vmatpush1.xpose.msra.mxu0 0.0
          %664 = vmatprep.subr.mxu0 0.0
          %665 = vmatpush1.xpose.msra.mxu0 0.0
          %666 = vmatprep.subr.mxu0 0.0
          %667 = vmatpush1.xpose.msra.mxu0 0.0
          %668 = vmatprep.subr.mxu0 0.0
          %669 = vmatpush1.xpose.msra.mxu0 0.0
          %670 = vmatprep.subr.mxu0 0.0
          %671 = vmatpush1.xpose.msra.mxu0 0.0
          %672 = vmatprep.subr.mxu0 0.0
          %673 = vmatpush1.xpose.msra.mxu0 0.0
          %674 = vmatprep.subr.mxu0 0.0
          %675 = vmatpush1.xpose.msra.mxu0 0.0
          %676 = vmatprep.subr.mxu0 0.0
          %677 = vmatpush1.xpose.msra.mxu0 0.0
          %678 = vmatprep.subr.mxu0 0.0
          %679 = vmatpush1.xpose.msra.mxu0 0.0
          %680 = vmatprep.subr.mxu0 0.0
          %681 = vmatpush1.xpose.msra.mxu0 0.0
          %682 = vmatprep.subr.mxu0 0.0
          %683 = vmatpush1.xpose.msra.mxu0 0.0
          %684 = vmatprep.subr.mxu0 0.0
          %685 = vmatpush1.xpose.msra.mxu0 0.0
          %686 = vmatprep.subr.mxu0 0.0
          %687 = vmatpush1.xpose.msra.mxu0 0.0
          %688 = vmatprep.subr.mxu0 0.0
          %689 = vmatpush1.xpose.msra.mxu0 0.0
          %690 = vmatprep.subr.mxu0 0.0
          %691 = vmatpush1.xpose.msra.mxu0 0.0
          %692 = vmatprep.subr.mxu0 0.0
          %693 = vmatpush1.xpose.msra.mxu0 0.0
          %694 = vmatprep.subr.mxu0 0.0
          %695 = vmatpush1.xpose.msra.mxu0 0.0
          %696 = vmatprep.subr.mxu0 0.0
          %697 = vmatpush1.xpose.msra.mxu0 0.0
          %698 = vmatprep.subr.mxu0 0.0
          %699 = vmatpush1.xpose.msra.mxu0 0.0
          %700 = vmatprep.subr.mxu0 0.0
          %701 = vmatpush1.xpose.msra.mxu0 0.0
          %702 = vmatprep.subr.mxu0 0.0
          %703 = vmatpush1.xpose.msra.mxu0 0.0
          %704 = vmatprep.subr.mxu0 0.0
          %705 = vmatpush1.xpose.msra.mxu0 0.0
          %706 = vmatprep.subr.mxu0 0.0
          %707 = vmatpush1.xpose.msra.mxu0 0.0
          %708 = vmatprep.subr.mxu0 0.0
          %709 = vmatpush1.xpose.msra.mxu0 0.0
          %710 = vmatprep.subr.mxu0 0.0
          %711 = vmatpush1.xpose.msra.mxu0 0.0
          %712 = vmatprep.subr.mxu0 0.0
          %713 = vmatpush1.xpose.msra.mxu0 0.0
          %714 = vmatprep.mubr.f32.mxu0 0.0
          %715 = vmatmul.mubr.f32.gmra.mrb[0].mxu0 %v648
          %v716 = vpop.f32.mrb[0].mxu0
          %v717 = vadd.f32 0.0, %v716
          %v718 = vpop.f32.mrb[0].mxu0
          %719 = vmatprep.mubr.f32.mxu0 0.0
          %720 = vmatmul.mubr.f32.gmra.mrb[0].mxu0 %v649
          %v721 = vpop.f32.mrb[0].mxu0
          %v722 = vadd.f32 0.0, %v721
          %v723 = vpop.f32.mrb[0].mxu0
          %724 = vdwg.mxu0
          %v725 = vlaneseq
          %v726 = vshrl.u32 %v725, 7
          %v727 = vadd.s32 %v726, 8
          %v728 = vstv %s534
          %v729 = vadd.s32 %v728, %v726
          %v730 = vadd.s32 %v728, %v727
          %v731 = vlaneseq
          %v732 = vand.u32 %v731, 127
          %v733 = vstv %s535
          %v734 = vadd.s32 %v733, %v732
          %vm735 = vcmp.le.s32.totalorder %v734, %v729
          %vm736 = vcmp.le.s32.totalorder %v734, %v730
          %v737 = vsel %vm735, %v717, -inf
          %v738 = vsel %vm736, %v722, -inf
          %v739 = vld [vmem:[#allocation3] sm:$0xff]
          %v740 = vld [vmem:[#allocation3 + $0x8] sm:$0xff]
          %vm741 = vcmask 64512
          %v742 = vsel %vm741, %v737, -inf
          %743 = vmax.xlane.f32.xlu0 %v742
          %v744 = vpop.xlane.xlu0 %743
          %v745 = vsel %vm741, %v738, -inf
          %746 = vmax.xlane.f32.xlu0 %v745
          %v747 = vpop.xlane.xlu0 %746
          %v748 = vmax.f32 %v739, %v744
          %v749 = vmax.f32 %v740, %v747
          %v750 = vsub.f32 %v739, %v748
          %v751 = vsub.f32 %v740, %v749
          %v752 = vmul.f32 %v750, 1.442695
          %v753 = vpow.pop %v752
          %v754 = vmul.f32 %v751, 1.442695
          %v755 = vpow.pop %v754
          %757 = vset.pattern.permute.xlu0 0
          %758 = vperm.xlu0 %757, %v748
          %v759 = vpop.permute.xlu0 %758
          %762 = vset.pattern.permute.xlu0 0
          %763 = vperm.xlu0 %762, %v749
          %v764 = vpop.permute.xlu0 %763
          %v766 = vsub.f32 %v737, %v759
          %v767 = vsub.f32 %v738, %v764
          %v768 = vmul.f32 %v766, 1.442695
          %v769 = vpow.pop %v768
          %v770 = vmul.f32 %v767, 1.442695
          %v771 = vpow.pop %v770
          %v772 = vld [vmem:[#allocation4] sm:$0xff]
          %v773 = vld [vmem:[#allocation4 + $0x8] sm:$0xff]
          %v774 = vmul.f32 %v753, %v772
          %v775 = vmul.f32 %v755, %v773
          %v776 = vsel %vm741, %v769, 0.0
          %777 = vadd.xlane.f32.xlu0 %v776
          %v778 = vpop.xlane.xlu0 %777
          %v779 = vsel %vm741, %v771, 0.0
          %780 = vadd.xlane.f32.xlu0 %v779
          %v781 = vpop.xlane.xlu0 %780
          %v782 = vadd.f32 %v774, %v778
          %v783 = vadd.f32 %v775, %v781
          %vm784 = vcmask 7168
          %785 = vst.msk [vmem:[#allocation4] sm:$0xff] %vm784, %v782
          %786 = vst.msk [vmem:[#allocation4 + $0x8] sm:$0xff] %vm784, %v783
          %v787 = vld [vmem:[#allocation5] sm:$0xff]
          %v788 = vld [vmem:[#allocation5 + $0x8] sm:$0xff]
          %790 = vset.pattern.permute.xlu0 0
          %791 = vperm.xlu0 %790, %v753
          %v792 = vpop.permute.xlu0 %791
          %795 = vset.pattern.permute.xlu0 0
          %796 = vperm.xlu0 %795, %v755
          %v797 = vpop.permute.xlu0 %796
          %v799 = vmul.f32 %v792, %v787
          %v800 = vmul.f32 %v797, %v788
          %v801 = vld [vmem:[%s511] sm:$0xff]
          %v803 = vsel %vm741, %v769, 0
          %v806 = vsel %vm741, %v771, 0
          %808 = vmatprep.subr.mxu0 0.0
          %809 = vmatpush1.msra.mxu0 %v801
          %810 = vmatprep.subr.mxu0 0.0
          %811 = vmatpush1.msra.mxu0 0.0
          %812 = vmatprep.subr.mxu0 0.0
          %813 = vmatpush1.msra.mxu0 0.0
          %814 = vmatprep.subr.mxu0 0.0
          %815 = vmatpush1.msra.mxu0 0.0
          %816 = vmatprep.subr.mxu0 0.0
          %817 = vmatpush1.msra.mxu0 0.0
          %818 = vmatprep.subr.mxu0 0.0
          %819 = vmatpush1.msra.mxu0 0.0
          %820 = vmatprep.subr.mxu0 0.0
          %821 = vmatpush1.msra.mxu0 0.0
          %822 = vmatprep.subr.mxu0 0.0
          %823 = vmatpush1.msra.mxu0 0.0
          %824 = vmatprep.subr.mxu0 0.0
          %825 = vmatpush1.msra.mxu0 0.0
          %826 = vmatprep.subr.mxu0 0.0
          %827 = vmatpush1.msra.mxu0 0.0
          %828 = vmatprep.subr.mxu0 0.0
          %829 = vmatpush1.msra.mxu0 0.0
          %830 = vmatprep.subr.mxu0 0.0
          %831 = vmatpush1.msra.mxu0 0.0
          %832 = vmatprep.subr.mxu0 0.0
          %833 = vmatpush1.msra.mxu0 0.0
          %834 = vmatprep.subr.mxu0 0.0
          %835 = vmatpush1.msra.mxu0 0.0
          %836 = vmatprep.subr.mxu0 0.0
          %837 = vmatpush1.msra.mxu0 0.0
          %838 = vmatprep.subr.mxu0 0.0
          %839 = vmatpush1.msra.mxu0 0.0
          %840 = vmatprep.subr.mxu0 0.0
          %841 = vmatpush1.msra.mxu0 0.0
          %842 = vmatprep.subr.mxu0 0.0
          %843 = vmatpush1.msra.mxu0 0.0
          %844 = vmatprep.subr.mxu0 0.0
          %845 = vmatpush1.msra.mxu0 0.0
          %846 = vmatprep.subr.mxu0 0.0
          %847 = vmatpush1.msra.mxu0 0.0
          %848 = vmatprep.subr.mxu0 0.0
          %849 = vmatpush1.msra.mxu0 0.0
          %850 = vmatprep.subr.mxu0 0.0
          %851 = vmatpush1.msra.mxu0 0.0
          %852 = vmatprep.subr.mxu0 0.0
          %853 = vmatpush1.msra.mxu0 0.0
          %854 = vmatprep.subr.mxu0 0.0
          %855 = vmatpush1.msra.mxu0 0.0
          %856 = vmatprep.subr.mxu0 0.0
          %857 = vmatpush1.msra.mxu0 0.0
          %858 = vmatprep.subr.mxu0 0.0
          %859 = vmatpush1.msra.mxu0 0.0
          %860 = vmatprep.subr.mxu0 0.0
          %861 = vmatpush1.msra.mxu0 0.0
          %862 = vmatprep.subr.mxu0 0.0
          %863 = vmatpush1.msra.mxu0 0.0
          %864 = vmatprep.subr.mxu0 0.0
          %865 = vmatpush1.msra.mxu0 0.0
          %866 = vmatprep.subr.mxu0 0.0
          %867 = vmatpush1.msra.mxu0 0.0
          %868 = vmatprep.subr.mxu0 0.0
          %869 = vmatpush1.msra.mxu0 0.0
          %870 = vmatprep.subr.mxu0 0.0
          %871 = vmatpush1.msra.mxu0 0.0
          %872 = vmatprep.mubr.f32.mxu0 0.0
          %873 = vmatmul.mubr.f32.gmra.mrb[0].mxu0 %v803
          %v874 = vpop.f32.mrb[0].mxu0
          %v875 = vadd.f32 0.0, %v874
          %v876 = vpop.f32.mrb[0].mxu0
          %877 = vmatprep.mubr.f32.mxu0 0.0
          %878 = vmatmul.mubr.f32.gmra.mrb[0].mxu0 %v806
          %v879 = vpop.f32.mrb[0].mxu0
          %v880 = vadd.f32 0.0, %v879
          %v881 = vpop.f32.mrb[0].mxu0
          %882 = vdwg.mxu0
          %v883 = vadd.f32 %v799, %v875
          %v884 = vadd.f32 %v800, %v880
          %885 = vst [vmem:[#allocation5] sm:$0xff] %v883
          %886 = vst [vmem:[#allocation5 + $0x8] sm:$0xff] %v884
          %887 = vst.msk [vmem:[#allocation3] sm:$0xff] %vm784, %v748
          %888 = vst.msk [vmem:[#allocation3 + $0x8] sm:$0xff] %vm784, %v749
        $region94: #{block_forward.6} parent=81 // pred_fallthru
          _
        %p889 = scmp.eq.s32.totalorder %s27, 3
        // Predicated region
        $region95: #{block_forward.6} parent=81 // pred_check
          %p890 = pneg %p889
        $region96: #{block_forward.6} parent=81 // pred_check_branch
          %892 = sbr.rel (%p890) target = $region98
        $region97: #{block_forward.6} parent=81 // pred_region
          %v893 = vld [vmem:[#allocation5] sm:$0xff]
          %v894 = vld [vmem:[#allocation5 + $0x8] sm:$0xff]
          %v895 = vld [vmem:[#allocation4] sm:$0xff]
          %v896 = vld [vmem:[#allocation4 + $0x8] sm:$0xff]
          %v897 = vrcp.pop %v895
          %v898 = vrcp.pop %v896
          %900 = vset.pattern.permute.xlu0 0
          %901 = vperm.xlu0 %900, %v897
          %v902 = vpop.permute.xlu0 %901
          %905 = vset.pattern.permute.xlu0 0
          %906 = vperm.xlu0 %905, %v898
          %v907 = vpop.permute.xlu0 %906
          %v909 = vmul.f32 %v893, %v902
          %v910 = vmul.f32 %v894, %v907
          %911 = vst [vmem:[%s483] sm:$0xff] %v909
          %912 = vst [vmem:[%s483 + $0x8] sm:$0xff] %v910
        $region98: #{block_forward.6} parent=81 // pred_fallthru
          _
        %s913 = sand.u32 %s254, 1
        %s914 = sand.u32 %s254, 1
        %s915 = smul.addr %s914, 16
        %s916 = scalar_lea.vmem [#allocation7], %s915
        // Predicated region
        $region99: #{block_forward.6} parent=81 // pred_check
          %p917 = pneg %p264
        $region100: #{block_forward.6} parent=81 // pred_check_branch
          %919 = sbr.rel (%p917) target = $region102
        $region101: #{block_forward.6} parent=81 // pred_region
          %s920 = smul.u32 2, %s26
          %s921 = smul.addr %s920, 2
          %s922 = sadd.s32 %s25, %s921
          %s923 = smul.addr %s24, 8
          %s924 = sadd.s32 %s922, %s923
          %s925 = smul.addr %s924, 8
          %s926 = scalar_lea.vmem %s7, %s925
          // Predicated region
          $region103: #{block_forward.6} parent=101 // pred_check
            _
          $region104: #{block_forward.6} parent=101 // pred_check_branch
            %928 = sbr.rel (0) target = $region106
          $region105: #{block_forward.6} parent=101 // pred_region
            // Predicated region
            $region107: #{block_forward.6} parent=105 // pred_check
              _
            $region108: #{block_forward.6} parent=105 // pred_check_branch
              %930 = sbr.rel (0) target = $region110
            $region109: #{block_forward.6} parent=105 // pred_region
              // Predicated region
              $region122: #{block_forward.6} parent=109 // pred_check
                _
              $region123: #{block_forward.6} parent=109 // pred_check_branch
                %947 = sbr.rel (0) target = $region125
              $region124: #{block_forward.6} parent=109 // pred_region
                loop: start=0, step=1, limit=1
                $region126: #{block_forward.6} parent=124 // loop_pre_header
                  _
                $region127: #{block_forward.6} parent=124 // loop_header
                  %s949 = sphi 0, %s953
                  %p950 = scmp.ge.s32.totalorder %s949, 1
                  %s954 = sphi %s916, %s916
                  %s955 = sphi %s926, %s926
                $region128: #{block_forward.6} parent=124 // loop_header_branch
                  %952 = sbr.rel (%p950) target = $region132
                $region129: #{block_forward.6} parent=124 // loop_body
                  %v956 = vld [vmem:[%s954] sm:$0xff]
                  %957 = vst [vmem:[%s955] sm:$0xff] %v956
                  %v958 = vld [vmem:[%s954 + $0x8] sm:$0xff]
                  %959 = vst [vmem:[%s955 + $0x10] sm:$0xff] %v958
                $region130: #{block_forward.6} parent=124 // loop_footer
                  %s953 = sadd.s32 1, %s949
                $region131: #{block_forward.6} parent=124 // loop_footer_branch
                  %948 = sbr.rel target = $region127
                $region132: #{block_forward.6} parent=124 // loop_exit
                  _
              $region125: #{block_forward.6} parent=109 // pred_fallthru
                _
              // Predicated region
              $region133: #{block_forward.6} parent=109 // pred_check
                _
              $region134: #{block_forward.6} parent=109 // pred_check_branch
                %961 = sbr.rel target = $region136
              $region135: #{block_forward.6} parent=109 // pred_region
                _
              $region136: #{block_forward.6} parent=109 // pred_fallthru
                _
            $region110: #{block_forward.6} parent=105 // pred_fallthru
              _
            // Predicated region
            $region111: #{block_forward.6} parent=105 // pred_check
              _
            $region112: #{block_forward.6} parent=105 // pred_check_branch
              %932 = sbr.rel target = $region114
            $region113: #{block_forward.6} parent=105 // pred_region
              loop: start=0, step=1, limit=1
              $region115: #{block_forward.6} parent=113 // loop_pre_header
                _
              $region116: #{block_forward.6} parent=113 // loop_header
                %s935 = sphi 0, %s939
                %p936 = scmp.ge.s32.totalorder %s935, 1
                %s940 = sphi %s916, %s916
                %s941 = sphi %s926, %s926
              $region117: #{block_forward.6} parent=113 // loop_header_branch
                %938 = sbr.rel (%p936) target = $region121
              $region118: #{block_forward.6} parent=113 // loop_body
                %v942 = vld [vmem:[%s940] sm:$0xff]
                %943 = vst [vmem:[%s941] sm:$0xff] %v942
                %v944 = vld [vmem:[%s940 + $0x8] sm:$0xff]
                %945 = vst [vmem:[%s941 + $0x10] sm:$0xff] %v944
              $region119: #{block_forward.6} parent=113 // loop_footer
                %s939 = sadd.s32 1, %s935
              $region120: #{block_forward.6} parent=113 // loop_footer_branch
                %934 = sbr.rel target = $region116
              $region121: #{block_forward.6} parent=113 // loop_exit
                _
            $region114: #{block_forward.6} parent=105 // pred_fallthru
              _
          $region106: #{block_forward.6} parent=101 // pred_fallthru
            _
          %962 = vnop
        $region102: #{block_forward.6} parent=81 // pred_fallthru
          _
      $region82: #{block_forward.6} parent=5 // pred_fallthru
        _
      %p963 = scmp.le.s32.totalorder 2, %s13
      // Predicated region
      $region137: #{block_forward.6} parent=5 // pred_check
        %p964 = pneg %p963
      $region138: #{block_forward.6} parent=5 // pred_check_branch
        %966 = sbr.rel (%p964) target = $region140
      $region139: #{block_forward.6} parent=5 // pred_region
        %s967 = ssub.s32 %s13, 2
        // Predicated region
        $region141: #{block_forward.6} parent=139 // pred_check
          %p968 = pneg %p270
        $region142: #{block_forward.6} parent=139 // pred_check_branch
          %970 = sbr.rel (%p968) target = $region144
        $region143: #{block_forward.6} parent=139 // pred_region
          %s971 = sand.u32 %s255, 1
          %s972 = sand.u32 %s255, 1
          %s973 = smul.addr %s972, 16
          %s974 = scalar_lea.vmem [#allocation7], %s973
        $region144: #{block_forward.6} parent=139 // pred_fallthru
          _
      $region140: #{block_forward.6} parent=5 // pred_fallthru
        _
    $region6: #{block_forward.6} parent=1 // loop_footer
      %s17 = sadd.s32 1, %s13
    $region7: #{block_forward.6} parent=1 // loop_footer_branch
      %12 = sbr.rel target = $region3
    $region8: #{block_forward.6} parent=1 // loop_exit
      _

// kernel: block_forward.5
$region0: #{block_forward.5}
  #allocation0 [shape = 'u32[]', space=smem, size = 0x4, offset = 0x4, fixed_abs, tag = 'smem constant byte address 0x4 - core index']
  #allocation1 [shape = 'u32[144,128]{1,0:T(1,128)}', space=vmem, size = 0x12000, scoped, tag = 'internal scratch']
  %s0 = inlined_call_operand.hbm [shape: f32[64,256], index: 0, kind: input, shape index: {}]
  %s1 = inlined_call_operand.hbm [shape: f32[1,256], index: 1, kind: input, shape index: {}]
  %s2 = inlined_call_operand.hbm [shape: f32[256,768], index: 2, kind: input, shape index: {}]
  %s3 = inlined_call_operand.vmem [shape: f32[64,768], index: 3, kind: output, shape index: {}]
  %s4 = sld [smem:[#allocation0]]
  $region76: #{block_forward.5} parent=0
    _
  %s6 = ssub.s32 1, %s4
  %s7 = scalar_select 0, %s6, %s4
  $region1: #{block_forward.5} parent=0
    #allocation2 [shape = 'u8[65536]{0}', space=vmem, size = 0x10000, scoped, tag = 'input window, operand 0, single buffered']
    #allocation3 [shape = 's32[2]{0}', space=sflag, size = 0x8, scoped, tag = 'scoped memory for block_forward.5']
    #allocation4 [shape = 'u8[1024]{0}', space=vmem, size = 0x400, scoped, tag = 'input window, operand 1, single buffered']
    #allocation5 [shape = 's32[1]{0}', space=sflag, size = 0x4, scoped, tag = 'scoped memory for block_forward.5']
    #allocation6 [shape = 'u8[524288]{0}', space=vmem, size = 0x80000, scoped, tag = 'input window, operand 2']
    #allocation7 [shape = 'u8[131072]{0}', space=vmem, size = 0x20000, scoped, tag = 'output window, operand 0']
    %8 = vsyncpa [#allocation3], 0
    %9 = vsyncpa [#allocation5], 0
    loop: start=0, step=1, limit=5
    $region2: #{block_forward.5} parent=1 // loop_pre_header
      _
    $region3: #{block_forward.5} parent=1 // loop_header
      %s11 = sphi 0, %s15
      %p12 = scmp.ge.s32.totalorder %s11, 5
      %s18 = sphi 0, %s30
      %s19 = sphi 0, %s26
      %s20 = sphi 0, %s18
      %s21 = sphi 0, %s19
      %s22 = sphi 0, %s20
      %s23 = sphi 0, %s21
      %s33 = sphi 0, %s35
      %s36 = sphi 0, %s33
      %s37 = sphi 0, %s36
      %s53 = sphi 0, %s37
      %s57 = sphi 0, %s57
      %s59 = sphi 0, %s57
      %s60 = sphi 0, %s59
      %s74 = sphi 0, %s60
      %s80 = sphi 0, %s82
      %s83 = sphi 0, %s80
      %s84 = sphi 0, %s83
      %s100 = sphi 0, %s84
      %s108 = sphi 0, %s110
      %s111 = sphi 0, %s108
      %s112 = sphi 0, %s111
      %s128 = sphi 0, %s112
    $region4: #{block_forward.5} parent=1 // loop_header_branch
      %14 = sbr.rel (%p12) target = $region8
    $region5: #{block_forward.5} parent=1 // loop_body
      %s16 = ssub.s32 %s11, 1
      %s17 = ssub.s32 %s11, 2
      %s24 = sadd.s32 1, %s19
      %p25 = scmp.ge.s32.totalorder %s24, 3
      %s26 = scalar_select %p25, 0, %s24
      %s27 = sadd.s32 1, %s18
      %s28 = scalar_select %p25, %s27, %s18
      %p29 = scmp.ge.s32.totalorder %s28, 1
      %s30 = scalar_select %p29, 0, %s28
      %s31 = ssub.s32 %s18, %s30
      %p32 = scmp.eq.s32.totalorder %s31, 0
      %s34 = sadd.s32 %s33, 1
      %s35 = scalar_select %p32, %s33, %s34
      %p38 = pneg %p32
      %p39 = scmp.eq.s32.totalorder %s11, 2
      %p40 = por %p38, %p39
      %p41 = scmp.ne.s32.totalorder %s33, %s36
      %p42 = scmp.eq.s32.totalorder %s11, 0
      %p43 = por %p41, %p42
      %p44 = scmp.ne.s32.totalorder %s33, %s36
      %p45 = scmp.eq.s32.totalorder %s16, 2
      %p46 = por %p44, %p45
      %p47 = scmp.ne.s32.totalorder %s36, %s37
      %p48 = scmp.eq.s32.totalorder %s16, 0
      %p49 = por %p47, %p48
      %p50 = scmp.ne.s32.totalorder %s36, %s37
      %p51 = scmp.eq.s32.totalorder %s17, 2
      %p52 = por %p50, %p51
      %p54 = scmp.ne.s32.totalorder %s37, %s53
      %p55 = scmp.eq.s32.totalorder %s17, 0
      %p56 = por %p54, %p55
      %s58 = sadd.s32 %s57, 1
      %p61 = scmp.eq.s32.totalorder %s11, 2
      %p62 = scmp.ne.s32.totalorder %s57, %s59
      %p63 = scmp.eq.s32.totalorder %s11, 0
      %p64 = por %p62, %p63
      %p65 = scmp.ne.s32.totalorder %s57, %s59
      %p66 = scmp.eq.s32.totalorder %s16, 2
      %p67 = por %p65, %p66
      %p68 = scmp.ne.s32.totalorder %s59, %s60
      %p69 = scmp.eq.s32.totalorder %s16, 0
      %p70 = por %p68, %p69
      %p71 = scmp.ne.s32.totalorder %s59, %s60
      %p72 = scmp.eq.s32.totalorder %s17, 2
      %p73 = por %p71, %p72
      %p75 = scmp.ne.s32.totalorder %s60, %s74
      %p76 = scmp.eq.s32.totalorder %s17, 0
      %p77 = por %p75, %p76
      %s78 = ssub.s32 %s19, %s26
      %p79 = scmp.eq.s32.totalorder %s78, 0
      %s81 = sadd.s32 %s80, 1
      %s82 = scalar_select %p79, %s80, %s81
      %p85 = pneg %p79
      %p86 = scmp.eq.s32.totalorder %s11, 2
      %p87 = por %p85, %p86
      %p88 = scmp.ne.s32.totalorder %s80, %s83
      %p89 = scmp.eq.s32.totalorder %s11, 0
      %p90 = por %p88, %p89
      %p91 = scmp.ne.s32.totalorder %s80, %s83
      %p92 = scmp.eq.s32.totalorder %s16, 2
      %p93 = por %p91, %p92
      %p94 = scmp.ne.s32.totalorder %s83, %s84
      %p95 = scmp.eq.s32.totalorder %s16, 0
      %p96 = por %p94, %p95
      %p97 = scmp.ne.s32.totalorder %s83, %s84
      %p98 = scmp.eq.s32.totalorder %s17, 2
      %p99 = por %p97, %p98
      %p101 = scmp.ne.s32.totalorder %s84, %s100
      %p102 = scmp.eq.s32.totalorder %s17, 0
      %p103 = por %p101, %p102
      %s104 = ssub.s32 %s18, %s30
      %s105 = ssub.s32 %s19, %s26
      %s106 = sor.u32 %s104, %s105
      %p107 = scmp.eq.s32.totalorder %s106, 0
      %s109 = sadd.s32 %s108, 1
      %s110 = scalar_select %p107, %s108, %s109
      %p113 = pneg %p107
      %p114 = scmp.eq.s32.totalorder %s11, 2
      %p115 = por %p113, %p114
      %p116 = scmp.ne.s32.totalorder %s108, %s111
      %p117 = scmp.eq.s32.totalorder %s11, 0
      %p118 = por %p116, %p117
      %p119 = scmp.ne.s32.totalorder %s108, %s111
      %p120 = scmp.eq.s32.totalorder %s16, 2
      %p121 = por %p119, %p120
      %p122 = scmp.ne.s32.totalorder %s111, %s112
      %p123 = scmp.eq.s32.totalorder %s16, 0
      %p124 = por %p122, %p123
      %p125 = scmp.ne.s32.totalorder %s111, %s112
      %p126 = scmp.eq.s32.totalorder %s17, 2
      %p127 = por %p125, %p126
      %p129 = scmp.ne.s32.totalorder %s112, %s128
      %p130 = scmp.eq.s32.totalorder %s17, 0
      %p131 = por %p129, %p130
      %p132 = scmp.le.s32.totalorder 1, %s11
      %p133 = scmp.lt.s32.totalorder %s11, 4
      %p134 = pnand %p132, %p133
      %p135 = pneg %p134
      // Predicated region
      $region9: #{block_forward.5} parent=5 // pred_check
        _
      $region10: #{block_forward.5} parent=5 // pred_check_branch
        %137 = sbr.rel (%p134) target = $region12
      $region11: #{block_forward.5} parent=5 // pred_region
        %s138 = ssub.s32 %s11, 1
        // Predicated region
        $region13: #{block_forward.5} parent=11 // pred_check
          %p139 = pneg %p49
        $region14: #{block_forward.5} parent=11 // pred_check_branch
          %141 = sbr.rel (%p139) target = $region16
        $region15: #{block_forward.5} parent=11 // pred_region
          %s142 = smul.u32 8, %s20
          %s144 = ssub.s32 2048, 2048
          %145 = vsyncadd [#allocation3], %s144
          %s146 = smul.addr %s142, 2
          %s147 = smul.addr %s146, 128
          %s148 = scalar_lea.hbm %s0, %s147
          %s149 = sshll.u32 [#allocation2], 4
          %s150 = int_to_ptr.vmem [resolvable:$true] %s149
          %155 = dma.hbm_to_vmem [thread:$0]  %s148, 2048, %s150, [#allocation3], 256, 256, 16
        $region16: #{block_forward.5} parent=11 // pred_fallthru
          _
        // Predicated region
        $region17: #{block_forward.5} parent=11 // pred_check
          %p156 = pneg %p70
        $region18: #{block_forward.5} parent=11 // pred_check_branch
          %158 = sbr.rel (%p156) target = $region20
        $region19: #{block_forward.5} parent=11 // pred_region
          %s160 = ssub.s32 32, 32
          %161 = vsyncadd [#allocation5], %s160
          %s163 = sshll.u32 [#allocation4], 4
          %s164 = int_to_ptr.vmem [resolvable:$true] %s163
          %166 = dma.hbm_to_vmem [thread:$0]  %s1, 32, %s164, [#allocation5]
        $region20: #{block_forward.5} parent=11 // pred_fallthru
          _
      $region12: #{block_forward.5} parent=5 // pred_fallthru
        _
      %p167 = scmp.lt.s32.totalorder %s11, 3
      // Predicated region
      $region21: #{block_forward.5} parent=5 // pred_check
        %p168 = pneg %p167
      $region22: #{block_forward.5} parent=5 // pred_check_branch
        %170 = sbr.rel (%p168) target = $region24
      $region23: #{block_forward.5} parent=5 // pred_region
        // Predicated region
        $region25: #{block_forward.5} parent=23 // pred_check
          %p171 = pneg %p90
        $region26: #{block_forward.5} parent=23 // pred_check_branch
          %173 = sbr.rel (%p171) target = $region28
        $region27: #{block_forward.5} parent=23 // pred_region
          %s174 = sand.u32 %s11, 1
          %s175 = scalar_lea.sflag [#allocation3], %s174
          %s176 = sand.u32 %s80, 1
          %s177 = smul.addr %s176, 512
          %s178 = scalar_lea.vmem [#allocation6], %s177
          %s179 = smul.u32 2, %s19
          %s181 = ssub.s32 8192, 8192
          %182 = vsyncadd %s175, %s181
          %s183 = smul.addr %s179, 128
          %s184 = scalar_lea.hbm %s2, %s183
          %s185 = sshll.u32 %s178, 4
          %s186 = int_to_ptr.vmem [resolvable:$true] %s185
          %191 = dma.hbm_to_vmem [thread:$0]  %s184, 8192, %s186, %s175, 768, 256, 16
        $region28: #{block_forward.5} parent=23 // pred_fallthru
          _
      $region24: #{block_forward.5} parent=5 // pred_fallthru
        _
      %p192 = scmp.le.s32.totalorder 1, %s11
      %p193 = scmp.lt.s32.totalorder %s11, 4
      %p194 = pnand %p192, %p193
      %p195 = pneg %p194
      // Predicated region
      $region29: #{block_forward.5} parent=5 // pred_check
        _
      $region30: #{block_forward.5} parent=5 // pred_check_branch
        %197 = sbr.rel (%p194) target = $region32
      $region31: #{block_forward.5} parent=5 // pred_region
        %s198 = ssub.s32 %s11, 1
        // Predicated region
        $region33: #{block_forward.5} parent=31 // pred_check
          %p199 = pneg %p49
        $region34: #{block_forward.5} parent=31 // pred_check_branch
          %201 = sbr.rel (%p199) target = $region36
        $region35: #{block_forward.5} parent=31 // pred_region
          %202 = dma.done [#allocation3], 2048
        $region36: #{block_forward.5} parent=31 // pred_fallthru
          _
        // Predicated region
        $region37: #{block_forward.5} parent=31 // pred_check
          %p203 = pneg %p70
        $region38: #{block_forward.5} parent=31 // pred_check_branch
          %205 = sbr.rel (%p203) target = $region40
        $region39: #{block_forward.5} parent=31 // pred_region
          %206 = dma.done [#allocation5], 32
        $region40: #{block_forward.5} parent=31 // pred_fallthru
          _
        %s207 = sand.u32 %s16, 1
        %s208 = scalar_lea.sflag [#allocation3], %s207
        %s209 = sand.u32 %s83, 1
        %s210 = smul.addr %s209, 512
        %s211 = scalar_lea.vmem [#allocation6], %s210
        // Predicated region
        $region41: #{block_forward.5} parent=31 // pred_check
          %p212 = pneg %p96
        $region42: #{block_forward.5} parent=31 // pred_check_branch
          %214 = sbr.rel (%p212) target = $region44
        $region43: #{block_forward.5} parent=31 // pred_region
          %215 = dma.done %s208, 8192
        $region44: #{block_forward.5} parent=31 // pred_fallthru
          _
        %p216 = pneg %p49
        %p217 = pneg %p46
        %p218 = pneg %p70
        %p219 = pneg %p67
        %s220 = sand.u32 %s16, 1
        %s221 = scalar_lea.sflag [#allocation3], %s220
        %s222 = sand.u32 %s83, 1
        %s223 = smul.addr %s222, 512
        %s224 = scalar_lea.vmem [#allocation6], %s223
        %p225 = pneg %p96
        %p226 = pneg %p93
        %p227 = pneg %p124
        %p228 = pneg %p121
        %s229 = sand.u32 %s111, 1
        %s230 = sand.u32 %s111, 1
        %s231 = smul.addr %s230, 128
        %s232 = scalar_lea.vmem [#allocation7], %s231
        %s233 = smul.u32 8, %s20
        %s234 = smul.u32 2, %s21
        %s235 = smul.u32 8, %s20
        %s236 = smul.u32 2, %s21
        %v237 = vld [vmem:[#allocation2] sm:$0xff]
        %v238 = vld [vmem:[#allocation2 + $0x8] sm:$0xff]
        %v239 = vld [vmem:[#allocation2 + $0x10] sm:$0xff]
        %v240 = vld [vmem:[#allocation2 + $0x18] sm:$0xff]
        %v241 = vld [vmem:[#allocation2 + $0x20] sm:$0xff]
        %v242 = vld [vmem:[#allocation2 + $0x28] sm:$0xff]
        %v243 = vld [vmem:[#allocation2 + $0x30] sm:$0xff]
        %v244 = vld [vmem:[#allocation2 + $0x38] sm:$0xff]
        %v245 = vld [vmem:[#allocation2 + $0x40] sm:$0xff]
        %v246 = vld [vmem:[#allocation2 + $0x48] sm:$0xff]
        %v247 = vld [vmem:[#allocation2 + $0x50] sm:$0xff]
        %v248 = vld [vmem:[#allocation2 + $0x58] sm:$0xff]
        %v249 = vld [vmem:[#allocation2 + $0x60] sm:$0xff]
        %v250 = vld [vmem:[#allocation2 + $0x68] sm:$0xff]
        %v251 = vld [vmem:[#allocation2 + $0x70] sm:$0xff]
        %v252 = vld [vmem:[#allocation2 + $0x78] sm:$0xff]
        %v253 = vmul.f32 %v237, %v237
        %v254 = vmul.f32 %v238, %v238
        %v255 = vmul.f32 %v239, %v239
        %v256 = vmul.f32 %v240, %v240
        %v257 = vmul.f32 %v241, %v241
        %v258 = vmul.f32 %v242, %v242
        %v259 = vmul.f32 %v243, %v243
        %v260 = vmul.f32 %v244, %v244
        %v261 = vmul.f32 %v245, %v245
        %v262 = vmul.f32 %v246, %v246
        %v263 = vmul.f32 %v247, %v247
        %v264 = vmul.f32 %v248, %v248
        %v265 = vmul.f32 %v249, %v249
        %v266 = vmul.f32 %v250, %v250
        %v267 = vmul.f32 %v251, %v251
        %v268 = vmul.f32 %v252, %v252
        %v269 = vadd.f32 %v253, %v254
        %270 = vadd.xlane.f32.xlu0 %v269
        %v271 = vpop.xlane.xlu0 %270
        %v272 = vadd.f32 %v255, %v256
        %273 = vadd.xlane.f32.xlu0 %v272
        %v274 = vpop.xlane.xlu0 %273
        %v275 = vadd.f32 %v257, %v258
        %276 = vadd.xlane.f32.xlu0 %v275
        %v277 = vpop.xlane.xlu0 %276
        %v278 = vadd.f32 %v259, %v260
        %279 = vadd.xlane.f32.xlu0 %v278
        %v280 = vpop.xlane.xlu0 %279
        %v281 = vadd.f32 %v261, %v262
        %282 = vadd.xlane.f32.xlu0 %v281
        %v283 = vpop.xlane.xlu0 %282
        %v284 = vadd.f32 %v263, %v264
        %285 = vadd.xlane.f32.xlu0 %v284
        %v286 = vpop.xlane.xlu0 %285
        %v287 = vadd.f32 %v265, %v266
        %288 = vadd.xlane.f32.xlu0 %v287
        %v289 = vpop.xlane.xlu0 %288
        %v290 = vadd.f32 %v267, %v268
        %291 = vadd.xlane.f32.xlu0 %v290
        %v292 = vpop.xlane.xlu0 %291
        %v293 = vrcp.pop 256.0
        %v294 = vmul.f32 %v271, %v293
        %v295 = vmul.f32 %v274, %v293
        %v296 = vmul.f32 %v277, %v293
        %v297 = vmul.f32 %v280, %v293
        %v298 = vmul.f32 %v283, %v293
        %v299 = vmul.f32 %v286, %v293
        %v300 = vmul.f32 %v289, %v293
        %v301 = vmul.f32 %v292, %v293
        %v302 = vadd.f32 %v294, 1e-06
        %v303 = vadd.f32 %v295, 1e-06
        %v304 = vadd.f32 %v296, 1e-06
        %v305 = vadd.f32 %v297, 1e-06
        %v306 = vadd.f32 %v298, 1e-06
        %v307 = vadd.f32 %v299, 1e-06
        %v308 = vadd.f32 %v300, 1e-06
        %v309 = vadd.f32 %v301, 1e-06
        %v310 = vrsqrt.pop %v302
        %v311 = vrsqrt.pop %v303
        %v312 = vrsqrt.pop %v304
        %v313 = vrsqrt.pop %v305
        %v314 = vrsqrt.pop %v306
        %v315 = vrsqrt.pop %v307
        %v316 = vrsqrt.pop %v308
        %v317 = vrsqrt.pop %v309
        %v318 = vmul.f32 %v237, %v310
        %v319 = vmul.f32 %v238, %v310
        %v320 = vmul.f32 %v239, %v311
        %v321 = vmul.f32 %v240, %v311
        %v322 = vmul.f32 %v241, %v312
        %v323 = vmul.f32 %v242, %v312
        %v324 = vmul.f32 %v243, %v313
        %v325 = vmul.f32 %v244, %v313
        %v326 = vmul.f32 %v245, %v314
        %v327 = vmul.f32 %v246, %v314
        %v328 = vmul.f32 %v247, %v315
        %v329 = vmul.f32 %v248, %v315
        %v330 = vmul.f32 %v249, %v316
        %v331 = vmul.f32 %v250, %v316
        %v332 = vmul.f32 %v251, %v317
        %v333 = vmul.f32 %v252, %v317
        %v334 = vld [vmem:[#allocation4] sm:$0x3]
        %v336 = vlaneseq
        %v337 = vshrl.u32 %v336, 7
        %v338 = vsub.s32 0, %v337
        %v339 = vrot.slane %v334, %v338
        %v340 = vlaneseq
        %v341 = vshrl.u32 %v340, 7
        %v342 = vsub.s32 1, %v341
        %v343 = vrot.slane %v334, %v342
        %v346 = vmul.f32 %v318, %v339
        %v347 = vmul.f32 %v319, %v343
        %v348 = vmul.f32 %v320, %v339
        %v349 = vmul.f32 %v321, %v343
        %v350 = vmul.f32 %v322, %v339
        %v351 = vmul.f32 %v323, %v343
        %v352 = vmul.f32 %v324, %v339
        %v353 = vmul.f32 %v325, %v343
        %v354 = vmul.f32 %v326, %v339
        %v355 = vmul.f32 %v327, %v343
        %v356 = vmul.f32 %v328, %v339
        %v357 = vmul.f32 %v329, %v343
        %v358 = vmul.f32 %v330, %v339
        %v359 = vmul.f32 %v331, %v343
        %v360 = vmul.f32 %v332, %v339
        %v361 = vmul.f32 %v333, %v343
        %v362 = vld [vmem:[%s211] sm:$0xff]
        %v363 = vld [vmem:[%s211 + $0x8] sm:$0xff]
        %v364 = vld [vmem:[%s211 + $0x10] sm:$0xff]
        %v365 = vld [vmem:[%s211 + $0x18] sm:$0xff]
        %v366 = vld [vmem:[%s211 + $0x20] sm:$0xff]
        %v367 = vld [vmem:[%s211 + $0x28] sm:$0xff]
        %v368 = vld [vmem:[%s211 + $0x30] sm:$0xff]
        %v369 = vld [vmem:[%s211 + $0x38] sm:$0xff]
        %v370 = vld [vmem:[%s211 + $0x40] sm:$0xff]
        %v371 = vld [vmem:[%s211 + $0x48] sm:$0xff]
        %v372 = vld [vmem:[%s211 + $0x50] sm:$0xff]
        %v373 = vld [vmem:[%s211 + $0x58] sm:$0xff]
        %v374 = vld [vmem:[%s211 + $0x60] sm:$0xff]
        %v375 = vld [vmem:[%s211 + $0x68] sm:$0xff]
        %v376 = vld [vmem:[%s211 + $0x70] sm:$0xff]
        %v377 = vld [vmem:[%s211 + $0x78] sm:$0xff]
        %v378 = vld [vmem:[%s211 + $0x80] sm:$0xff]
        %v379 = vld [vmem:[%s211 + $0x88] sm:$0xff]
        %v380 = vld [vmem:[%s211 + $0x90] sm:$0xff]
        %v381 = vld [vmem:[%s211 + $0x98] sm:$0xff]
        %v382 = vld [vmem:[%s211 + $0xa0] sm:$0xff]
        %v383 = vld [vmem:[%s211 + $0xa8] sm:$0xff]
        %v384 = vld [vmem:[%s211 + $0xb0] sm:$0xff]
        %v385 = vld [vmem:[%s211 + $0xb8] sm:$0xff]
        %v386 = vld [vmem:[%s211 + $0xc0] sm:$0xff]
        %v387 = vld [vmem:[%s211 + $0xc8] sm:$0xff]
        %v388 = vld [vmem:[%s211 + $0xd0] sm:$0xff]
        %v389 = vld [vmem:[%s211 + $0xd8] sm:$0xff]
        %v390 = vld [vmem:[%s211 + $0xe0] sm:$0xff]
        %v391 = vld [vmem:[%s211 + $0xe8] sm:$0xff]
        %v392 = vld [vmem:[%s211 + $0xf0] sm:$0xff]
        %v393 = vld [vmem:[%s211 + $0xf8] sm:$0xff]
        %v394 = vld [vmem:[%s211 + $0x100] sm:$0xff]
        %v395 = vld [vmem:[%s211 + $0x108] sm:$0xff]
        %v396 = vld [vmem:[%s211 + $0x110] sm:$0xff]
        %v397 = vld [vmem:[%s211 + $0x118] sm:$0xff]
        %v398 = vld [vmem:[%s211 + $0x120] sm:$0xff]
        %v399 = vld [vmem:[%s211 + $0x128] sm:$0xff]
        %v400 = vld [vmem:[%s211 + $0x130] sm:$0xff]
        %v401 = vld [vmem:[%s211 + $0x138] sm:$0xff]
        %v402 = vld [vmem:[%s211 + $0x140] sm:$0xff]
        %v403 = vld [vmem:[%s211 + $0x148] sm:$0xff]
        %v404 = vld [vmem:[%s211 + $0x150] sm:$0xff]
        %v405 = vld [vmem:[%s211 + $0x158] sm:$0xff]
        %v406 = vld [vmem:[%s211 + $0x160] sm:$0xff]
        %v407 = vld [vmem:[%s211 + $0x168] sm:$0xff]
        %v408 = vld [vmem:[%s211 + $0x170] sm:$0xff]
        %v409 = vld [vmem:[%s211 + $0x178] sm:$0xff]
        %v410 = vld [vmem:[%s211 + $0x180] sm:$0xff]
        %v411 = vld [vmem:[%s211 + $0x188] sm:$0xff]
        %v412 = vld [vmem:[%s211 + $0x190] sm:$0xff]
        %v413 = vld [vmem:[%s211 + $0x198] sm:$0xff]
        %v414 = vld [vmem:[%s211 + $0x1a0] sm:$0xff]
        %v415 = vld [vmem:[%s211 + $0x1a8] sm:$0xff]
        %v416 = vld [vmem:[%s211 + $0x1b0] sm:$0xff]
        %v417 = vld [vmem:[%s211 + $0x1b8] sm:$0xff]
        %v418 = vld [vmem:[%s211 + $0x1c0] sm:$0xff]
        %v419 = vld [vmem:[%s211 + $0x1c8] sm:$0xff]
        %v420 = vld [vmem:[%s211 + $0x1d0] sm:$0xff]
        %v421 = vld [vmem:[%s211 + $0x1d8] sm:$0xff]
        %v422 = vld [vmem:[%s211 + $0x1e0] sm:$0xff]
        %v423 = vld [vmem:[%s211 + $0x1e8] sm:$0xff]
        %v424 = vld [vmem:[%s211 + $0x1f0] sm:$0xff]
        %v425 = vld [vmem:[%s211 + $0x1f8] sm:$0xff]
        %426 = vmatprep.subr.mxu0 %v363
        %427 = vmatpush1.msra.mxu0 %v362
        %428 = vmatprep.subr.mxu0 %v365
        %429 = vmatpush1.msra.mxu0 %v364
        %430 = vmatprep.subr.mxu0 %v367
        %431 = vmatpush1.msra.mxu0 %v366
        %432 = vmatprep.subr.mxu0 %v369
        %433 = vmatpush1.msra.mxu0 %v368
        %434 = vmatprep.subr.mxu0 %v371
        %435 = vmatpush1.msra.mxu0 %v370
        %436 = vmatprep.subr.mxu0 %v373
        %437 = vmatpush1.msra.mxu0 %v372
        %438 = vmatprep.subr.mxu0 %v375
        %439 = vmatpush1.msra.mxu0 %v374
        %440 = vmatprep.subr.mxu0 %v377
        %441 = vmatpush1.msra.mxu0 %v376
        %442 = vmatprep.subr.mxu0 %v379
        %443 = vmatpush1.msra.mxu0 %v378
        %444 = vmatprep.subr.mxu0 %v381
        %445 = vmatpush1.msra.mxu0 %v380
        %446 = vmatprep.subr.mxu0 %v383
        %447 = vmatpush1.msra.mxu0 %v382
        %448 = vmatprep.subr.mxu0 %v385
        %449 = vmatpush1.msra.mxu0 %v384
        %450 = vmatprep.subr.mxu0 %v387
        %451 = vmatpush1.msra.mxu0 %v386
        %452 = vmatprep.subr.mxu0 %v389
        %453 = vmatpush1.msra.mxu0 %v388
        %454 = vmatprep.subr.mxu0 %v391
        %455 = vmatpush1.msra.mxu0 %v390
        %456 = vmatprep.subr.mxu0 %v393
        %457 = vmatpush1.msra.mxu0 %v392
        %458 = vmatprep.subr.mxu0 %v395
        %459 = vmatpush1.msra.mxu0 %v394
        %460 = vmatprep.subr.mxu0 %v397
        %461 = vmatpush1.msra.mxu0 %v396
        %462 = vmatprep.subr.mxu0 %v399
        %463 = vmatpush1.msra.mxu0 %v398
        %464 = vmatprep.subr.mxu0 %v401
        %465 = vmatpush1.msra.mxu0 %v400
        %466 = vmatprep.subr.mxu0 %v403
        %467 = vmatpush1.msra.mxu0 %v402
        %468 = vmatprep.subr.mxu0 %v405
        %469 = vmatpush1.msra.mxu0 %v404
        %470 = vmatprep.subr.mxu0 %v407
        %471 = vmatpush1.msra.mxu0 %v406
        %472 = vmatprep.subr.mxu0 %v409
        %473 = vmatpush1.msra.mxu0 %v408
        %474 = vmatprep.subr.mxu0 %v411
        %475 = vmatpush1.msra.mxu0 %v410
        %476 = vmatprep.subr.mxu0 %v413
        %477 = vmatpush1.msra.mxu0 %v412
        %478 = vmatprep.subr.mxu0 %v415
        %479 = vmatpush1.msra.mxu0 %v414
        %480 = vmatprep.subr.mxu0 %v417
        %481 = vmatpush1.msra.mxu0 %v416
        %482 = vmatprep.subr.mxu0 %v419
        %483 = vmatpush1.msra.mxu0 %v418
        %484 = vmatprep.subr.mxu0 %v421
        %485 = vmatpush1.msra.mxu0 %v420
        %486 = vmatprep.subr.mxu0 %v423
        %487 = vmatpush1.msra.mxu0 %v422
        %488 = vmatprep.subr.mxu0 %v425
        %489 = vmatpush1.msra.mxu0 %v424
        %490 = vmatprep.mubr.f32.mxu0 %v347
        %491 = vmatmul.mubr.f32.gmra.mrb[0].mxu0 %v346
        %v492 = vpop.f32.mrb[0].mxu0
        %v493 = vadd.f32 0.0, %v492
        %v494 = vpop.f32.mrb[0].mxu0
        %v495 = vadd.f32 0.0, %v494
        %496 = vmatprep.mubr.f32.mxu0 %v349
        %497 = vmatmul.mubr.f32.gmra.mrb[0].mxu0 %v348
        %v498 = vpop.f32.mrb[0].mxu0
        %v499 = vadd.f32 0.0, %v498
        %v500 = vpop.f32.mrb[0].mxu0
        %v501 = vadd.f32 0.0, %v500
        %502 = vmatprep.mubr.f32.mxu0 %v351
        %503 = vmatmul.mubr.f32.gmra.mrb[0].mxu0 %v350
        %v504 = vpop.f32.mrb[0].mxu0
        %v505 = vadd.f32 0.0, %v504
        %v506 = vpop.f32.mrb[0].mxu0
        %v507 = vadd.f32 0.0, %v506
        %508 = vmatprep.mubr.f32.mxu0 %v353
        %509 = vmatmul.mubr.f32.gmra.mrb[0].mxu0 %v352
        %v510 = vpop.f32.mrb[0].mxu0
        %v511 = vadd.f32 0.0, %v510
        %v512 = vpop.f32.mrb[0].mxu0
        %v513 = vadd.f32 0.0, %v512
        %514 = vmatprep.mubr.f32.mxu0 %v355
        %515 = vmatmul.mubr.f32.gmra.mrb[0].mxu0 %v354
        %v516 = vpop.f32.mrb[0].mxu0
        %v517 = vadd.f32 0.0, %v516
        %v518 = vpop.f32.mrb[0].mxu0
        %v519 = vadd.f32 0.0, %v518
        %520 = vmatprep.mubr.f32.mxu0 %v357
        %521 = vmatmul.mubr.f32.gmra.mrb[0].mxu0 %v356
        %v522 = vpop.f32.mrb[0].mxu0
        %v523 = vadd.f32 0.0, %v522
        %v524 = vpop.f32.mrb[0].mxu0
        %v525 = vadd.f32 0.0, %v524
        %526 = vmatprep.mubr.f32.mxu0 %v359
        %527 = vmatmul.mubr.f32.gmra.mrb[0].mxu0 %v358
        %v528 = vpop.f32.mrb[0].mxu0
        %v529 = vadd.f32 0.0, %v528
        %v530 = vpop.f32.mrb[0].mxu0
        %v531 = vadd.f32 0.0, %v530
        %532 = vmatprep.mubr.f32.mxu0 %v361
        %533 = vmatmul.mubr.f32.gmra.mrb[0].mxu0 %v360
        %v534 = vpop.f32.mrb[0].mxu0
        %v535 = vadd.f32 0.0, %v534
        %v536 = vpop.f32.mrb[0].mxu0
        %v537 = vadd.f32 0.0, %v536
        %538 = vdwg.mxu0
        %539 = vst [vmem:[%s232] sm:$0xff] %v493
        %540 = vst [vmem:[%s232 + $0x8] sm:$0xff] %v495
        %541 = vst [vmem:[%s232 + $0x10] sm:$0xff] %v499
        %542 = vst [vmem:[%s232 + $0x18] sm:$0xff] %v501
        %543 = vst [vmem:[%s232 + $0x20] sm:$0xff] %v505
        %544 = vst [vmem:[%s232 + $0x28] sm:$0xff] %v507
        %545 = vst [vmem:[%s232 + $0x30] sm:$0xff] %v511
        %546 = vst [vmem:[%s232 + $0x38] sm:$0xff] %v513
        %547 = vst [vmem:[%s232 + $0x40] sm:$0xff] %v517
        %548 = vst [vmem:[%s232 + $0x48] sm:$0xff] %v519
        %549 = vst [vmem:[%s232 + $0x50] sm:$0xff] %v523
        %550 = vst [vmem:[%s232 + $0x58] sm:$0xff] %v525
        %551 = vst [vmem:[%s232 + $0x60] sm:$0xff] %v529
        %552 = vst [vmem:[%s232 + $0x68] sm:$0xff] %v531
        %553 = vst [vmem:[%s232 + $0x70] sm:$0xff] %v535
        %554 = vst [vmem:[%s232 + $0x78] sm:$0xff] %v537
        %s555 = sand.u32 %s111, 1
        %s556 = sand.u32 %s111, 1
        %s557 = smul.addr %s556, 128
        %s558 = scalar_lea.vmem [#allocation7], %s557
        // Predicated region
        $region45: #{block_forward.5} parent=31 // pred_check
          %p559 = pneg %p121
        $region46: #{block_forward.5} parent=31 // pred_check_branch
          %561 = sbr.rel (%p559) target = $region48
        $region47: #{block_forward.5} parent=31 // pred_region
          %s562 = smul.u32 8, %s20
          %s563 = smul.u32 2, %s21
          %s564 = smul.addr %s562, 6
          %s565 = sadd.s32 %s563, %s564
          %s566 = smul.addr %s565, 8
          %s567 = scalar_lea.vmem %s3, %s566
          // Predicated region
          $region49: #{block_forward.5} parent=47 // pred_check
            _
          $region50: #{block_forward.5} parent=47 // pred_check_branch
            %569 = sbr.rel (0) target = $region52
          $region51: #{block_forward.5} parent=47 // pred_region
            // Predicated region
            $region53: #{block_forward.5} parent=51 // pred_check
              _
            $region54: #{block_forward.5} parent=51 // pred_check_branch
              %571 = sbr.rel (0) target = $region56
            $region55: #{block_forward.5} parent=51 // pred_region
              loop: start=0, step=1, limit=1
              $region57: #{block_forward.5} parent=55 // loop_pre_header
                _
              $region58: #{block_forward.5} parent=55 // loop_header
                %s573 = sphi 0, %s577
                %p574 = scmp.ge.s32.totalorder %s573, 1
                %s578 = sphi %s558, %s558
                %s579 = sphi %s567, %s567
              $region59: #{block_forward.5} parent=55 // loop_header_branch
                %576 = sbr.rel (%p574) target = $region63
              $region60: #{block_forward.5} parent=55 // loop_body
                %v580 = vld [vmem:[%s578] sm:$0xff]
                %581 = vst [vmem:[%s579] sm:$0xff] %v580
                %v582 = vld [vmem:[%s578 + $0x8] sm:$0xff]
                %583 = vst [vmem:[%s579 + $0x8] sm:$0xff] %v582
                %v584 = vld [vmem:[%s578 + $0x10] sm:$0xff]
                %585 = vst [vmem:[%s579 + $0x30] sm:$0xff] %v584
                %v586 = vld [vmem:[%s578 + $0x18] sm:$0xff]
                %587 = vst [vmem:[%s579 + $0x38] sm:$0xff] %v586
                %v588 = vld [vmem:[%s578 + $0x20] sm:$0xff]
                %589 = vst [vmem:[%s579 + $0x60] sm:$0xff] %v588
                %v590 = vld [vmem:[%s578 + $0x28] sm:$0xff]
                %591 = vst [vmem:[%s579 + $0x68] sm:$0xff] %v590
                %v592 = vld [vmem:[%s578 + $0x30] sm:$0xff]
                %593 = vst [vmem:[%s579 + $0x90] sm:$0xff] %v592
                %v594 = vld [vmem:[%s578 + $0x38] sm:$0xff]
                %595 = vst [vmem:[%s579 + $0x98] sm:$0xff] %v594
                %v596 = vld [vmem:[%s578 + $0x40] sm:$0xff]
                %597 = vst [vmem:[%s579 + $0xc0] sm:$0xff] %v596
                %v598 = vld [vmem:[%s578 + $0x48] sm:$0xff]
                %599 = vst [vmem:[%s579 + $0xc8] sm:$0xff] %v598
                %v600 = vld [vmem:[%s578 + $0x50] sm:$0xff]
                %601 = vst [vmem:[%s579 + $0xf0] sm:$0xff] %v600
                %v602 = vld [vmem:[%s578 + $0x58] sm:$0xff]
                %603 = vst [vmem:[%s579 + $0xf8] sm:$0xff] %v602
                %v604 = vld [vmem:[%s578 + $0x60] sm:$0xff]
                %605 = vst [vmem:[%s579 + $0x120] sm:$0xff] %v604
                %v606 = vld [vmem:[%s578 + $0x68] sm:$0xff]
                %607 = vst [vmem:[%s579 + $0x128] sm:$0xff] %v606
                %v608 = vld [vmem:[%s578 + $0x70] sm:$0xff]
                %609 = vst [vmem:[%s579 + $0x150] sm:$0xff] %v608
                %v610 = vld [vmem:[%s578 + $0x78] sm:$0xff]
                %611 = vst [vmem:[%s579 + $0x158] sm:$0xff] %v610
              $region61: #{block_forward.5} parent=55 // loop_footer
                %s577 = sadd.s32 1, %s573
              $region62: #{block_forward.5} parent=55 // loop_footer_branch
                %572 = sbr.rel target = $region58
              $region63: #{block_forward.5} parent=55 // loop_exit
                _
            $region56: #{block_forward.5} parent=51 // pred_fallthru
              _
            // Predicated region
            $region64: #{block_forward.5} parent=51 // pred_check
              _
            $region65: #{block_forward.5} parent=51 // pred_check_branch
              %613 = sbr.rel target = $region67
            $region66: #{block_forward.5} parent=51 // pred_region
              _
            $region67: #{block_forward.5} parent=51 // pred_fallthru
              _
          $region52: #{block_forward.5} parent=47 // pred_fallthru
            _
          %614 = vnop
        $region48: #{block_forward.5} parent=31 // pred_fallthru
          _
      $region32: #{block_forward.5} parent=5 // pred_fallthru
        _
      %p615 = scmp.le.s32.totalorder 2, %s11
      // Predicated region
      $region68: #{block_forward.5} parent=5 // pred_check
        %p616 = pneg %p615
      $region69: #{block_forward.5} parent=5 // pred_check_branch
        %618 = sbr.rel (%p616) target = $region71
      $region70: #{block_forward.5} parent=5 // pred_region
        %s619 = ssub.s32 %s11, 2
        // Predicated region
        $region72: #{block_forward.5} parent=70 // pred_check
          %p620 = pneg %p127
        $region73: #{block_forward.5} parent=70 // pred_check_branch
          %622 = sbr.rel (%p620) target = $region75
        $region74: #{block_forward.5} parent=70 // pred_region
          %s623 = sand.u32 %s112, 1
          %s624 = sand.u32 %s112, 1
          %s625 = smul.addr %s624, 128
          %s626 = scalar_lea.vmem [#allocation7], %s625
        $region75: #{block_forward.5} parent=70 // pred_fallthru
          _
      $region71: #{block_forward.5} parent=5 // pred_fallthru
        _
    $region6: #{block_forward.5} parent=1 // loop_footer
      %s15 = sadd.s32 1, %s11
    $region7: #{block_forward.5} parent=1 // loop_footer_branch
      %10 = sbr.rel target = $region3
    $region8: #{block_forward.5} parent=1 // loop_exit
      _
    %627 = vsyncpa [#allocation3], 1
    %s628 = scalar_lea.sflag [#allocation3], 1
    %629 = vsyncpa %s628, 1
    %630 = vsyncpa [#allocation5], 1

// kernel: block_forward.8
$region0: #{block_forward.8}
  #allocation0 [shape = 'u32[]', space=smem, size = 0x4, offset = 0x4, fixed_abs, tag = 'smem constant byte address 0x4 - core index']
  #allocation1 [shape = 'u32[144,128]{1,0:T(1,128)}', space=vmem, size = 0x12000, scoped, tag = 'internal scratch']
  %s0 = inlined_call_operand.vmem [shape: f32[64,256], index: 0, kind: input, shape index: {}]
  %s1 = inlined_call_operand.vmem [shape: f32[1,256], index: 1, kind: input, shape index: {}]
  %s2 = inlined_call_operand.vmem [shape: f32[256,1024], index: 2, kind: input, shape index: {}]
  %s3 = inlined_call_operand.vmem [shape: f32[64,1024], index: 3, kind: output, shape index: {}]
  %s4 = sld [smem:[#allocation0]]
  $region87: #{block_forward.8} parent=0
    _
  %s6 = ssub.s32 1, %s4
  %s7 = scalar_select 0, %s6, %s4
  $region1: #{block_forward.8} parent=0
    #allocation2 [shape = 'u8[524288]{0}', space=vmem, size = 0x80000, scoped, tag = 'input window, operand 2']
    #allocation3 [shape = 'u8[131072]{0}', space=vmem, size = 0x20000, scoped, tag = 'output window, operand 0']
    loop: start=0, step=1, limit=6
    $region2: #{block_forward.8} parent=1 // loop_pre_header
      _
    $region3: #{block_forward.8} parent=1 // loop_header
      %s9 = sphi 0, %s13
      %p10 = scmp.ge.s32.totalorder %s9, 6
      %s16 = sphi 0, %s28
      %s17 = sphi 0, %s24
      %s18 = sphi 0, %s16
      %s19 = sphi 0, %s17
      %s20 = sphi 0, %s18
      %s21 = sphi 0, %s19
      %s31 = sphi 0, %s33
      %s34 = sphi 0, %s31
      %s35 = sphi 0, %s34
      %s51 = sphi 0, %s35
      %s55 = sphi 0, %s55
      %s57 = sphi 0, %s55
      %s58 = sphi 0, %s57
      %s72 = sphi 0, %s58
      %s78 = sphi 0, %s80
      %s81 = sphi 0, %s78
      %s82 = sphi 0, %s81
      %s98 = sphi 0, %s82
      %s106 = sphi 0, %s108
      %s109 = sphi 0, %s106
      %s110 = sphi 0, %s109
      %s126 = sphi 0, %s110
    $region4: #{block_forward.8} parent=1 // loop_header_branch
      %12 = sbr.rel (%p10) target = $region8
    $region5: #{block_forward.8} parent=1 // loop_body
      %s14 = ssub.s32 %s9, 1
      %s15 = ssub.s32 %s9, 2
      %s22 = sadd.s32 1, %s17
      %p23 = scmp.ge.s32.totalorder %s22, 4
      %s24 = scalar_select %p23, 0, %s22
      %s25 = sadd.s32 1, %s16
      %s26 = scalar_select %p23, %s25, %s16
      %p27 = scmp.ge.s32.totalorder %s26, 1
      %s28 = scalar_select %p27, 0, %s26
      %s29 = ssub.s32 %s16, %s28
      %p30 = scmp.eq.s32.totalorder %s29, 0
      %s32 = sadd.s32 %s31, 1
      %s33 = scalar_select %p30, %s31, %s32
      %p36 = pneg %p30
      %p37 = scmp.eq.s32.totalorder %s9, 3
      %p38 = por %p36, %p37
      %p39 = scmp.ne.s32.totalorder %s31, %s34
      %p40 = scmp.eq.s32.totalorder %s9, 0
      %p41 = por %p39, %p40
      %p42 = scmp.ne.s32.totalorder %s31, %s34
      %p43 = scmp.eq.s32.totalorder %s14, 3
      %p44 = por %p42, %p43
      %p45 = scmp.ne.s32.totalorder %s34, %s35
      %p46 = scmp.eq.s32.totalorder %s14, 0
      %p47 = por %p45, %p46
      %p48 = scmp.ne.s32.totalorder %s34, %s35
      %p49 = scmp.eq.s32.totalorder %s15, 3
      %p50 = por %p48, %p49
      %p52 = scmp.ne.s32.totalorder %s35, %s51
      %p53 = scmp.eq.s32.totalorder %s15, 0
      %p54 = por %p52, %p53
      %s56 = sadd.s32 %s55, 1
      %p59 = scmp.eq.s32.totalorder %s9, 3
      %p60 = scmp.ne.s32.totalorder %s55, %s57
      %p61 = scmp.eq.s32.totalorder %s9, 0
      %p62 = por %p60, %p61
      %p63 = scmp.ne.s32.totalorder %s55, %s57
      %p64 = scmp.eq.s32.totalorder %s14, 3
      %p65 = por %p63, %p64
      %p66 = scmp.ne.s32.totalorder %s57, %s58
      %p67 = scmp.eq.s32.totalorder %s14, 0
      %p68 = por %p66, %p67
      %p69 = scmp.ne.s32.totalorder %s57, %s58
      %p70 = scmp.eq.s32.totalorder %s15, 3
      %p71 = por %p69, %p70
      %p73 = scmp.ne.s32.totalorder %s58, %s72
      %p74 = scmp.eq.s32.totalorder %s15, 0
      %p75 = por %p73, %p74
      %s76 = ssub.s32 %s17, %s24
      %p77 = scmp.eq.s32.totalorder %s76, 0
      %s79 = sadd.s32 %s78, 1
      %s80 = scalar_select %p77, %s78, %s79
      %p83 = pneg %p77
      %p84 = scmp.eq.s32.totalorder %s9, 3
      %p85 = por %p83, %p84
      %p86 = scmp.ne.s32.totalorder %s78, %s81
      %p87 = scmp.eq.s32.totalorder %s9, 0
      %p88 = por %p86, %p87
      %p89 = scmp.ne.s32.totalorder %s78, %s81
      %p90 = scmp.eq.s32.totalorder %s14, 3
      %p91 = por %p89, %p90
      %p92 = scmp.ne.s32.totalorder %s81, %s82
      %p93 = scmp.eq.s32.totalorder %s14, 0
      %p94 = por %p92, %p93
      %p95 = scmp.ne.s32.totalorder %s81, %s82
      %p96 = scmp.eq.s32.totalorder %s15, 3
      %p97 = por %p95, %p96
      %p99 = scmp.ne.s32.totalorder %s82, %s98
      %p100 = scmp.eq.s32.totalorder %s15, 0
      %p101 = por %p99, %p100
      %s102 = ssub.s32 %s16, %s28
      %s103 = ssub.s32 %s17, %s24
      %s104 = sor.u32 %s102, %s103
      %p105 = scmp.eq.s32.totalorder %s104, 0
      %s107 = sadd.s32 %s106, 1
      %s108 = scalar_select %p105, %s106, %s107
      %p111 = pneg %p105
      %p112 = scmp.eq.s32.totalorder %s9, 3
      %p113 = por %p111, %p112
      %p114 = scmp.ne.s32.totalorder %s106, %s109
      %p115 = scmp.eq.s32.totalorder %s9, 0
      %p116 = por %p114, %p115
      %p117 = scmp.ne.s32.totalorder %s106, %s109
      %p118 = scmp.eq.s32.totalorder %s14, 3
      %p119 = por %p117, %p118
      %p120 = scmp.ne.s32.totalorder %s109, %s110
      %p121 = scmp.eq.s32.totalorder %s14, 0
      %p122 = por %p120, %p121
      %p123 = scmp.ne.s32.totalorder %s109, %s110
      %p124 = scmp.eq.s32.totalorder %s15, 3
      %p125 = por %p123, %p124
      %p127 = scmp.ne.s32.totalorder %s110, %s126
      %p128 = scmp.eq.s32.totalorder %s15, 0
      %p129 = por %p127, %p128
      %p130 = scmp.le.s32.totalorder 1, %s9
      %p131 = scmp.lt.s32.totalorder %s9, 5
      %p132 = pnand %p130, %p131
      %p133 = pneg %p132
      // Predicated region
      $region9: #{block_forward.8} parent=5 // pred_check
        _
      $region10: #{block_forward.8} parent=5 // pred_check_branch
        %135 = sbr.rel (%p132) target = $region12
      $region11: #{block_forward.8} parent=5 // pred_region
        %s136 = ssub.s32 %s9, 1
        // Predicated region
        $region13: #{block_forward.8} parent=11 // pred_check
          %p137 = pneg %p47
        $region14: #{block_forward.8} parent=11 // pred_check_branch
          %139 = sbr.rel (%p137) target = $region16
        $region15: #{block_forward.8} parent=11 // pred_region
          %s140 = smul.u32 8, %s18
          %p141 = scmp.lt.s32.totalorder %s140, 7
          %s142 = scalar_select %p141, %s140, 7
          %s143 = smul.addr %s142, 2
          %s144 = smul.addr %s143, 8
          %s145 = scalar_lea.vmem %s0, %s144
          %s146 = smul.u32 8, %s18
        $region16: #{block_forward.8} parent=11 // pred_fallthru
          _
        // Predicated region
        $region17: #{block_forward.8} parent=11 // pred_check
          %p147 = pneg %p68
        $region18: #{block_forward.8} parent=11 // pred_check_branch
          %149 = sbr.rel (%p147) target = $region20
        $region19: #{block_forward.8} parent=11 // pred_region
          _
        $region20: #{block_forward.8} parent=11 // pred_fallthru
          _
      $region12: #{block_forward.8} parent=5 // pred_fallthru
        _
      %p150 = scmp.lt.s32.totalorder %s9, 4
      // Predicated region
      $region21: #{block_forward.8} parent=5 // pred_check
        %p151 = pneg %p150
      $region22: #{block_forward.8} parent=5 // pred_check_branch
        %153 = sbr.rel (%p151) target = $region24
      $region23: #{block_forward.8} parent=5 // pred_region
        // Predicated region
        $region25: #{block_forward.8} parent=23 // pred_check
          %p154 = pneg %p88
        $region26: #{block_forward.8} parent=23 // pred_check_branch
          %156 = sbr.rel (%p154) target = $region28
        $region27: #{block_forward.8} parent=23 // pred_region
          %s157 = sand.u32 %s78, 1
          %s158 = sand.u32 %s78, 1
          %s159 = smul.addr %s158, 512
          %s160 = scalar_lea.vmem [#allocation2], %s159
          %s161 = smul.u32 2, %s17
          %s162 = smul.addr %s161, 8
          %s163 = scalar_lea.vmem %s2, %s162
          // Predicated region
          $region29: #{block_forward.8} parent=27 // pred_check
            _
          $region30: #{block_forward.8} parent=27 // pred_check_branch
            %165 = sbr.rel (0) target = $region32
          $region31: #{block_forward.8} parent=27 // pred_region
            // Predicated region
            $region33: #{block_forward.8} parent=31 // pred_check
              _
            $region34: #{block_forward.8} parent=31 // pred_check_branch
              %167 = sbr.rel (0) target = $region36
            $region35: #{block_forward.8} parent=31 // pred_region
              loop: start=0, step=1, limit=1
              $region37: #{block_forward.8} parent=35 // loop_pre_header
                _
              $region38: #{block_forward.8} parent=35 // loop_header
                %s169 = sphi 0, %s173
                %p170 = scmp.ge.s32.totalorder %s169, 1
                %s174 = sphi %s163, %s163
                %s175 = sphi %s160, %s160
              $region39: #{block_forward.8} parent=35 // loop_header_branch
                %172 = sbr.rel (%p170) target = $region43
              $region40: #{block_forward.8} parent=35 // loop_body
                %v176 = vld [vmem:[%s174] sm:$0xff]
                %177 = vst [vmem:[%s175] sm:$0xff] %v176
                %v178 = vld [vmem:[%s174 + $0x8] sm:$0xff]
                %179 = vst [vmem:[%s175 + $0x8] sm:$0xff] %v178
                %v180 = vld [vmem:[%s174 + $0x40] sm:$0xff]
                %181 = vst [vmem:[%s175 + $0x10] sm:$0xff] %v180
                %v182 = vld [vmem:[%s174 + $0x48] sm:$0xff]
                %183 = vst [vmem:[%s175 + $0x18] sm:$0xff] %v182
                %v184 = vld [vmem:[%s174 + $0x80] sm:$0xff]
                %185 = vst [vmem:[%s175 + $0x20] sm:$0xff] %v184
                %v186 = vld [vmem:[%s174 + $0x88] sm:$0xff]
                %187 = vst [vmem:[%s175 + $0x28] sm:$0xff] %v186
                %v188 = vld [vmem:[%s174 + $0xc0] sm:$0xff]
                %189 = vst [vmem:[%s175 + $0x30] sm:$0xff] %v188
                %v190 = vld [vmem:[%s174 + $0xc8] sm:$0xff]
                %191 = vst [vmem:[%s175 + $0x38] sm:$0xff] %v190
                %v192 = vld [vmem:[%s174 + $0x100] sm:$0xff]
                %193 = vst [vmem:[%s175 + $0x40] sm:$0xff] %v192
                %v194 = vld [vmem:[%s174 + $0x108] sm:$0xff]
                %195 = vst [vmem:[%s175 + $0x48] sm:$0xff] %v194
                %v196 = vld [vmem:[%s174 + $0x140] sm:$0xff]
                %197 = vst [vmem:[%s175 + $0x50] sm:$0xff] %v196
                %v198 = vld [vmem:[%s174 + $0x148] sm:$0xff]
                %199 = vst [vmem:[%s175 + $0x58] sm:$0xff] %v198
                %v200 = vld [vmem:[%s174 + $0x180] sm:$0xff]
                %201 = vst [vmem:[%s175 + $0x60] sm:$0xff] %v200
                %v202 = vld [vmem:[%s174 + $0x188] sm:$0xff]
                %203 = vst [vmem:[%s175 + $0x68] sm:$0xff] %v202
                %v204 = vld [vmem:[%s174 + $0x1c0] sm:$0xff]
                %205 = vst [vmem:[%s175 + $0x70] sm:$0xff] %v204
                %v206 = vld [vmem:[%s174 + $0x1c8] sm:$0xff]
                %207 = vst [vmem:[%s175 + $0x78] sm:$0xff] %v206
                %v208 = vld [vmem:[%s174 + $0x200] sm:$0xff]
                %209 = vst [vmem:[%s175 + $0x80] sm:$0xff] %v208
                %v210 = vld [vmem:[%s174 + $0x208] sm:$0xff]
                %211 = vst [vmem:[%s175 + $0x88] sm:$0xff] %v210
                %v212 = vld [vmem:[%s174 + $0x240] sm:$0xff]
                %213 = vst [vmem:[%s175 + $0x90] sm:$0xff] %v212
                %v214 = vld [vmem:[%s174 + $0x248] sm:$0xff]
                %215 = vst [vmem:[%s175 + $0x98] sm:$0xff] %v214
                %v216 = vld [vmem:[%s174 + $0x280] sm:$0xff]
                %217 = vst [vmem:[%s175 + $0xa0] sm:$0xff] %v216
                %v218 = vld [vmem:[%s174 + $0x288] sm:$0xff]
                %219 = vst [vmem:[%s175 + $0xa8] sm:$0xff] %v218
                %v220 = vld [vmem:[%s174 + $0x2c0] sm:$0xff]
                %221 = vst [vmem:[%s175 + $0xb0] sm:$0xff] %v220
                %v222 = vld [vmem:[%s174 + $0x2c8] sm:$0xff]
                %223 = vst [vmem:[%s175 + $0xb8] sm:$0xff] %v222
                %v224 = vld [vmem:[%s174 + $0x300] sm:$0xff]
                %225 = vst [vmem:[%s175 + $0xc0] sm:$0xff] %v224
                %v226 = vld [vmem:[%s174 + $0x308] sm:$0xff]
                %227 = vst [vmem:[%s175 + $0xc8] sm:$0xff] %v226
                %v228 = vld [vmem:[%s174 + $0x340] sm:$0xff]
                %229 = vst [vmem:[%s175 + $0xd0] sm:$0xff] %v228
                %v230 = vld [vmem:[%s174 + $0x348] sm:$0xff]
                %231 = vst [vmem:[%s175 + $0xd8] sm:$0xff] %v230
                %v232 = vld [vmem:[%s174 + $0x380] sm:$0xff]
                %233 = vst [vmem:[%s175 + $0xe0] sm:$0xff] %v232
                %v234 = vld [vmem:[%s174 + $0x388] sm:$0xff]
                %235 = vst [vmem:[%s175 + $0xe8] sm:$0xff] %v234
                %v236 = vld [vmem:[%s174 + $0x3c0] sm:$0xff]
                %237 = vst [vmem:[%s175 + $0xf0] sm:$0xff] %v236
                %v238 = vld [vmem:[%s174 + $0x3c8] sm:$0xff]
                %239 = vst [vmem:[%s175 + $0xf8] sm:$0xff] %v238
                %v240 = vld [vmem:[%s174 + $0x400] sm:$0xff]
                %241 = vst [vmem:[%s175 + $0x100] sm:$0xff] %v240
                %v242 = vld [vmem:[%s174 + $0x408] sm:$0xff]
                %243 = vst [vmem:[%s175 + $0x108] sm:$0xff] %v242
                %v244 = vld [vmem:[%s174 + $0x440] sm:$0xff]
                %245 = vst [vmem:[%s175 + $0x110] sm:$0xff] %v244
                %v246 = vld [vmem:[%s174 + $0x448] sm:$0xff]
                %247 = vst [vmem:[%s175 + $0x118] sm:$0xff] %v246
                %v248 = vld [vmem:[%s174 + $0x480] sm:$0xff]
                %249 = vst [vmem:[%s175 + $0x120] sm:$0xff] %v248
                %v250 = vld [vmem:[%s174 + $0x488] sm:$0xff]
                %251 = vst [vmem:[%s175 + $0x128] sm:$0xff] %v250
                %v252 = vld [vmem:[%s174 + $0x4c0] sm:$0xff]
                %253 = vst [vmem:[%s175 + $0x130] sm:$0xff] %v252
                %v254 = vld [vmem:[%s174 + $0x4c8] sm:$0xff]
                %255 = vst [vmem:[%s175 + $0x138] sm:$0xff] %v254
                %v256 = vld [vmem:[%s174 + $0x500] sm:$0xff]
                %257 = vst [vmem:[%s175 + $0x140] sm:$0xff] %v256
                %v258 = vld [vmem:[%s174 + $0x508] sm:$0xff]
                %259 = vst [vmem:[%s175 + $0x148] sm:$0xff] %v258
                %v260 = vld [vmem:[%s174 + $0x540] sm:$0xff]
                %261 = vst [vmem:[%s175 + $0x150] sm:$0xff] %v260
                %v262 = vld [vmem:[%s174 + $0x548] sm:$0xff]
                %263 = vst [vmem:[%s175 + $0x158] sm:$0xff] %v262
                %v264 = vld [vmem:[%s174 + $0x580] sm:$0xff]
                %265 = vst [vmem:[%s175 + $0x160] sm:$0xff] %v264
                %v266 = vld [vmem:[%s174 + $0x588] sm:$0xff]
                %267 = vst [vmem:[%s175 + $0x168] sm:$0xff] %v266
                %v268 = vld [vmem:[%s174 + $0x5c0] sm:$0xff]
                %269 = vst [vmem:[%s175 + $0x170] sm:$0xff] %v268
                %v270 = vld [vmem:[%s174 + $0x5c8] sm:$0xff]
                %271 = vst [vmem:[%s175 + $0x178] sm:$0xff] %v270
                %v272 = vld [vmem:[%s174 + $0x600] sm:$0xff]
                %273 = vst [vmem:[%s175 + $0x180] sm:$0xff] %v272
                %v274 = vld [vmem:[%s174 + $0x608] sm:$0xff]
                %275 = vst [vmem:[%s175 + $0x188] sm:$0xff] %v274
                %v276 = vld [vmem:[%s174 + $0x640] sm:$0xff]
                %277 = vst [vmem:[%s175 + $0x190] sm:$0xff] %v276
                %v278 = vld [vmem:[%s174 + $0x648] sm:$0xff]
                %279 = vst [vmem:[%s175 + $0x198] sm:$0xff] %v278
                %v280 = vld [vmem:[%s174 + $0x680] sm:$0xff]
                %281 = vst [vmem:[%s175 + $0x1a0] sm:$0xff] %v280
                %v282 = vld [vmem:[%s174 + $0x688] sm:$0xff]
                %283 = vst [vmem:[%s175 + $0x1a8] sm:$0xff] %v282
                %v284 = vld [vmem:[%s174 + $0x6c0] sm:$0xff]
                %285 = vst [vmem:[%s175 + $0x1b0] sm:$0xff] %v284
                %v286 = vld [vmem:[%s174 + $0x6c8] sm:$0xff]
                %287 = vst [vmem:[%s175 + $0x1b8] sm:$0xff] %v286
                %v288 = vld [vmem:[%s174 + $0x700] sm:$0xff]
                %289 = vst [vmem:[%s175 + $0x1c0] sm:$0xff] %v288
                %v290 = vld [vmem:[%s174 + $0x708] sm:$0xff]
                %291 = vst [vmem:[%s175 + $0x1c8] sm:$0xff] %v290
                %v292 = vld [vmem:[%s174 + $0x740] sm:$0xff]
                %293 = vst [vmem:[%s175 + $0x1d0] sm:$0xff] %v292
                %v294 = vld [vmem:[%s174 + $0x748] sm:$0xff]
                %295 = vst [vmem:[%s175 + $0x1d8] sm:$0xff] %v294
                %v296 = vld [vmem:[%s174 + $0x780] sm:$0xff]
                %297 = vst [vmem:[%s175 + $0x1e0] sm:$0xff] %v296
                %v298 = vld [vmem:[%s174 + $0x788] sm:$0xff]
                %299 = vst [vmem:[%s175 + $0x1e8] sm:$0xff] %v298
                %v300 = vld [vmem:[%s174 + $0x7c0] sm:$0xff]
                %301 = vst [vmem:[%s175 + $0x1f0] sm:$0xff] %v300
                %v302 = vld [vmem:[%s174 + $0x7c8] sm:$0xff]
                %303 = vst [vmem:[%s175 + $0x1f8] sm:$0xff] %v302
              $region41: #{block_forward.8} parent=35 // loop_footer
                %s173 = sadd.s32 1, %s169
              $region42: #{block_forward.8} parent=35 // loop_footer_branch
                %168 = sbr.rel target = $region38
              $region43: #{block_forward.8} parent=35 // loop_exit
                _
            $region36: #{block_forward.8} parent=31 // pred_fallthru
              _
            // Predicated region
            $region44: #{block_forward.8} parent=31 // pred_check
              _
            $region45: #{block_forward.8} parent=31 // pred_check_branch
              %305 = sbr.rel target = $region47
            $region46: #{block_forward.8} parent=31 // pred_region
              _
            $region47: #{block_forward.8} parent=31 // pred_fallthru
              _
          $region32: #{block_forward.8} parent=27 // pred_fallthru
            _
          %306 = vnop
        $region28: #{block_forward.8} parent=23 // pred_fallthru
          _
      $region24: #{block_forward.8} parent=5 // pred_fallthru
        _
      %p307 = scmp.le.s32.totalorder 1, %s9
      %p308 = scmp.lt.s32.totalorder %s9, 5
      %p309 = pnand %p307, %p308
      %p310 = pneg %p309
      // Predicated region
      $region48: #{block_forward.8} parent=5 // pred_check
        _
      $region49: #{block_forward.8} parent=5 // pred_check_branch
        %312 = sbr.rel (%p309) target = $region51
      $region50: #{block_forward.8} parent=5 // pred_region
        %s313 = ssub.s32 %s9, 1
        %s314 = sand.u32 %s81, 1
        %s315 = sand.u32 %s81, 1
        %s316 = smul.addr %s315, 512
        %s317 = scalar_lea.vmem [#allocation2], %s316
        // Predicated region
        $region52: #{block_forward.8} parent=50 // pred_check
          %p318 = pneg %p94
        $region53: #{block_forward.8} parent=50 // pred_check_branch
          %320 = sbr.rel (%p318) target = $region55
        $region54: #{block_forward.8} parent=50 // pred_region
          _
        $region55: #{block_forward.8} parent=50 // pred_fallthru
          _
        %s321 = smul.u32 8, %s18
        %p322 = scmp.lt.s32.totalorder %s321, 7
        %s323 = scalar_select %p322, %s321, 7
        %s324 = smul.addr %s323, 2
        %s325 = smul.addr %s324, 8
        %s326 = scalar_lea.vmem %s0, %s325
        %p327 = pneg %p47
        %p328 = pneg %p44
        %p329 = pneg %p68
        %p330 = pneg %p65
        %s331 = sand.u32 %s81, 1
        %s332 = sand.u32 %s81, 1
        %s333 = smul.addr %s332, 512
        %s334 = scalar_lea.vmem [#allocation2], %s333
        %p335 = pneg %p94
        %p336 = pneg %p91
        %p337 = pneg %p122
        %p338 = pneg %p119
        %s339 = sand.u32 %s109, 1
        %s340 = sand.u32 %s109, 1
        %s341 = smul.addr %s340, 128
        %s342 = scalar_lea.vmem [#allocation3], %s341
        %s343 = smul.u32 8, %s18
        %p344 = scmp.lt.s32.totalorder %s343, 7
        %s345 = scalar_select %p344, %s343, 7
        %s346 = smul.addr %s345, 2
        %s347 = smul.addr %s346, 8
        %s348 = scalar_lea.vmem %s0, %s347
        %s349 = smul.u32 8, %s18
        %s350 = smul.u32 2, %s19
        %s351 = smul.u32 8, %s18
        %s352 = smul.u32 2, %s19
        %v353 = vld [vmem:[%s348] sm:$0xff]
        %v354 = vld [vmem:[%s348 + $0x8] sm:$0xff]
        %v355 = vld [vmem:[%s348 + $0x10] sm:$0xff]
        %v356 = vld [vmem:[%s348 + $0x18] sm:$0xff]
        %v357 = vld [vmem:[%s348 + $0x20] sm:$0xff]
        %v358 = vld [vmem:[%s348 + $0x28] sm:$0xff]
        %v359 = vld [vmem:[%s348 + $0x30] sm:$0xff]
        %v360 = vld [vmem:[%s348 + $0x38] sm:$0xff]
        %v361 = vld [vmem:[%s348 + $0x40] sm:$0xff]
        %v362 = vld [vmem:[%s348 + $0x48] sm:$0xff]
        %v363 = vld [vmem:[%s348 + $0x50] sm:$0xff]
        %v364 = vld [vmem:[%s348 + $0x58] sm:$0xff]
        %v365 = vld [vmem:[%s348 + $0x60] sm:$0xff]
        %v366 = vld [vmem:[%s348 + $0x68] sm:$0xff]
        %v367 = vld [vmem:[%s348 + $0x70] sm:$0xff]
        %v368 = vld [vmem:[%s348 + $0x78] sm:$0xff]
        %v369 = vmul.f32 %v353, %v353
        %v370 = vmul.f32 %v354, %v354
        %v371 = vmul.f32 %v355, %v355
        %v372 = vmul.f32 %v356, %v356
        %v373 = vmul.f32 %v357, %v357
        %v374 = vmul.f32 %v358, %v358
        %v375 = vmul.f32 %v359, %v359
        %v376 = vmul.f32 %v360, %v360
        %v377 = vmul.f32 %v361, %v361
        %v378 = vmul.f32 %v362, %v362
        %v379 = vmul.f32 %v363, %v363
        %v380 = vmul.f32 %v364, %v364
        %v381 = vmul.f32 %v365, %v365
        %v382 = vmul.f32 %v366, %v366
        %v383 = vmul.f32 %v367, %v367
        %v384 = vmul.f32 %v368, %v368
        %v385 = vadd.f32 %v369, %v370
        %386 = vadd.xlane.f32.xlu0 %v385
        %v387 = vpop.xlane.xlu0 %386
        %v388 = vadd.f32 %v371, %v372
        %389 = vadd.xlane.f32.xlu0 %v388
        %v390 = vpop.xlane.xlu0 %389
        %v391 = vadd.f32 %v373, %v374
        %392 = vadd.xlane.f32.xlu0 %v391
        %v393 = vpop.xlane.xlu0 %392
        %v394 = vadd.f32 %v375, %v376
        %395 = vadd.xlane.f32.xlu0 %v394
        %v396 = vpop.xlane.xlu0 %395
        %v397 = vadd.f32 %v377, %v378
        %398 = vadd.xlane.f32.xlu0 %v397
        %v399 = vpop.xlane.xlu0 %398
        %v400 = vadd.f32 %v379, %v380
        %401 = vadd.xlane.f32.xlu0 %v400
        %v402 = vpop.xlane.xlu0 %401
        %v403 = vadd.f32 %v381, %v382
        %404 = vadd.xlane.f32.xlu0 %v403
        %v405 = vpop.xlane.xlu0 %404
        %v406 = vadd.f32 %v383, %v384
        %407 = vadd.xlane.f32.xlu0 %v406
        %v408 = vpop.xlane.xlu0 %407
        %v409 = vrcp.pop 256.0
        %v410 = vmul.f32 %v387, %v409
        %v411 = vmul.f32 %v390, %v409
        %v412 = vmul.f32 %v393, %v409
        %v413 = vmul.f32 %v396, %v409
        %v414 = vmul.f32 %v399, %v409
        %v415 = vmul.f32 %v402, %v409
        %v416 = vmul.f32 %v405, %v409
        %v417 = vmul.f32 %v408, %v409
        %v418 = vadd.f32 %v410, 1e-06
        %v419 = vadd.f32 %v411, 1e-06
        %v420 = vadd.f32 %v412, 1e-06
        %v421 = vadd.f32 %v413, 1e-06
        %v422 = vadd.f32 %v414, 1e-06
        %v423 = vadd.f32 %v415, 1e-06
        %v424 = vadd.f32 %v416, 1e-06
        %v425 = vadd.f32 %v417, 1e-06
        %v426 = vrsqrt.pop %v418
        %v427 = vrsqrt.pop %v419
        %v428 = vrsqrt.pop %v420
        %v429 = vrsqrt.pop %v421
        %v430 = vrsqrt.pop %v422
        %v431 = vrsqrt.pop %v423
        %v432 = vrsqrt.pop %v424
        %v433 = vrsqrt.pop %v425
        %v434 = vmul.f32 %v353, %v426
        %v435 = vmul.f32 %v354, %v426
        %v436 = vmul.f32 %v355, %v427
        %v437 = vmul.f32 %v356, %v427
        %v438 = vmul.f32 %v357, %v428
        %v439 = vmul.f32 %v358, %v428
        %v440 = vmul.f32 %v359, %v429
        %v441 = vmul.f32 %v360, %v429
        %v442 = vmul.f32 %v361, %v430
        %v443 = vmul.f32 %v362, %v430
        %v444 = vmul.f32 %v363, %v431
        %v445 = vmul.f32 %v364, %v431
        %v446 = vmul.f32 %v365, %v432
        %v447 = vmul.f32 %v366, %v432
        %v448 = vmul.f32 %v367, %v433
        %v449 = vmul.f32 %v368, %v433
        %v450 = vld [vmem:[%s1] sm:$0x3]
        %v452 = vlaneseq
        %v453 = vshrl.u32 %v452, 7
        %v454 = vsub.s32 0, %v453
        %v455 = vrot.slane %v450, %v454
        %v456 = vlaneseq
        %v457 = vshrl.u32 %v456, 7
        %v458 = vsub.s32 1, %v457
        %v459 = vrot.slane %v450, %v458
        %v462 = vmul.f32 %v434, %v455
        %v463 = vmul.f32 %v435, %v459
        %v464 = vmul.f32 %v436, %v455
        %v465 = vmul.f32 %v437, %v459
        %v466 = vmul.f32 %v438, %v455
        %v467 = vmul.f32 %v439, %v459
        %v468 = vmul.f32 %v440, %v455
        %v469 = vmul.f32 %v441, %v459
        %v470 = vmul.f32 %v442, %v455
        %v471 = vmul.f32 %v443, %v459
        %v472 = vmul.f32 %v444, %v455
        %v473 = vmul.f32 %v445, %v459
        %v474 = vmul.f32 %v446, %v455
        %v475 = vmul.f32 %v447, %v459
        %v476 = vmul.f32 %v448, %v455
        %v477 = vmul.f32 %v449, %v459
        %v478 = vld [vmem:[%s317] sm:$0xff]
        %v479 = vld [vmem:[%s317 + $0x8] sm:$0xff]
        %v480 = vld [vmem:[%s317 + $0x10] sm:$0xff]
        %v481 = vld [vmem:[%s317 + $0x18] sm:$0xff]
        %v482 = vld [vmem:[%s317 + $0x20] sm:$0xff]
        %v483 = vld [vmem:[%s317 + $0x28] sm:$0xff]
        %v484 = vld [vmem:[%s317 + $0x30] sm:$0xff]
        %v485 = vld [vmem:[%s317 + $0x38] sm:$0xff]
        %v486 = vld [vmem:[%s317 + $0x40] sm:$0xff]
        %v487 = vld [vmem:[%s317 + $0x48] sm:$0xff]
        %v488 = vld [vmem:[%s317 + $0x50] sm:$0xff]
        %v489 = vld [vmem:[%s317 + $0x58] sm:$0xff]
        %v490 = vld [vmem:[%s317 + $0x60] sm:$0xff]
        %v491 = vld [vmem:[%s317 + $0x68] sm:$0xff]
        %v492 = vld [vmem:[%s317 + $0x70] sm:$0xff]
        %v493 = vld [vmem:[%s317 + $0x78] sm:$0xff]
        %v494 = vld [vmem:[%s317 + $0x80] sm:$0xff]
        %v495 = vld [vmem:[%s317 + $0x88] sm:$0xff]
        %v496 = vld [vmem:[%s317 + $0x90] sm:$0xff]
        %v497 = vld [vmem:[%s317 + $0x98] sm:$0xff]
        %v498 = vld [vmem:[%s317 + $0xa0] sm:$0xff]
        %v499 = vld [vmem:[%s317 + $0xa8] sm:$0xff]
        %v500 = vld [vmem:[%s317 + $0xb0] sm:$0xff]
        %v501 = vld [vmem:[%s317 + $0xb8] sm:$0xff]
        %v502 = vld [vmem:[%s317 + $0xc0] sm:$0xff]
        %v503 = vld [vmem:[%s317 + $0xc8] sm:$0xff]
        %v504 = vld [vmem:[%s317 + $0xd0] sm:$0xff]
        %v505 = vld [vmem:[%s317 + $0xd8] sm:$0xff]
        %v506 = vld [vmem:[%s317 + $0xe0] sm:$0xff]
        %v507 = vld [vmem:[%s317 + $0xe8] sm:$0xff]
        %v508 = vld [vmem:[%s317 + $0xf0] sm:$0xff]
        %v509 = vld [vmem:[%s317 + $0xf8] sm:$0xff]
        %v510 = vld [vmem:[%s317 + $0x100] sm:$0xff]
        %v511 = vld [vmem:[%s317 + $0x108] sm:$0xff]
        %v512 = vld [vmem:[%s317 + $0x110] sm:$0xff]
        %v513 = vld [vmem:[%s317 + $0x118] sm:$0xff]
        %v514 = vld [vmem:[%s317 + $0x120] sm:$0xff]
        %v515 = vld [vmem:[%s317 + $0x128] sm:$0xff]
        %v516 = vld [vmem:[%s317 + $0x130] sm:$0xff]
        %v517 = vld [vmem:[%s317 + $0x138] sm:$0xff]
        %v518 = vld [vmem:[%s317 + $0x140] sm:$0xff]
        %v519 = vld [vmem:[%s317 + $0x148] sm:$0xff]
        %v520 = vld [vmem:[%s317 + $0x150] sm:$0xff]
        %v521 = vld [vmem:[%s317 + $0x158] sm:$0xff]
        %v522 = vld [vmem:[%s317 + $0x160] sm:$0xff]
        %v523 = vld [vmem:[%s317 + $0x168] sm:$0xff]
        %v524 = vld [vmem:[%s317 + $0x170] sm:$0xff]
        %v525 = vld [vmem:[%s317 + $0x178] sm:$0xff]
        %v526 = vld [vmem:[%s317 + $0x180] sm:$0xff]
        %v527 = vld [vmem:[%s317 + $0x188] sm:$0xff]
        %v528 = vld [vmem:[%s317 + $0x190] sm:$0xff]
        %v529 = vld [vmem:[%s317 + $0x198] sm:$0xff]
        %v530 = vld [vmem:[%s317 + $0x1a0] sm:$0xff]
        %v531 = vld [vmem:[%s317 + $0x1a8] sm:$0xff]
        %v532 = vld [vmem:[%s317 + $0x1b0] sm:$0xff]
        %v533 = vld [vmem:[%s317 + $0x1b8] sm:$0xff]
        %v534 = vld [vmem:[%s317 + $0x1c0] sm:$0xff]
        %v535 = vld [vmem:[%s317 + $0x1c8] sm:$0xff]
        %v536 = vld [vmem:[%s317 + $0x1d0] sm:$0xff]
        %v537 = vld [vmem:[%s317 + $0x1d8] sm:$0xff]
        %v538 = vld [vmem:[%s317 + $0x1e0] sm:$0xff]
        %v539 = vld [vmem:[%s317 + $0x1e8] sm:$0xff]
        %v540 = vld [vmem:[%s317 + $0x1f0] sm:$0xff]
        %v541 = vld [vmem:[%s317 + $0x1f8] sm:$0xff]
        %542 = vmatprep.subr.mxu0 %v479
        %543 = vmatpush1.msra.mxu0 %v478
        %544 = vmatprep.subr.mxu0 %v481
        %545 = vmatpush1.msra.mxu0 %v480
        %546 = vmatprep.subr.mxu0 %v483
        %547 = vmatpush1.msra.mxu0 %v482
        %548 = vmatprep.subr.mxu0 %v485
        %549 = vmatpush1.msra.mxu0 %v484
        %550 = vmatprep.subr.mxu0 %v487
        %551 = vmatpush1.msra.mxu0 %v486
        %552 = vmatprep.subr.mxu0 %v489
        %553 = vmatpush1.msra.mxu0 %v488
        %554 = vmatprep.subr.mxu0 %v491
        %555 = vmatpush1.msra.mxu0 %v490
        %556 = vmatprep.subr.mxu0 %v493
        %557 = vmatpush1.msra.mxu0 %v492
        %558 = vmatprep.subr.mxu0 %v495
        %559 = vmatpush1.msra.mxu0 %v494
        %560 = vmatprep.subr.mxu0 %v497
        %561 = vmatpush1.msra.mxu0 %v496
        %562 = vmatprep.subr.mxu0 %v499
        %563 = vmatpush1.msra.mxu0 %v498
        %564 = vmatprep.subr.mxu0 %v501
        %565 = vmatpush1.msra.mxu0 %v500
        %566 = vmatprep.subr.mxu0 %v503
        %567 = vmatpush1.msra.mxu0 %v502
        %568 = vmatprep.subr.mxu0 %v505
        %569 = vmatpush1.msra.mxu0 %v504
        %570 = vmatprep.subr.mxu0 %v507
        %571 = vmatpush1.msra.mxu0 %v506
        %572 = vmatprep.subr.mxu0 %v509
        %573 = vmatpush1.msra.mxu0 %v508
        %574 = vmatprep.subr.mxu0 %v511
        %575 = vmatpush1.msra.mxu0 %v510
        %576 = vmatprep.subr.mxu0 %v513
        %577 = vmatpush1.msra.mxu0 %v512
        %578 = vmatprep.subr.mxu0 %v515
        %579 = vmatpush1.msra.mxu0 %v514
        %580 = vmatprep.subr.mxu0 %v517
        %581 = vmatpush1.msra.mxu0 %v516
        %582 = vmatprep.subr.mxu0 %v519
        %583 = vmatpush1.msra.mxu0 %v518
        %584 = vmatprep.subr.mxu0 %v521
        %585 = vmatpush1.msra.mxu0 %v520
        %586 = vmatprep.subr.mxu0 %v523
        %587 = vmatpush1.msra.mxu0 %v522
        %588 = vmatprep.subr.mxu0 %v525
        %589 = vmatpush1.msra.mxu0 %v524
        %590 = vmatprep.subr.mxu0 %v527
        %591 = vmatpush1.msra.mxu0 %v526
        %592 = vmatprep.subr.mxu0 %v529
        %593 = vmatpush1.msra.mxu0 %v528
        %594 = vmatprep.subr.mxu0 %v531
        %595 = vmatpush1.msra.mxu0 %v530
        %596 = vmatprep.subr.mxu0 %v533
        %597 = vmatpush1.msra.mxu0 %v532
        %598 = vmatprep.subr.mxu0 %v535
        %599 = vmatpush1.msra.mxu0 %v534
        %600 = vmatprep.subr.mxu0 %v537
        %601 = vmatpush1.msra.mxu0 %v536
        %602 = vmatprep.subr.mxu0 %v539
        %603 = vmatpush1.msra.mxu0 %v538
        %604 = vmatprep.subr.mxu0 %v541
        %605 = vmatpush1.msra.mxu0 %v540
        %606 = vmatprep.mubr.f32.mxu0 %v463
        %607 = vmatmul.mubr.f32.gmra.mrb[0].mxu0 %v462
        %v608 = vpop.f32.mrb[0].mxu0
        %v609 = vadd.f32 0.0, %v608
        %v610 = vpop.f32.mrb[0].mxu0
        %v611 = vadd.f32 0.0, %v610
        %612 = vmatprep.mubr.f32.mxu0 %v465
        %613 = vmatmul.mubr.f32.gmra.mrb[0].mxu0 %v464
        %v614 = vpop.f32.mrb[0].mxu0
        %v615 = vadd.f32 0.0, %v614
        %v616 = vpop.f32.mrb[0].mxu0
        %v617 = vadd.f32 0.0, %v616
        %618 = vmatprep.mubr.f32.mxu0 %v467
        %619 = vmatmul.mubr.f32.gmra.mrb[0].mxu0 %v466
        %v620 = vpop.f32.mrb[0].mxu0
        %v621 = vadd.f32 0.0, %v620
        %v622 = vpop.f32.mrb[0].mxu0
        %v623 = vadd.f32 0.0, %v622
        %624 = vmatprep.mubr.f32.mxu0 %v469
        %625 = vmatmul.mubr.f32.gmra.mrb[0].mxu0 %v468
        %v626 = vpop.f32.mrb[0].mxu0
        %v627 = vadd.f32 0.0, %v626
        %v628 = vpop.f32.mrb[0].mxu0
        %v629 = vadd.f32 0.0, %v628
        %630 = vmatprep.mubr.f32.mxu0 %v471
        %631 = vmatmul.mubr.f32.gmra.mrb[0].mxu0 %v470
        %v632 = vpop.f32.mrb[0].mxu0
        %v633 = vadd.f32 0.0, %v632
        %v634 = vpop.f32.mrb[0].mxu0
        %v635 = vadd.f32 0.0, %v634
        %636 = vmatprep.mubr.f32.mxu0 %v473
        %637 = vmatmul.mubr.f32.gmra.mrb[0].mxu0 %v472
        %v638 = vpop.f32.mrb[0].mxu0
        %v639 = vadd.f32 0.0, %v638
        %v640 = vpop.f32.mrb[0].mxu0
        %v641 = vadd.f32 0.0, %v640
        %642 = vmatprep.mubr.f32.mxu0 %v475
        %643 = vmatmul.mubr.f32.gmra.mrb[0].mxu0 %v474
        %v644 = vpop.f32.mrb[0].mxu0
        %v645 = vadd.f32 0.0, %v644
        %v646 = vpop.f32.mrb[0].mxu0
        %v647 = vadd.f32 0.0, %v646
        %648 = vmatprep.mubr.f32.mxu0 %v477
        %649 = vmatmul.mubr.f32.gmra.mrb[0].mxu0 %v476
        %v650 = vpop.f32.mrb[0].mxu0
        %v651 = vadd.f32 0.0, %v650
        %v652 = vpop.f32.mrb[0].mxu0
        %v653 = vadd.f32 0.0, %v652
        %654 = vdwg.mxu0
        %v655 = vxor.u32 %v609, 2147483648
        %v656 = vxor.u32 %v611, 2147483648
        %v657 = vxor.u32 %v615, 2147483648
        %v658 = vxor.u32 %v617, 2147483648
        %v659 = vxor.u32 %v621, 2147483648
        %v660 = vxor.u32 %v623, 2147483648
        %v661 = vxor.u32 %v627, 2147483648
        %v662 = vxor.u32 %v629, 2147483648
        %v663 = vxor.u32 %v633, 2147483648
        %v664 = vxor.u32 %v635, 2147483648
        %v665 = vxor.u32 %v639, 2147483648
        %v666 = vxor.u32 %v641, 2147483648
        %v667 = vxor.u32 %v645, 2147483648
        %v668 = vxor.u32 %v647, 2147483648
        %v669 = vxor.u32 %v651, 2147483648
        %v670 = vxor.u32 %v653, 2147483648
        %v671 = vmul.f32 %v655, 1.442695
        %v672 = vpow.pop %v671
        %v673 = vmul.f32 %v656, 1.442695
        %v674 = vpow.pop %v673
        %v675 = vmul.f32 %v657, 1.442695
        %v676 = vpow.pop %v675
        %v677 = vmul.f32 %v658, 1.442695
        %v678 = vpow.pop %v677
        %v679 = vmul.f32 %v659, 1.442695
        %v680 = vpow.pop %v679
        %v681 = vmul.f32 %v660, 1.442695
        %v682 = vpow.pop %v681
        %v683 = vmul.f32 %v661, 1.442695
        %v684 = vpow.pop %v683
        %v685 = vmul.f32 %v662, 1.442695
        %v686 = vpow.pop %v685
        %v687 = vmul.f32 %v663, 1.442695
        %v688 = vpow.pop %v687
        %v689 = vmul.f32 %v664, 1.442695
        %v690 = vpow.pop %v689
        %v691 = vmul.f32 %v665, 1.442695
        %v692 = vpow.pop %v691
        %v693 = vmul.f32 %v666, 1.442695
        %v694 = vpow.pop %v693
        %v695 = vmul.f32 %v667, 1.442695
        %v696 = vpow.pop %v695
        %v697 = vmul.f32 %v668, 1.442695
        %v698 = vpow.pop %v697
        %v699 = vmul.f32 %v669, 1.442695
        %v700 = vpow.pop %v699
        %v701 = vmul.f32 %v670, 1.442695
        %v702 = vpow.pop %v701
        %v703 = vadd.f32 %v672, 1.0
        %v704 = vadd.f32 %v674, 1.0
        %v705 = vadd.f32 %v676, 1.0
        %v706 = vadd.f32 %v678, 1.0
        %v707 = vadd.f32 %v680, 1.0
        %v708 = vadd.f32 %v682, 1.0
        %v709 = vadd.f32 %v684, 1.0
        %v710 = vadd.f32 %v686, 1.0
        %v711 = vadd.f32 %v688, 1.0
        %v712 = vadd.f32 %v690, 1.0
        %v713 = vadd.f32 %v692, 1.0
        %v714 = vadd.f32 %v694, 1.0
        %v715 = vadd.f32 %v696, 1.0
        %v716 = vadd.f32 %v698, 1.0
        %v717 = vadd.f32 %v700, 1.0
        %v718 = vadd.f32 %v702, 1.0
        %v719 = vrcp.pop %v703
        %v720 = vmul.f32 1.0, %v719
        %v721 = vrcp.pop %v704
        %v722 = vmul.f32 1.0, %v721
        %v723 = vrcp.pop %v705
        %v724 = vmul.f32 1.0, %v723
        %v725 = vrcp.pop %v706
        %v726 = vmul.f32 1.0, %v725
        %v727 = vrcp.pop %v707
        %v728 = vmul.f32 1.0, %v727
        %v729 = vrcp.pop %v708
        %v730 = vmul.f32 1.0, %v729
        %v731 = vrcp.pop %v709
        %v732 = vmul.f32 1.0, %v731
        %v733 = vrcp.pop %v710
        %v734 = vmul.f32 1.0, %v733
        %v735 = vrcp.pop %v711
        %v736 = vmul.f32 1.0, %v735
        %v737 = vrcp.pop %v712
        %v738 = vmul.f32 1.0, %v737
        %v739 = vrcp.pop %v713
        %v740 = vmul.f32 1.0, %v739
        %v741 = vrcp.pop %v714
        %v742 = vmul.f32 1.0, %v741
        %v743 = vrcp.pop %v715
        %v744 = vmul.f32 1.0, %v743
        %v745 = vrcp.pop %v716
        %v746 = vmul.f32 1.0, %v745
        %v747 = vrcp.pop %v717
        %v748 = vmul.f32 1.0, %v747
        %v749 = vrcp.pop %v718
        %v750 = vmul.f32 1.0, %v749
        %v751 = vmul.f32 %v609, %v720
        %v752 = vmul.f32 %v611, %v722
        %v753 = vmul.f32 %v615, %v724
        %v754 = vmul.f32 %v617, %v726
        %v755 = vmul.f32 %v621, %v728
        %v756 = vmul.f32 %v623, %v730
        %v757 = vmul.f32 %v627, %v732
        %v758 = vmul.f32 %v629, %v734
        %v759 = vmul.f32 %v633, %v736
        %v760 = vmul.f32 %v635, %v738
        %v761 = vmul.f32 %v639, %v740
        %v762 = vmul.f32 %v641, %v742
        %v763 = vmul.f32 %v645, %v744
        %v764 = vmul.f32 %v647, %v746
        %v765 = vmul.f32 %v651, %v748
        %v766 = vmul.f32 %v653, %v750
        %767 = vst [vmem:[%s342] sm:$0xff] %v751
        %768 = vst [vmem:[%s342 + $0x8] sm:$0xff] %v752
        %769 = vst [vmem:[%s342 + $0x10] sm:$0xff] %v753
        %770 = vst [vmem:[%s342 + $0x18] sm:$0xff] %v754
        %771 = vst [vmem:[%s342 + $0x20] sm:$0xff] %v755
        %772 = vst [vmem:[%s342 + $0x28] sm:$0xff] %v756
        %773 = vst [vmem:[%s342 + $0x30] sm:$0xff] %v757
        %774 = vst [vmem:[%s342 + $0x38] sm:$0xff] %v758
        %775 = vst [vmem:[%s342 + $0x40] sm:$0xff] %v759
        %776 = vst [vmem:[%s342 + $0x48] sm:$0xff] %v760
        %777 = vst [vmem:[%s342 + $0x50] sm:$0xff] %v761
        %778 = vst [vmem:[%s342 + $0x58] sm:$0xff] %v762
        %779 = vst [vmem:[%s342 + $0x60] sm:$0xff] %v763
        %780 = vst [vmem:[%s342 + $0x68] sm:$0xff] %v764
        %781 = vst [vmem:[%s342 + $0x70] sm:$0xff] %v765
        %782 = vst [vmem:[%s342 + $0x78] sm:$0xff] %v766
        %s783 = sand.u32 %s109, 1
        %s784 = sand.u32 %s109, 1
        %s785 = smul.addr %s784, 128
        %s786 = scalar_lea.vmem [#allocation3], %s785
        // Predicated region
        $region56: #{block_forward.8} parent=50 // pred_check
          %p787 = pneg %p119
        $region57: #{block_forward.8} parent=50 // pred_check_branch
          %789 = sbr.rel (%p787) target = $region59
        $region58: #{block_forward.8} parent=50 // pred_region
          %s790 = smul.u32 8, %s18
          %s791 = smul.u32 2, %s19
          %s792 = smul.addr %s790, 8
          %s793 = sadd.s32 %s791, %s792
          %s794 = smul.addr %s793, 8
          %s795 = scalar_lea.vmem %s3, %s794
          // Predicated region
          $region60: #{block_forward.8} parent=58 // pred_check
            _
          $region61: #{block_forward.8} parent=58 // pred_check_branch
            %797 = sbr.rel (0) target = $region63
          $region62: #{block_forward.8} parent=58 // pred_region
            // Predicated region
            $region64: #{block_forward.8} parent=62 // pred_check
              _
            $region65: #{block_forward.8} parent=62 // pred_check_branch
              %799 = sbr.rel (0) target = $region67
            $region66: #{block_forward.8} parent=62 // pred_region
              loop: start=0, step=1, limit=1
              $region68: #{block_forward.8} parent=66 // loop_pre_header
                _
              $region69: #{block_forward.8} parent=66 // loop_header
                %s801 = sphi 0, %s805
                %p802 = scmp.ge.s32.totalorder %s801, 1
                %s806 = sphi %s786, %s786
                %s807 = sphi %s795, %s795
              $region70: #{block_forward.8} parent=66 // loop_header_branch
                %804 = sbr.rel (%p802) target = $region74
              $region71: #{block_forward.8} parent=66 // loop_body
                %v808 = vld [vmem:[%s806] sm:$0xff]
                %809 = vst [vmem:[%s807] sm:$0xff] %v808
                %v810 = vld [vmem:[%s806 + $0x8] sm:$0xff]
                %811 = vst [vmem:[%s807 + $0x8] sm:$0xff] %v810
                %v812 = vld [vmem:[%s806 + $0x10] sm:$0xff]
                %813 = vst [vmem:[%s807 + $0x40] sm:$0xff] %v812
                %v814 = vld [vmem:[%s806 + $0x18] sm:$0xff]
                %815 = vst [vmem:[%s807 + $0x48] sm:$0xff] %v814
                %v816 = vld [vmem:[%s806 + $0x20] sm:$0xff]
                %817 = vst [vmem:[%s807 + $0x80] sm:$0xff] %v816
                %v818 = vld [vmem:[%s806 + $0x28] sm:$0xff]
                %819 = vst [vmem:[%s807 + $0x88] sm:$0xff] %v818
                %v820 = vld [vmem:[%s806 + $0x30] sm:$0xff]
                %821 = vst [vmem:[%s807 + $0xc0] sm:$0xff] %v820
                %v822 = vld [vmem:[%s806 + $0x38] sm:$0xff]
                %823 = vst [vmem:[%s807 + $0xc8] sm:$0xff] %v822
                %v824 = vld [vmem:[%s806 + $0x40] sm:$0xff]
                %825 = vst [vmem:[%s807 + $0x100] sm:$0xff] %v824
                %v826 = vld [vmem:[%s806 + $0x48] sm:$0xff]
                %827 = vst [vmem:[%s807 + $0x108] sm:$0xff] %v826
                %v828 = vld [vmem:[%s806 + $0x50] sm:$0xff]
                %829 = vst [vmem:[%s807 + $0x140] sm:$0xff] %v828
                %v830 = vld [vmem:[%s806 + $0x58] sm:$0xff]
                %831 = vst [vmem:[%s807 + $0x148] sm:$0xff] %v830
                %v832 = vld [vmem:[%s806 + $0x60] sm:$0xff]
                %833 = vst [vmem:[%s807 + $0x180] sm:$0xff] %v832
                %v834 = vld [vmem:[%s806 + $0x68] sm:$0xff]
                %835 = vst [vmem:[%s807 + $0x188] sm:$0xff] %v834
                %v836 = vld [vmem:[%s806 + $0x70] sm:$0xff]
                %837 = vst [vmem:[%s807 + $0x1c0] sm:$0xff] %v836
                %v838 = vld [vmem:[%s806 + $0x78] sm:$0xff]
                %839 = vst [vmem:[%s807 + $0x1c8] sm:$0xff] %v838
              $region72: #{block_forward.8} parent=66 // loop_footer
                %s805 = sadd.s32 1, %s801
              $region73: #{block_forward.8} parent=66 // loop_footer_branch
                %800 = sbr.rel target = $region69
              $region74: #{block_forward.8} parent=66 // loop_exit
                _
            $region67: #{block_forward.8} parent=62 // pred_fallthru
              _
            // Predicated region
            $region75: #{block_forward.8} parent=62 // pred_check
              _
            $region76: #{block_forward.8} parent=62 // pred_check_branch
              %841 = sbr.rel target = $region78
            $region77: #{block_forward.8} parent=62 // pred_region
              _
            $region78: #{block_forward.8} parent=62 // pred_fallthru
              _
          $region63: #{block_forward.8} parent=58 // pred_fallthru
            _
          %842 = vnop
        $region59: #{block_forward.8} parent=50 // pred_fallthru
          _
      $region51: #{block_forward.8} parent=5 // pred_fallthru
        _
      %p843 = scmp.le.s32.totalorder 2, %s9
      // Predicated region
      $region79: #{block_forward.8} parent=5 // pred_check
        %p844 = pneg %p843
      $region80: #{block_forward.8} parent=5 // pred_check_branch
        %846 = sbr.rel (%p844) target = $region82
      $region81: #{block_forward.8} parent=5 // pred_region
        %s847 = ssub.s32 %s9, 2
        // Predicated region
        $region83: #{block_forward.8} parent=81 // pred_check
          %p848 = pneg %p125
        $region84: #{block_forward.8} parent=81 // pred_check_branch
          %850 = sbr.rel (%p848) target = $region86
        $region85: #{block_forward.8} parent=81 // pred_region
          %s851 = sand.u32 %s110, 1
          %s852 = sand.u32 %s110, 1
          %s853 = smul.addr %s852, 128
          %s854 = scalar_lea.vmem [#allocation3], %s853
        $region86: #{block_forward.8} parent=81 // pred_fallthru
          _
      $region82: #{block_forward.8} parent=5 // pred_fallthru
        _
    $region6: #{block_forward.8} parent=1 // loop_footer
      %s13 = sadd.s32 1, %s9
    $region7: #{block_forward.8} parent=1 // loop_footer_branch
      %8 = sbr.rel target = $region3
    $region8: #{block_forward.8} parent=1 // loop_exit
      _

// kernel: block_forward.7
$region0: #{block_forward.7}
  #allocation0 [shape = 'u32[]', space=smem, size = 0x4, offset = 0x4, fixed_abs, tag = 'smem constant byte address 0x4 - core index']
  #allocation1 [shape = 'u32[144,128]{1,0:T(1,128)}', space=vmem, size = 0x12000, scoped, tag = 'internal scratch']
  #allocation2 [shape = 'f32[64,256]{1,0:T(8,128)}', space=vmem, size = 0x10000, scoped, tag = 'scratch operand']
  %s0 = inlined_call_operand.vmem [shape: f32[64,256], index: 0, kind: input, shape index: {}]
  %s1 = inlined_call_operand.vmem [shape: f32[256,256], index: 1, kind: input, shape index: {}]
  %s2 = inlined_call_operand.vmem [shape: f32[64,256], index: 2, kind: input, shape index: {}]
  %s3 = inlined_call_operand.vmem [shape: f32[64,256], index: 3, kind: output, shape index: {}]
  %s4 = sld [smem:[#allocation0]]
  $region30: #{block_forward.7} parent=0
    _
  %s6 = ssub.s32 1, %s4
  %s7 = scalar_select 0, %s6, %s4
  // Predicated region
  $region2: #{block_forward.7} parent=0 // pred_check
    _
  $region3: #{block_forward.7} parent=0 // pred_check_branch
    %9 = sbr.rel (0) target = $region5
  $region4: #{block_forward.7} parent=0 // pred_region
    _
  $region5: #{block_forward.7} parent=0 // pred_fallthru
    _
  // Predicated region
  $region6: #{block_forward.7} parent=0 // pred_check
    _
  $region7: #{block_forward.7} parent=0 // pred_check_branch
    %11 = sbr.rel (0) target = $region9
  $region8: #{block_forward.7} parent=0 // pred_region
    _
  $region9: #{block_forward.7} parent=0 // pred_fallthru
    _
  // Predicated region
  $region10: #{block_forward.7} parent=0 // pred_check
    _
  $region11: #{block_forward.7} parent=0 // pred_check_branch
    %13 = sbr.rel (0) target = $region13
  $region12: #{block_forward.7} parent=0 // pred_region
    _
  $region13: #{block_forward.7} parent=0 // pred_fallthru
    _
  %p14 = scmp.eq.s32.totalorder 0, 0
  // Predicated region
  $region14: #{block_forward.7} parent=0 // pred_check
    %p15 = pneg %p14
  $region15: #{block_forward.7} parent=0 // pred_check_branch
    %17 = sbr.rel (%p15) target = $region17
  $region16: #{block_forward.7} parent=0 // pred_region
    %18 = vst [vmem:[#allocation2] sm:$0xff] 0.0
    %19 = vst [vmem:[#allocation2 + $0x8] sm:$0xff] 0.0
    %20 = vst [vmem:[#allocation2 + $0x10] sm:$0xff] 0.0
    %21 = vst [vmem:[#allocation2 + $0x18] sm:$0xff] 0.0
    %22 = vst [vmem:[#allocation2 + $0x20] sm:$0xff] 0.0
    %23 = vst [vmem:[#allocation2 + $0x28] sm:$0xff] 0.0
    %24 = vst [vmem:[#allocation2 + $0x30] sm:$0xff] 0.0
    %25 = vst [vmem:[#allocation2 + $0x38] sm:$0xff] 0.0
    %26 = vst [vmem:[#allocation2 + $0x40] sm:$0xff] 0.0
    %27 = vst [vmem:[#allocation2 + $0x48] sm:$0xff] 0.0
    %28 = vst [vmem:[#allocation2 + $0x50] sm:$0xff] 0.0
    %29 = vst [vmem:[#allocation2 + $0x58] sm:$0xff] 0.0
    %30 = vst [vmem:[#allocation2 + $0x60] sm:$0xff] 0.0
    %31 = vst [vmem:[#allocation2 + $0x68] sm:$0xff] 0.0
    %32 = vst [vmem:[#allocation2 + $0x70] sm:$0xff] 0.0
    %33 = vst [vmem:[#allocation2 + $0x78] sm:$0xff] 0.0
  $region17: #{block_forward.7} parent=0 // pred_fallthru
    _
  %v34 = vld [vmem:[#allocation2] sm:$0xff]
  %v35 = vld [vmem:[#allocation2 + $0x8] sm:$0xff]
  %v36 = vld [vmem:[#allocation2 + $0x10] sm:$0xff]
  %v37 = vld [vmem:[#allocation2 + $0x18] sm:$0xff]
  %v38 = vld [vmem:[#allocation2 + $0x20] sm:$0xff]
  %v39 = vld [vmem:[#allocation2 + $0x28] sm:$0xff]
  %v40 = vld [vmem:[#allocation2 + $0x30] sm:$0xff]
  %v41 = vld [vmem:[#allocation2 + $0x38] sm:$0xff]
  %v42 = vld [vmem:[#allocation2 + $0x40] sm:$0xff]
  %v43 = vld [vmem:[#allocation2 + $0x48] sm:$0xff]
  %v44 = vld [vmem:[#allocation2 + $0x50] sm:$0xff]
  %v45 = vld [vmem:[#allocation2 + $0x58] sm:$0xff]
  %v46 = vld [vmem:[#allocation2 + $0x60] sm:$0xff]
  %v47 = vld [vmem:[#allocation2 + $0x68] sm:$0xff]
  %v48 = vld [vmem:[#allocation2 + $0x70] sm:$0xff]
  %v49 = vld [vmem:[#allocation2 + $0x78] sm:$0xff]
  %v50 = vld [vmem:[%s0] sm:$0xff]
  %v51 = vld [vmem:[%s0 + $0x8] sm:$0xff]
  %v52 = vld [vmem:[%s0 + $0x10] sm:$0xff]
  %v53 = vld [vmem:[%s0 + $0x18] sm:$0xff]
  %v54 = vld [vmem:[%s0 + $0x20] sm:$0xff]
  %v55 = vld [vmem:[%s0 + $0x28] sm:$0xff]
  %v56 = vld [vmem:[%s0 + $0x30] sm:$0xff]
  %v57 = vld [vmem:[%s0 + $0x38] sm:$0xff]
  %v58 = vld [vmem:[%s0 + $0x40] sm:$0xff]
  %v59 = vld [vmem:[%s0 + $0x48] sm:$0xff]
  %v60 = vld [vmem:[%s0 + $0x50] sm:$0xff]
  %v61 = vld [vmem:[%s0 + $0x58] sm:$0xff]
  %v62 = vld [vmem:[%s0 + $0x60] sm:$0xff]
  %v63 = vld [vmem:[%s0 + $0x68] sm:$0xff]
  %v64 = vld [vmem:[%s0 + $0x70] sm:$0xff]
  %v65 = vld [vmem:[%s0 + $0x78] sm:$0xff]
  %v66 = vld [vmem:[%s1] sm:$0xff]
  %v67 = vld [vmem:[%s1 + $0x8] sm:$0xff]
  %v68 = vld [vmem:[%s1 + $0x10] sm:$0xff]
  %v69 = vld [vmem:[%s1 + $0x18] sm:$0xff]
  %v70 = vld [vmem:[%s1 + $0x20] sm:$0xff]
  %v71 = vld [vmem:[%s1 + $0x28] sm:$0xff]
  %v72 = vld [vmem:[%s1 + $0x30] sm:$0xff]
  %v73 = vld [vmem:[%s1 + $0x38] sm:$0xff]
  %v74 = vld [vmem:[%s1 + $0x40] sm:$0xff]
  %v75 = vld [vmem:[%s1 + $0x48] sm:$0xff]
  %v76 = vld [vmem:[%s1 + $0x50] sm:$0xff]
  %v77 = vld [vmem:[%s1 + $0x58] sm:$0xff]
  %v78 = vld [vmem:[%s1 + $0x60] sm:$0xff]
  %v79 = vld [vmem:[%s1 + $0x68] sm:$0xff]
  %v80 = vld [vmem:[%s1 + $0x70] sm:$0xff]
  %v81 = vld [vmem:[%s1 + $0x78] sm:$0xff]
  %v82 = vld [vmem:[%s1 + $0x80] sm:$0xff]
  %v83 = vld [vmem:[%s1 + $0x88] sm:$0xff]
  %v84 = vld [vmem:[%s1 + $0x90] sm:$0xff]
  %v85 = vld [vmem:[%s1 + $0x98] sm:$0xff]
  %v86 = vld [vmem:[%s1 + $0xa0] sm:$0xff]
  %v87 = vld [vmem:[%s1 + $0xa8] sm:$0xff]
  %v88 = vld [vmem:[%s1 + $0xb0] sm:$0xff]
  %v89 = vld [vmem:[%s1 + $0xb8] sm:$0xff]
  %v90 = vld [vmem:[%s1 + $0xc0] sm:$0xff]
  %v91 = vld [vmem:[%s1 + $0xc8] sm:$0xff]
  %v92 = vld [vmem:[%s1 + $0xd0] sm:$0xff]
  %v93 = vld [vmem:[%s1 + $0xd8] sm:$0xff]
  %v94 = vld [vmem:[%s1 + $0xe0] sm:$0xff]
  %v95 = vld [vmem:[%s1 + $0xe8] sm:$0xff]
  %v96 = vld [vmem:[%s1 + $0xf0] sm:$0xff]
  %v97 = vld [vmem:[%s1 + $0xf8] sm:$0xff]
  %v98 = vld [vmem:[%s1 + $0x100] sm:$0xff]
  %v99 = vld [vmem:[%s1 + $0x108] sm:$0xff]
  %v100 = vld [vmem:[%s1 + $0x110] sm:$0xff]
  %v101 = vld [vmem:[%s1 + $0x118] sm:$0xff]
  %v102 = vld [vmem:[%s1 + $0x120] sm:$0xff]
  %v103 = vld [vmem:[%s1 + $0x128] sm:$0xff]
  %v104 = vld [vmem:[%s1 + $0x130] sm:$0xff]
  %v105 = vld [vmem:[%s1 + $0x138] sm:$0xff]
  %v106 = vld [vmem:[%s1 + $0x140] sm:$0xff]
  %v107 = vld [vmem:[%s1 + $0x148] sm:$0xff]
  %v108 = vld [vmem:[%s1 + $0x150] sm:$0xff]
  %v109 = vld [vmem:[%s1 + $0x158] sm:$0xff]
  %v110 = vld [vmem:[%s1 + $0x160] sm:$0xff]
  %v111 = vld [vmem:[%s1 + $0x168] sm:$0xff]
  %v112 = vld [vmem:[%s1 + $0x170] sm:$0xff]
  %v113 = vld [vmem:[%s1 + $0x178] sm:$0xff]
  %v114 = vld [vmem:[%s1 + $0x180] sm:$0xff]
  %v115 = vld [vmem:[%s1 + $0x188] sm:$0xff]
  %v116 = vld [vmem:[%s1 + $0x190] sm:$0xff]
  %v117 = vld [vmem:[%s1 + $0x198] sm:$0xff]
  %v118 = vld [vmem:[%s1 + $0x1a0] sm:$0xff]
  %v119 = vld [vmem:[%s1 + $0x1a8] sm:$0xff]
  %v120 = vld [vmem:[%s1 + $0x1b0] sm:$0xff]
  %v121 = vld [vmem:[%s1 + $0x1b8] sm:$0xff]
  %v122 = vld [vmem:[%s1 + $0x1c0] sm:$0xff]
  %v123 = vld [vmem:[%s1 + $0x1c8] sm:$0xff]
  %v124 = vld [vmem:[%s1 + $0x1d0] sm:$0xff]
  %v125 = vld [vmem:[%s1 + $0x1d8] sm:$0xff]
  %v126 = vld [vmem:[%s1 + $0x1e0] sm:$0xff]
  %v127 = vld [vmem:[%s1 + $0x1e8] sm:$0xff]
  %v128 = vld [vmem:[%s1 + $0x1f0] sm:$0xff]
  %v129 = vld [vmem:[%s1 + $0x1f8] sm:$0xff]
  %130 = vmatprep.subr.mxu0 %v67
  %131 = vmatpush1.msra.mxu0 %v66
  %132 = vmatprep.subr.mxu0 %v69
  %133 = vmatpush1.msra.mxu0 %v68
  %134 = vmatprep.subr.mxu0 %v71
  %135 = vmatpush1.msra.mxu0 %v70
  %136 = vmatprep.subr.mxu0 %v73
  %137 = vmatpush1.msra.mxu0 %v72
  %138 = vmatprep.subr.mxu0 %v75
  %139 = vmatpush1.msra.mxu0 %v74
  %140 = vmatprep.subr.mxu0 %v77
  %141 = vmatpush1.msra.mxu0 %v76
  %142 = vmatprep.subr.mxu0 %v79
  %143 = vmatpush1.msra.mxu0 %v78
  %144 = vmatprep.subr.mxu0 %v81
  %145 = vmatpush1.msra.mxu0 %v80
  %146 = vmatprep.subr.mxu0 %v83
  %147 = vmatpush1.msra.mxu0 %v82
  %148 = vmatprep.subr.mxu0 %v85
  %149 = vmatpush1.msra.mxu0 %v84
  %150 = vmatprep.subr.mxu0 %v87
  %151 = vmatpush1.msra.mxu0 %v86
  %152 = vmatprep.subr.mxu0 %v89
  %153 = vmatpush1.msra.mxu0 %v88
  %154 = vmatprep.subr.mxu0 %v91
  %155 = vmatpush1.msra.mxu0 %v90
  %156 = vmatprep.subr.mxu0 %v93
  %157 = vmatpush1.msra.mxu0 %v92
  %158 = vmatprep.subr.mxu0 %v95
  %159 = vmatpush1.msra.mxu0 %v94
  %160 = vmatprep.subr.mxu0 %v97
  %161 = vmatpush1.msra.mxu0 %v96
  %162 = vmatprep.subr.mxu0 %v99
  %163 = vmatpush1.msra.mxu0 %v98
  %164 = vmatprep.subr.mxu0 %v101
  %165 = vmatpush1.msra.mxu0 %v100
  %166 = vmatprep.subr.mxu0 %v103
  %167 = vmatpush1.msra.mxu0 %v102
  %168 = vmatprep.subr.mxu0 %v105
  %169 = vmatpush1.msra.mxu0 %v104
  %170 = vmatprep.subr.mxu0 %v107
  %171 = vmatpush1.msra.mxu0 %v106
  %172 = vmatprep.subr.mxu0 %v109
  %173 = vmatpush1.msra.mxu0 %v108
  %174 = vmatprep.subr.mxu0 %v111
  %175 = vmatpush1.msra.mxu0 %v110
  %176 = vmatprep.subr.mxu0 %v113
  %177 = vmatpush1.msra.mxu0 %v112
  %178 = vmatprep.subr.mxu0 %v115
  %179 = vmatpush1.msra.mxu0 %v114
  %180 = vmatprep.subr.mxu0 %v117
  %181 = vmatpush1.msra.mxu0 %v116
  %182 = vmatprep.subr.mxu0 %v119
  %183 = vmatpush1.msra.mxu0 %v118
  %184 = vmatprep.subr.mxu0 %v121
  %185 = vmatpush1.msra.mxu0 %v120
  %186 = vmatprep.subr.mxu0 %v123
  %187 = vmatpush1.msra.mxu0 %v122
  %188 = vmatprep.subr.mxu0 %v125
  %189 = vmatpush1.msra.mxu0 %v124
  %190 = vmatprep.subr.mxu0 %v127
  %191 = vmatpush1.msra.mxu0 %v126
  %192 = vmatprep.subr.mxu0 %v129
  %193 = vmatpush1.msra.mxu0 %v128
  %194 = vmatprep.mubr.f32.mxu0 %v51
  %195 = vmatmul.mubr.f32.gmra.mrb[0].mxu0 %v50
  %v196 = vpop.f32.mrb[0].mxu0
  %v197 = vadd.f32 0.0, %v196
  %v198 = vpop.f32.mrb[0].mxu0
  %v199 = vadd.f32 0.0, %v198
  %200 = vmatprep.mubr.f32.mxu0 %v53
  %201 = vmatmul.mubr.f32.gmra.mrb[0].mxu0 %v52
  %v202 = vpop.f32.mrb[0].mxu0
  %v203 = vadd.f32 0.0, %v202
  %v204 = vpop.f32.mrb[0].mxu0
  %v205 = vadd.f32 0.0, %v204
  %206 = vmatprep.mubr.f32.mxu0 %v55
  %207 = vmatmul.mubr.f32.gmra.mrb[0].mxu0 %v54
  %v208 = vpop.f32.mrb[0].mxu0
  %v209 = vadd.f32 0.0, %v208
  %v210 = vpop.f32.mrb[0].mxu0
  %v211 = vadd.f32 0.0, %v210
  %212 = vmatprep.mubr.f32.mxu0 %v57
  %213 = vmatmul.mubr.f32.gmra.mrb[0].mxu0 %v56
  %v214 = vpop.f32.mrb[0].mxu0
  %v215 = vadd.f32 0.0, %v214
  %v216 = vpop.f32.mrb[0].mxu0
  %v217 = vadd.f32 0.0, %v216
  %218 = vmatprep.mubr.f32.mxu0 %v59
  %219 = vmatmul.mubr.f32.gmra.mrb[0].mxu0 %v58
  %v220 = vpop.f32.mrb[0].mxu0
  %v221 = vadd.f32 0.0, %v220
  %v222 = vpop.f32.mrb[0].mxu0
  %v223 = vadd.f32 0.0, %v222
  %224 = vmatprep.mubr.f32.mxu0 %v61
  %225 = vmatmul.mubr.f32.gmra.mrb[0].mxu0 %v60
  %v226 = vpop.f32.mrb[0].mxu0
  %v227 = vadd.f32 0.0, %v226
  %v228 = vpop.f32.mrb[0].mxu0
  %v229 = vadd.f32 0.0, %v228
  %230 = vmatprep.mubr.f32.mxu0 %v63
  %231 = vmatmul.mubr.f32.gmra.mrb[0].mxu0 %v62
  %v232 = vpop.f32.mrb[0].mxu0
  %v233 = vadd.f32 0.0, %v232
  %v234 = vpop.f32.mrb[0].mxu0
  %v235 = vadd.f32 0.0, %v234
  %236 = vmatprep.mubr.f32.mxu0 %v65
  %237 = vmatmul.mubr.f32.gmra.mrb[0].mxu0 %v64
  %v238 = vpop.f32.mrb[0].mxu0
  %v239 = vadd.f32 0.0, %v238
  %v240 = vpop.f32.mrb[0].mxu0
  %v241 = vadd.f32 0.0, %v240
  %242 = vdwg.mxu0
  %v243 = vadd.f32 %v34, %v197
  %v244 = vadd.f32 %v35, %v199
  %v245 = vadd.f32 %v36, %v203
  %v246 = vadd.f32 %v37, %v205
  %v247 = vadd.f32 %v38, %v209
  %v248 = vadd.f32 %v39, %v211
  %v249 = vadd.f32 %v40, %v215
  %v250 = vadd.f32 %v41, %v217
  %v251 = vadd.f32 %v42, %v221
  %v252 = vadd.f32 %v43, %v223
  %v253 = vadd.f32 %v44, %v227
  %v254 = vadd.f32 %v45, %v229
  %v255 = vadd.f32 %v46, %v233
  %v256 = vadd.f32 %v47, %v235
  %v257 = vadd.f32 %v48, %v239
  %v258 = vadd.f32 %v49, %v241
  %259 = vst [vmem:[#allocation2] sm:$0xff] %v243
  %260 = vst [vmem:[#allocation2 + $0x8] sm:$0xff] %v244
  %261 = vst [vmem:[#allocation2 + $0x10] sm:$0xff] %v245
  %262 = vst [vmem:[#allocation2 + $0x18] sm:$0xff] %v246
  %263 = vst [vmem:[#allocation2 + $0x20] sm:$0xff] %v247
  %264 = vst [vmem:[#allocation2 + $0x28] sm:$0xff] %v248
  %265 = vst [vmem:[#allocation2 + $0x30] sm:$0xff] %v249
  %266 = vst [vmem:[#allocation2 + $0x38] sm:$0xff] %v250
  %267 = vst [vmem:[#allocation2 + $0x40] sm:$0xff] %v251
  %268 = vst [vmem:[#allocation2 + $0x48] sm:$0xff] %v252
  %269 = vst [vmem:[#allocation2 + $0x50] sm:$0xff] %v253
  %270 = vst [vmem:[#allocation2 + $0x58] sm:$0xff] %v254
  %271 = vst [vmem:[#allocation2 + $0x60] sm:$0xff] %v255
  %272 = vst [vmem:[#allocation2 + $0x68] sm:$0xff] %v256
  %273 = vst [vmem:[#allocation2 + $0x70] sm:$0xff] %v257
  %274 = vst [vmem:[#allocation2 + $0x78] sm:$0xff] %v258
  // Predicated region
  $region18: #{block_forward.7} parent=0 // pred_check
    %p275 = pneg %p14
  $region19: #{block_forward.7} parent=0 // pred_check_branch
    %277 = sbr.rel (%p275) target = $region21
  $region20: #{block_forward.7} parent=0 // pred_region
    %v278 = vld [vmem:[#allocation2] sm:$0xff]
    %v279 = vld [vmem:[#allocation2 + $0x8] sm:$0xff]
    %v280 = vld [vmem:[#allocation2 + $0x10] sm:$0xff]
    %v281 = vld [vmem:[#allocation2 + $0x18] sm:$0xff]
    %v282 = vld [vmem:[#allocation2 + $0x20] sm:$0xff]
    %v283 = vld [vmem:[#allocation2 + $0x28] sm:$0xff]
    %v284 = vld [vmem:[#allocation2 + $0x30] sm:$0xff]
    %v285 = vld [vmem:[#allocation2 + $0x38] sm:$0xff]
    %v286 = vld [vmem:[#allocation2 + $0x40] sm:$0xff]
    %v287 = vld [vmem:[#allocation2 + $0x48] sm:$0xff]
    %v288 = vld [vmem:[#allocation2 + $0x50] sm:$0xff]
    %v289 = vld [vmem:[#allocation2 + $0x58] sm:$0xff]
    %v290 = vld [vmem:[#allocation2 + $0x60] sm:$0xff]
    %v291 = vld [vmem:[#allocation2 + $0x68] sm:$0xff]
    %v292 = vld [vmem:[#allocation2 + $0x70] sm:$0xff]
    %v293 = vld [vmem:[#allocation2 + $0x78] sm:$0xff]
    %v294 = vld [vmem:[%s2] sm:$0xff]
    %v295 = vld [vmem:[%s2 + $0x8] sm:$0xff]
    %v296 = vld [vmem:[%s2 + $0x10] sm:$0xff]
    %v297 = vld [vmem:[%s2 + $0x18] sm:$0xff]
    %v298 = vld [vmem:[%s2 + $0x20] sm:$0xff]
    %v299 = vld [vmem:[%s2 + $0x28] sm:$0xff]
    %v300 = vld [vmem:[%s2 + $0x30] sm:$0xff]
    %v301 = vld [vmem:[%s2 + $0x38] sm:$0xff]
    %v302 = vld [vmem:[%s2 + $0x40] sm:$0xff]
    %v303 = vld [vmem:[%s2 + $0x48] sm:$0xff]
    %v304 = vld [vmem:[%s2 + $0x50] sm:$0xff]
    %v305 = vld [vmem:[%s2 + $0x58] sm:$0xff]
    %v306 = vld [vmem:[%s2 + $0x60] sm:$0xff]
    %v307 = vld [vmem:[%s2 + $0x68] sm:$0xff]
    %v308 = vld [vmem:[%s2 + $0x70] sm:$0xff]
    %v309 = vld [vmem:[%s2 + $0x78] sm:$0xff]
    %v310 = vadd.f32 %v278, %v294
    %v311 = vadd.f32 %v279, %v295
    %v312 = vadd.f32 %v280, %v296
    %v313 = vadd.f32 %v281, %v297
    %v314 = vadd.f32 %v282, %v298
    %v315 = vadd.f32 %v283, %v299
    %v316 = vadd.f32 %v284, %v300
    %v317 = vadd.f32 %v285, %v301
    %v318 = vadd.f32 %v286, %v302
    %v319 = vadd.f32 %v287, %v303
    %v320 = vadd.f32 %v288, %v304
    %v321 = vadd.f32 %v289, %v305
    %v322 = vadd.f32 %v290, %v306
    %v323 = vadd.f32 %v291, %v307
    %v324 = vadd.f32 %v292, %v308
    %v325 = vadd.f32 %v293, %v309
    %326 = vst [vmem:[%s3] sm:$0xff] %v310
    %327 = vst [vmem:[%s3 + $0x8] sm:$0xff] %v311
    %328 = vst [vmem:[%s3 + $0x10] sm:$0xff] %v312
    %329 = vst [vmem:[%s3 + $0x18] sm:$0xff] %v313
    %330 = vst [vmem:[%s3 + $0x20] sm:$0xff] %v314
    %331 = vst [vmem:[%s3 + $0x28] sm:$0xff] %v315
    %332 = vst [vmem:[%s3 + $0x30] sm:$0xff] %v316
    %333 = vst [vmem:[%s3 + $0x38] sm:$0xff] %v317
    %334 = vst [vmem:[%s3 + $0x40] sm:$0xff] %v318
    %335 = vst [vmem:[%s3 + $0x48] sm:$0xff] %v319
    %336 = vst [vmem:[%s3 + $0x50] sm:$0xff] %v320
    %337 = vst [vmem:[%s3 + $0x58] sm:$0xff] %v321
    %338 = vst [vmem:[%s3 + $0x60] sm:$0xff] %v322
    %339 = vst [vmem:[%s3 + $0x68] sm:$0xff] %v323
    %340 = vst [vmem:[%s3 + $0x70] sm:$0xff] %v324
    %341 = vst [vmem:[%s3 + $0x78] sm:$0xff] %v325
  $region21: #{block_forward.7} parent=0 // pred_fallthru
    _
  // Predicated region
  $region22: #{block_forward.7} parent=0 // pred_check
    _
  $region23: #{block_forward.7} parent=0 // pred_check_branch
    %343 = sbr.rel (0) target = $region25
  $region24: #{block_forward.7} parent=0 // pred_region
    _
  $region25: #{block_forward.7} parent=0 // pred_fallthru
    _
  // Predicated region
  $region26: #{block_forward.7} parent=0 // pred_check
    _
  $region27: #{block_forward.7} parent=0 // pred_check_branch
    %345 = sbr.rel (0) target = $region29
  $region28: #{block_forward.7} parent=0 // pred_region
    _
  $region29: #{block_forward.7} parent=0 // pred_fallthru
    _

// kernel: block_forward.9
$region0: #{block_forward.9}
  #allocation0 [shape = 'u32[]', space=smem, size = 0x4, offset = 0x4, fixed_abs, tag = 'smem constant byte address 0x4 - core index']
  #allocation1 [shape = 'u32[144,128]{1,0:T(1,128)}', space=vmem, size = 0x12000, scoped, tag = 'internal scratch']
  #allocation2 [shape = 'f32[64,256]{1,0:T(8,128)}', space=vmem, size = 0x10000, scoped, tag = 'scratch operand']
  %s0 = inlined_call_operand.vmem [shape: f32[64,1024], index: 0, kind: input, shape index: {}]
  %s1 = inlined_call_operand.vmem [shape: f32[1024,256], index: 1, kind: input, shape index: {}]
  %s2 = inlined_call_operand.vmem [shape: f32[64,256], index: 2, kind: input, shape index: {}]
  %s3 = inlined_call_operand.hbm [shape: f32[64,256], index: 3, kind: output, shape index: {}]
  %s4 = sld [smem:[#allocation0]]
  $region76: #{block_forward.9} parent=0
    _
  %s6 = ssub.s32 1, %s4
  %s7 = scalar_select 0, %s6, %s4
  $region1: #{block_forward.9} parent=0
    #allocation3 [shape = 'u8[262144]{0}', space=vmem, size = 0x40000, scoped, tag = 'input window, operand 0']
    #allocation4 [shape = 'u8[65536]{0}', space=vmem, size = 0x10000, scoped, tag = 'output window, operand 0, single buffered']
    #allocation5 [shape = 's32[2]{0}', space=sflag, size = 0x8, scoped, tag = 'scoped memory for block_forward.9']
    %8 = vsyncpa [#allocation5], 0
    loop: start=0, step=1, limit=4
    $region2: #{block_forward.9} parent=1 // loop_pre_header
      _
    $region3: #{block_forward.9} parent=1 // loop_header
      %s10 = sphi 0, %s14
      %p11 = scmp.ge.s32.totalorder %s10, 4
      %s17 = sphi 0, %s36
      %s18 = sphi 0, %s32
      %s19 = sphi 0, %s28
      %s20 = sphi 0, %s17
      %s21 = sphi 0, %s18
      %s22 = sphi 0, %s19
      %s23 = sphi 0, %s20
      %s24 = sphi 0, %s21
      %s25 = sphi 0, %s22
      %s41 = sphi 0, %s43
      %s44 = sphi 0, %s41
      %s45 = sphi 0, %s44
      %s61 = sphi 0, %s45
      %s69 = sphi 0, %s71
      %s72 = sphi 0, %s69
      %s73 = sphi 0, %s72
      %s89 = sphi 0, %s73
      %s97 = sphi 0, %s99
      %s100 = sphi 0, %s97
      %s101 = sphi 0, %s100
      %s117 = sphi 0, %s101
      %s125 = sphi 0, %s127
      %s128 = sphi 0, %s125
      %s129 = sphi 0, %s128
      %s145 = sphi 0, %s129
    $region4: #{block_forward.9} parent=1 // loop_header_branch
      %13 = sbr.rel (%p11) target = $region8
    $region5: #{block_forward.9} parent=1 // loop_body
      %s15 = ssub.s32 %s10, 1
      %s16 = ssub.s32 %s10, 2
      %s26 = sadd.s32 1, %s19
      %p27 = scmp.ge.s32.totalorder %s26, 2
      %s28 = scalar_select %p27, 0, %s26
      %s29 = sadd.s32 1, %s18
      %s30 = scalar_select %p27, %s29, %s18
      %p31 = scmp.ge.s32.totalorder %s30, 1
      %s32 = scalar_select %p31, 0, %s30
      %s33 = sadd.s32 1, %s17
      %s34 = scalar_select %p31, %s33, %s17
      %p35 = scmp.ge.s32.totalorder %s34, 1
      %s36 = scalar_select %p35, 0, %s34
      %s37 = ssub.s32 %s17, %s36
      %s38 = ssub.s32 %s19, %s28
      %s39 = sor.u32 %s37, %s38
      %p40 = scmp.eq.s32.totalorder %s39, 0
      %s42 = sadd.s32 %s41, 1
      %s43 = scalar_select %p40, %s41, %s42
      %p46 = pneg %p40
      %p47 = scmp.eq.s32.totalorder %s10, 1
      %p48 = por %p46, %p47
      %p49 = scmp.ne.s32.totalorder %s41, %s44
      %p50 = scmp.eq.s32.totalorder %s10, 0
      %p51 = por %p49, %p50
      %p52 = scmp.ne.s32.totalorder %s41, %s44
      %p53 = scmp.eq.s32.totalorder %s15, 1
      %p54 = por %p52, %p53
      %p55 = scmp.ne.s32.totalorder %s44, %s45
      %p56 = scmp.eq.s32.totalorder %s15, 0
      %p57 = por %p55, %p56
      %p58 = scmp.ne.s32.totalorder %s44, %s45
      %p59 = scmp.eq.s32.totalorder %s16, 1
      %p60 = por %p58, %p59
      %p62 = scmp.ne.s32.totalorder %s45, %s61
      %p63 = scmp.eq.s32.totalorder %s16, 0
      %p64 = por %p62, %p63
      %s65 = ssub.s32 %s19, %s28
      %s66 = ssub.s32 %s18, %s32
      %s67 = sor.u32 %s65, %s66
      %p68 = scmp.eq.s32.totalorder %s67, 0
      %s70 = sadd.s32 %s69, 1
      %s71 = scalar_select %p68, %s69, %s70
      %p74 = pneg %p68
      %p75 = scmp.eq.s32.totalorder %s10, 1
      %p76 = por %p74, %p75
      %p77 = scmp.ne.s32.totalorder %s69, %s72
      %p78 = scmp.eq.s32.totalorder %s10, 0
      %p79 = por %p77, %p78
      %p80 = scmp.ne.s32.totalorder %s69, %s72
      %p81 = scmp.eq.s32.totalorder %s15, 1
      %p82 = por %p80, %p81
      %p83 = scmp.ne.s32.totalorder %s72, %s73
      %p84 = scmp.eq.s32.totalorder %s15, 0
      %p85 = por %p83, %p84
      %p86 = scmp.ne.s32.totalorder %s72, %s73
      %p87 = scmp.eq.s32.totalorder %s16, 1
      %p88 = por %p86, %p87
      %p90 = scmp.ne.s32.totalorder %s73, %s89
      %p91 = scmp.eq.s32.totalorder %s16, 0
      %p92 = por %p90, %p91
      %s93 = ssub.s32 %s17, %s36
      %s94 = ssub.s32 %s18, %s32
      %s95 = sor.u32 %s93, %s94
      %p96 = scmp.eq.s32.totalorder %s95, 0
      %s98 = sadd.s32 %s97, 1
      %s99 = scalar_select %p96, %s97, %s98
      %p102 = pneg %p96
      %p103 = scmp.eq.s32.totalorder %s10, 1
      %p104 = por %p102, %p103
      %p105 = scmp.ne.s32.totalorder %s97, %s100
      %p106 = scmp.eq.s32.totalorder %s10, 0
      %p107 = por %p105, %p106
      %p108 = scmp.ne.s32.totalorder %s97, %s100
      %p109 = scmp.eq.s32.totalorder %s15, 1
      %p110 = por %p108, %p109
      %p111 = scmp.ne.s32.totalorder %s100, %s101
      %p112 = scmp.eq.s32.totalorder %s15, 0
      %p113 = por %p111, %p112
      %p114 = scmp.ne.s32.totalorder %s100, %s101
      %p115 = scmp.eq.s32.totalorder %s16, 1
      %p116 = por %p114, %p115
      %p118 = scmp.ne.s32.totalorder %s101, %s117
      %p119 = scmp.eq.s32.totalorder %s16, 0
      %p120 = por %p118, %p119
      %s121 = ssub.s32 %s17, %s36
      %s122 = ssub.s32 %s18, %s32
      %s123 = sor.u32 %s121, %s122
      %p124 = scmp.eq.s32.totalorder %s123, 0
      %s126 = sadd.s32 %s125, 1
      %s127 = scalar_select %p124, %s125, %s126
      %p130 = pneg %p124
      %p131 = scmp.eq.s32.totalorder %s10, 1
      %p132 = por %p130, %p131
      %p133 = scmp.ne.s32.totalorder %s125, %s128
      %p134 = scmp.eq.s32.totalorder %s10, 0
      %p135 = por %p133, %p134
      %p136 = scmp.ne.s32.totalorder %s125, %s128
      %p137 = scmp.eq.s32.totalorder %s15, 1
      %p138 = por %p136, %p137
      %p139 = scmp.ne.s32.totalorder %s128, %s129
      %p140 = scmp.eq.s32.totalorder %s15, 0
      %p141 = por %p139, %p140
      %p142 = scmp.ne.s32.totalorder %s128, %s129
      %p143 = scmp.eq.s32.totalorder %s16, 1
      %p144 = por %p142, %p143
      %p146 = scmp.ne.s32.totalorder %s129, %s145
      %p147 = scmp.eq.s32.totalorder %s16, 0
      %p148 = por %p146, %p147
      %p149 = scmp.le.s32.totalorder 1, %s10
      %p150 = scmp.lt.s32.totalorder %s10, 3
      %p151 = pnand %p149, %p150
      %p152 = pneg %p151
      // Predicated region
      $region9: #{block_forward.9} parent=5 // pred_check
        _
      $region10: #{block_forward.9} parent=5 // pred_check_branch
        %154 = sbr.rel (%p151) target = $region12
      $region11: #{block_forward.9} parent=5 // pred_region
        %s155 = ssub.s32 %s10, 1
        // Predicated region
        $region13: #{block_forward.9} parent=11 // pred_check
          %p156 = pneg %p113
        $region14: #{block_forward.9} parent=11 // pred_check_branch
          %158 = sbr.rel (%p156) target = $region16
        $region15: #{block_forward.9} parent=11 // pred_region
          %s159 = smul.u32 8, %s20
          %s160 = smul.u32 2, %s21
          %p161 = scmp.lt.s32.totalorder %s159, 7
          %s162 = scalar_select %p161, %s159, 7
          %p163 = scmp.lt.s32.totalorder %s160, 1
          %s164 = scalar_select %p163, %s160, 1
          %s165 = smul.addr %s162, 2
          %s166 = sadd.s32 %s164, %s165
          %s167 = smul.addr %s166, 8
          %s168 = scalar_lea.vmem %s2, %s167
          %s169 = smul.u32 8, %s20
          %s170 = smul.u32 2, %s21
        $region16: #{block_forward.9} parent=11 // pred_fallthru
          _
      $region12: #{block_forward.9} parent=5 // pred_fallthru
        _
      %p171 = scmp.lt.s32.totalorder %s10, 2
      // Predicated region
      $region17: #{block_forward.9} parent=5 // pred_check
        %p172 = pneg %p171
      $region18: #{block_forward.9} parent=5 // pred_check_branch
        %174 = sbr.rel (%p172) target = $region20
      $region19: #{block_forward.9} parent=5 // pred_region
        // Predicated region
        $region21: #{block_forward.9} parent=19 // pred_check
          %p175 = pneg %p51
        $region22: #{block_forward.9} parent=19 // pred_check_branch
          %177 = sbr.rel (%p175) target = $region24
        $region23: #{block_forward.9} parent=19 // pred_region
          %s178 = sand.u32 %s41, 1
          %s179 = sand.u32 %s41, 1
          %s180 = smul.addr %s179, 256
          %s181 = scalar_lea.vmem [#allocation3], %s180
          %s182 = smul.u32 8, %s17
          %s183 = smul.u32 4, %s19
          %s184 = smul.addr %s182, 8
          %s185 = sadd.s32 %s183, %s184
          %s186 = smul.addr %s185, 8
          %s187 = scalar_lea.vmem %s0, %s186
          // Predicated region
          $region25: #{block_forward.9} parent=23 // pred_check
            _
          $region26: #{block_forward.9} parent=23 // pred_check_branch
            %189 = sbr.rel (0) target = $region28
          $region27: #{block_forward.9} parent=23 // pred_region
            // Predicated region
            $region29: #{block_forward.9} parent=27 // pred_check
              _
            $region30: #{block_forward.9} parent=27 // pred_check_branch
              %191 = sbr.rel (0) target = $region32
            $region31: #{block_forward.9} parent=27 // pred_region
              loop: start=0, step=1, limit=1
              $region33: #{block_forward.9} parent=31 // loop_pre_header
                _
              $region34: #{block_forward.9} parent=31 // loop_header
                %s193 = sphi 0, %s197
                %p194 = scmp.ge.s32.totalorder %s193, 1
                %s198 = sphi %s187, %s187
                %s199 = sphi %s181, %s181
              $region35: #{block_forward.9} parent=31 // loop_header_branch
                %196 = sbr.rel (%p194) target = $region39
              $region36: #{block_forward.9} parent=31 // loop_body
                %v200 = vld [vmem:[%s198] sm:$0xff]
                %201 = vst [vmem:[%s199] sm:$0xff] %v200
                %v202 = vld [vmem:[%s198 + $0x8] sm:$0xff]
                %203 = vst [vmem:[%s199 + $0x8] sm:$0xff] %v202
                %v204 = vld [vmem:[%s198 + $0x10] sm:$0xff]
                %205 = vst [vmem:[%s199 + $0x10] sm:$0xff] %v204
                %v206 = vld [vmem:[%s198 + $0x18] sm:$0xff]
                %207 = vst [vmem:[%s199 + $0x18] sm:$0xff] %v206
                %v208 = vld [vmem:[%s198 + $0x40] sm:$0xff]
                %209 = vst [vmem:[%s199 + $0x20] sm:$0xff] %v208
                %v210 = vld [vmem:[%s198 + $0x48] sm:$0xff]
                %211 = vst [vmem:[%s199 + $0x28] sm:$0xff] %v210
                %v212 = vld [vmem:[%s198 + $0x50] sm:$0xff]
                %213 = vst [vmem:[%s199 + $0x30] sm:$0xff] %v212
                %v214 = vld [vmem:[%s198 + $0x58] sm:$0xff]
                %215 = vst [vmem:[%s199 + $0x38] sm:$0xff] %v214
                %v216 = vld [vmem:[%s198 + $0x80] sm:$0xff]
                %217 = vst [vmem:[%s199 + $0x40] sm:$0xff] %v216
                %v218 = vld [vmem:[%s198 + $0x88] sm:$0xff]
                %219 = vst [vmem:[%s199 + $0x48] sm:$0xff] %v218
                %v220 = vld [vmem:[%s198 + $0x90] sm:$0xff]
                %221 = vst [vmem:[%s199 + $0x50] sm:$0xff] %v220
                %v222 = vld [vmem:[%s198 + $0x98] sm:$0xff]
                %223 = vst [vmem:[%s199 + $0x58] sm:$0xff] %v222
                %v224 = vld [vmem:[%s198 + $0xc0] sm:$0xff]
                %225 = vst [vmem:[%s199 + $0x60] sm:$0xff] %v224
                %v226 = vld [vmem:[%s198 + $0xc8] sm:$0xff]
                %227 = vst [vmem:[%s199 + $0x68] sm:$0xff] %v226
                %v228 = vld [vmem:[%s198 + $0xd0] sm:$0xff]
                %229 = vst [vmem:[%s199 + $0x70] sm:$0xff] %v228
                %v230 = vld [vmem:[%s198 + $0xd8] sm:$0xff]
                %231 = vst [vmem:[%s199 + $0x78] sm:$0xff] %v230
                %v232 = vld [vmem:[%s198 + $0x100] sm:$0xff]
                %233 = vst [vmem:[%s199 + $0x80] sm:$0xff] %v232
                %v234 = vld [vmem:[%s198 + $0x108] sm:$0xff]
                %235 = vst [vmem:[%s199 + $0x88] sm:$0xff] %v234
                %v236 = vld [vmem:[%s198 + $0x110] sm:$0xff]
                %237 = vst [vmem:[%s199 + $0x90] sm:$0xff] %v236
                %v238 = vld [vmem:[%s198 + $0x118] sm:$0xff]
                %239 = vst [vmem:[%s199 + $0x98] sm:$0xff] %v238
                %v240 = vld [vmem:[%s198 + $0x140] sm:$0xff]
                %241 = vst [vmem:[%s199 + $0xa0] sm:$0xff] %v240
                %v242 = vld [vmem:[%s198 + $0x148] sm:$0xff]
                %243 = vst [vmem:[%s199 + $0xa8] sm:$0xff] %v242
                %v244 = vld [vmem:[%s198 + $0x150] sm:$0xff]
                %245 = vst [vmem:[%s199 + $0xb0] sm:$0xff] %v244
                %v246 = vld [vmem:[%s198 + $0x158] sm:$0xff]
                %247 = vst [vmem:[%s199 + $0xb8] sm:$0xff] %v246
                %v248 = vld [vmem:[%s198 + $0x180] sm:$0xff]
                %249 = vst [vmem:[%s199 + $0xc0] sm:$0xff] %v248
                %v250 = vld [vmem:[%s198 + $0x188] sm:$0xff]
                %251 = vst [vmem:[%s199 + $0xc8] sm:$0xff] %v250
                %v252 = vld [vmem:[%s198 + $0x190] sm:$0xff]
                %253 = vst [vmem:[%s199 + $0xd0] sm:$0xff] %v252
                %v254 = vld [vmem:[%s198 + $0x198] sm:$0xff]
                %255 = vst [vmem:[%s199 + $0xd8] sm:$0xff] %v254
                %v256 = vld [vmem:[%s198 + $0x1c0] sm:$0xff]
                %257 = vst [vmem:[%s199 + $0xe0] sm:$0xff] %v256
                %v258 = vld [vmem:[%s198 + $0x1c8] sm:$0xff]
                %259 = vst [vmem:[%s199 + $0xe8] sm:$0xff] %v258
                %v260 = vld [vmem:[%s198 + $0x1d0] sm:$0xff]
                %261 = vst [vmem:[%s199 + $0xf0] sm:$0xff] %v260
                %v262 = vld [vmem:[%s198 + $0x1d8] sm:$0xff]
                %263 = vst [vmem:[%s199 + $0xf8] sm:$0xff] %v262
              $region37: #{block_forward.9} parent=31 // loop_footer
                %s197 = sadd.s32 1, %s193
              $region38: #{block_forward.9} parent=31 // loop_footer_branch
                %192 = sbr.rel target = $region34
              $region39: #{block_forward.9} parent=31 // loop_exit
                _
            $region32: #{block_forward.9} parent=27 // pred_fallthru
              _
            // Predicated region
            $region40: #{block_forward.9} parent=27 // pred_check
              _
            $region41: #{block_forward.9} parent=27 // pred_check_branch
              %265 = sbr.rel target = $region43
            $region42: #{block_forward.9} parent=27 // pred_region
              _
            $region43: #{block_forward.9} parent=27 // pred_fallthru
              _
          $region28: #{block_forward.9} parent=23 // pred_fallthru
            _
          %266 = vnop
        $region24: #{block_forward.9} parent=19 // pred_fallthru
          _
        // Predicated region
        $region44: #{block_forward.9} parent=19 // pred_check
          %p267 = pneg %p79
        $region45: #{block_forward.9} parent=19 // pred_check_branch
          %269 = sbr.rel (%p267) target = $region47
        $region46: #{block_forward.9} parent=19 // pred_region
          %s270 = smul.u32 64, %s19
          %s271 = smul.u32 2, %s18
          %p272 = scmp.lt.s32.totalorder %s270, 127
          %s273 = scalar_select %p272, %s270, 127
          %p274 = scmp.lt.s32.totalorder %s271, 1
          %s275 = scalar_select %p274, %s271, 1
          %s276 = smul.addr %s273, 2
          %s277 = sadd.s32 %s275, %s276
          %s278 = smul.addr %s277, 8
          %s279 = scalar_lea.vmem %s1, %s278
          %s280 = smul.u32 64, %s19
          %s281 = smul.u32 2, %s18
        $region47: #{block_forward.9} parent=19 // pred_fallthru
          _
      $region20: #{block_forward.9} parent=5 // pred_fallthru
        _
      %p282 = scmp.le.s32.totalorder 1, %s10
      %p283 = scmp.lt.s32.totalorder %s10, 3
      %p284 = pnand %p282, %p283
      %p285 = pneg %p284
      // Predicated region
      $region48: #{block_forward.9} parent=5 // pred_check
        _
      $region49: #{block_forward.9} parent=5 // pred_check_branch
        %287 = sbr.rel (%p284) target = $region51
      $region50: #{block_forward.9} parent=5 // pred_region
        %s288 = ssub.s32 %s10, 1
        %s289 = sand.u32 %s44, 1
        %s290 = sand.u32 %s44, 1
        %s291 = smul.addr %s290, 256
        %s292 = scalar_lea.vmem [#allocation3], %s291
        // Predicated region
        $region52: #{block_forward.9} parent=50 // pred_check
          %p293 = pneg %p57
        $region53: #{block_forward.9} parent=50 // pred_check_branch
          %295 = sbr.rel (%p293) target = $region55
        $region54: #{block_forward.9} parent=50 // pred_region
          _
        $region55: #{block_forward.9} parent=50 // pred_fallthru
          _
        %s296 = sand.u32 %s44, 1
        %s297 = sand.u32 %s44, 1
        %s298 = smul.addr %s297, 256
        %s299 = scalar_lea.vmem [#allocation3], %s298
        %p300 = pneg %p57
        %p301 = pneg %p54
        %s302 = smul.u32 64, %s22
        %s303 = smul.u32 2, %s21
        %p304 = scmp.lt.s32.totalorder %s302, 127
        %s305 = scalar_select %p304, %s302, 127
        %p306 = scmp.lt.s32.totalorder %s303, 1
        %s307 = scalar_select %p306, %s303, 1
        %s308 = smul.addr %s305, 2
        %s309 = sadd.s32 %s307, %s308
        %s310 = smul.addr %s309, 8
        %s311 = scalar_lea.vmem %s1, %s310
        %p312 = pneg %p85
        %p313 = pneg %p82
        %s314 = smul.u32 8, %s20
        %s315 = smul.u32 2, %s21
        %p316 = scmp.lt.s32.totalorder %s314, 7
        %s317 = scalar_select %p316, %s314, 7
        %p318 = scmp.lt.s32.totalorder %s315, 1
        %s319 = scalar_select %p318, %s315, 1
        %s320 = smul.addr %s317, 2
        %s321 = sadd.s32 %s319, %s320
        %s322 = smul.addr %s321, 8
        %s323 = scalar_lea.vmem %s2, %s322
        %p324 = pneg %p113
        %p325 = pneg %p110
        %p326 = pneg %p141
        %p327 = pneg %p138
        %s328 = smul.u32 8, %s20
        %s329 = smul.u32 4, %s22
        %s330 = smul.u32 64, %s22
        %s331 = smul.u32 2, %s21
        %p332 = scmp.lt.s32.totalorder %s330, 127
        %s333 = scalar_select %p332, %s330, 127
        %p334 = scmp.lt.s32.totalorder %s331, 1
        %s335 = scalar_select %p334, %s331, 1
        %s336 = smul.addr %s333, 2
        %s337 = sadd.s32 %s335, %s336
        %s338 = smul.addr %s337, 8
        %s339 = scalar_lea.vmem %s1, %s338
        %s340 = smul.u32 64, %s22
        %s341 = smul.u32 2, %s21
        %s342 = smul.u32 8, %s20
        %s343 = smul.u32 2, %s21
        %p344 = scmp.lt.s32.totalorder %s342, 7
        %s345 = scalar_select %p344, %s342, 7
        %p346 = scmp.lt.s32.totalorder %s343, 1
        %s347 = scalar_select %p346, %s343, 1
        %s348 = smul.addr %s345, 2
        %s349 = sadd.s32 %s347, %s348
        %s350 = smul.addr %s349, 8
        %s351 = scalar_lea.vmem %s2, %s350
        %s352 = smul.u32 8, %s20
        %s353 = smul.u32 2, %s21
        %s354 = smul.u32 8, %s20
        %s355 = smul.u32 2, %s21
        %p356 = scmp.eq.s32.totalorder %s22, 0
        // Predicated region
        $region56: #{block_forward.9} parent=50 // pred_check
          %p357 = pneg %p356
        $region57: #{block_forward.9} parent=50 // pred_check_branch
          %359 = sbr.rel (%p357) target = $region59
        $region58: #{block_forward.9} parent=50 // pred_region
          %360 = vst [vmem:[#allocation2] sm:$0xff] 0.0
          %361 = vst [vmem:[#allocation2 + $0x8] sm:$0xff] 0.0
          %362 = vst [vmem:[#allocation2 + $0x10] sm:$0xff] 0.0
          %363 = vst [vmem:[#allocation2 + $0x18] sm:$0xff] 0.0
          %364 = vst [vmem:[#allocation2 + $0x20] sm:$0xff] 0.0
          %365 = vst [vmem:[#allocation2 + $0x28] sm:$0xff] 0.0
          %366 = vst [vmem:[#allocation2 + $0x30] sm:$0xff] 0.0
          %367 = vst [vmem:[#allocation2 + $0x38] sm:$0xff] 0.0
          %368 = vst [vmem:[#allocation2 + $0x40] sm:$0xff] 0.0
          %369 = vst [vmem:[#allocation2 + $0x48] sm:$0xff] 0.0
          %370 = vst [vmem:[#allocation2 + $0x50] sm:$0xff] 0.0
          %371 = vst [vmem:[#allocation2 + $0x58] sm:$0xff] 0.0
          %372 = vst [vmem:[#allocation2 + $0x60] sm:$0xff] 0.0
          %373 = vst [vmem:[#allocation2 + $0x68] sm:$0xff] 0.0
          %374 = vst [vmem:[#allocation2 + $0x70] sm:$0xff] 0.0
          %375 = vst [vmem:[#allocation2 + $0x78] sm:$0xff] 0.0
        $region59: #{block_forward.9} parent=50 // pred_fallthru
          _
        %v376 = vld [vmem:[#allocation2] sm:$0xff]
        %v377 = vld [vmem:[#allocation2 + $0x8] sm:$0xff]
        %v378 = vld [vmem:[#allocation2 + $0x10] sm:$0xff]
        %v379 = vld [vmem:[#allocation2 + $0x18] sm:$0xff]
        %v380 = vld [vmem:[#allocation2 + $0x20] sm:$0xff]
        %v381 = vld [vmem:[#allocation2 + $0x28] sm:$0xff]
        %v382 = vld [vmem:[#allocation2 + $0x30] sm:$0xff]
        %v383 = vld [vmem:[#allocation2 + $0x38] sm:$0xff]
        %v384 = vld [vmem:[#allocation2 + $0x40] sm:$0xff]
        %v385 = vld [vmem:[#allocation2 + $0x48] sm:$0xff]
        %v386 = vld [vmem:[#allocation2 + $0x50] sm:$0xff]
        %v387 = vld [vmem:[#allocation2 + $0x58] sm:$0xff]
        %v388 = vld [vmem:[#allocation2 + $0x60] sm:$0xff]
        %v389 = vld [vmem:[#allocation2 + $0x68] sm:$0xff]
        %v390 = vld [vmem:[#allocation2 + $0x70] sm:$0xff]
        %v391 = vld [vmem:[#allocation2 + $0x78] sm:$0xff]
        %v392 = vld [vmem:[%s292] sm:$0xff]
        %v393 = vld [vmem:[%s292 + $0x8] sm:$0xff]
        %v394 = vld [vmem:[%s292 + $0x10] sm:$0xff]
        %v395 = vld [vmem:[%s292 + $0x18] sm:$0xff]
        %v396 = vld [vmem:[%s292 + $0x20] sm:$0xff]
        %v397 = vld [vmem:[%s292 + $0x28] sm:$0xff]
        %v398 = vld [vmem:[%s292 + $0x30] sm:$0xff]
        %v399 = vld [vmem:[%s292 + $0x38] sm:$0xff]
        %v400 = vld [vmem:[%s292 + $0x40] sm:$0xff]
        %v401 = vld [vmem:[%s292 + $0x48] sm:$0xff]
        %v402 = vld [vmem:[%s292 + $0x50] sm:$0xff]
        %v403 = vld [vmem:[%s292 + $0x58] sm:$0xff]
        %v404 = vld [vmem:[%s292 + $0x60] sm:$0xff]
        %v405 = vld [vmem:[%s292 + $0x68] sm:$0xff]
        %v406 = vld [vmem:[%s292 + $0x70] sm:$0xff]
        %v407 = vld [vmem:[%s292 + $0x78] sm:$0xff]
        %v408 = vld [vmem:[%s292 + $0x80] sm:$0xff]
        %v409 = vld [vmem:[%s292 + $0x88] sm:$0xff]
        %v410 = vld [vmem:[%s292 + $0x90] sm:$0xff]
        %v411 = vld [vmem:[%s292 + $0x98] sm:$0xff]
        %v412 = vld [vmem:[%s292 + $0xa0] sm:$0xff]
        %v413 = vld [vmem:[%s292 + $0xa8] sm:$0xff]
        %v414 = vld [vmem:[%s292 + $0xb0] sm:$0xff]
        %v415 = vld [vmem:[%s292 + $0xb8] sm:$0xff]
        %v416 = vld [vmem:[%s292 + $0xc0] sm:$0xff]
        %v417 = vld [vmem:[%s292 + $0xc8] sm:$0xff]
        %v418 = vld [vmem:[%s292 + $0xd0] sm:$0xff]
        %v419 = vld [vmem:[%s292 + $0xd8] sm:$0xff]
        %v420 = vld [vmem:[%s292 + $0xe0] sm:$0xff]
        %v421 = vld [vmem:[%s292 + $0xe8] sm:$0xff]
        %v422 = vld [vmem:[%s292 + $0xf0] sm:$0xff]
        %v423 = vld [vmem:[%s292 + $0xf8] sm:$0xff]
        %v424 = vld [vmem:[%s339] sm:$0xff]
        %v425 = vld [vmem:[%s339 + $0x8] sm:$0xff]
        %v426 = vld [vmem:[%s339 + $0x10] sm:$0xff]
        %v427 = vld [vmem:[%s339 + $0x18] sm:$0xff]
        %v428 = vld [vmem:[%s339 + $0x20] sm:$0xff]
        %v429 = vld [vmem:[%s339 + $0x28] sm:$0xff]
        %v430 = vld [vmem:[%s339 + $0x30] sm:$0xff]
        %v431 = vld [vmem:[%s339 + $0x38] sm:$0xff]
        %v432 = vld [vmem:[%s339 + $0x40] sm:$0xff]
        %v433 = vld [vmem:[%s339 + $0x48] sm:$0xff]
        %v434 = vld [vmem:[%s339 + $0x50] sm:$0xff]
        %v435 = vld [vmem:[%s339 + $0x58] sm:$0xff]
        %v436 = vld [vmem:[%s339 + $0x60] sm:$0xff]
        %v437 = vld [vmem:[%s339 + $0x68] sm:$0xff]
        %v438 = vld [vmem:[%s339 + $0x70] sm:$0xff]
        %v439 = vld [vmem:[%s339 + $0x78] sm:$0xff]
        %v440 = vld [vmem:[%s339 + $0x80] sm:$0xff]
        %v441 = vld [vmem:[%s339 + $0x88] sm:$0xff]
        %v442 = vld [vmem:[%s339 + $0x90] sm:$0xff]
        %v443 = vld [vmem:[%s339 + $0x98] sm:$0xff]
        %v444 = vld [vmem:[%s339 + $0xa0] sm:$0xff]
        %v445 = vld [vmem:[%s339 + $0xa8] sm:$0xff]
        %v446 = vld [vmem:[%s339 + $0xb0] sm:$0xff]
        %v447 = vld [vmem:[%s339 + $0xb8] sm:$0xff]
        %v448 = vld [vmem:[%s339 + $0xc0] sm:$0xff]
        %v449 = vld [vmem:[%s339 + $0xc8] sm:$0xff]
        %v450 = vld [vmem:[%s339 + $0xd0] sm:$0xff]
        %v451 = vld [vmem:[%s339 + $0xd8] sm:$0xff]
        %v452 = vld [vmem:[%s339 + $0xe0] sm:$0xff]
        %v453 = vld [vmem:[%s339 + $0xe8] sm:$0xff]
        %v454 = vld [vmem:[%s339 + $0xf0] sm:$0xff]
        %v455 = vld [vmem:[%s339 + $0xf8] sm:$0xff]
        %v456 = vld [vmem:[%s339 + $0x100] sm:$0xff]
        %v457 = vld [vmem:[%s339 + $0x108] sm:$0xff]
        %v458 = vld [vmem:[%s339 + $0x110] sm:$0xff]
        %v459 = vld [vmem:[%s339 + $0x118] sm:$0xff]
        %v460 = vld [vmem:[%s339 + $0x120] sm:$0xff]
        %v461 = vld [vmem:[%s339 + $0x128] sm:$0xff]
        %v462 = vld [vmem:[%s339 + $0x130] sm:$0xff]
        %v463 = vld [vmem:[%s339 + $0x138] sm:$0xff]
        %v464 = vld [vmem:[%s339 + $0x140] sm:$0xff]
        %v465 = vld [vmem:[%s339 + $0x148] sm:$0xff]
        %v466 = vld [vmem:[%s339 + $0x150] sm:$0xff]
        %v467 = vld [vmem:[%s339 + $0x158] sm:$0xff]
        %v468 = vld [vmem:[%s339 + $0x160] sm:$0xff]
        %v469 = vld [vmem:[%s339 + $0x168] sm:$0xff]
        %v470 = vld [vmem:[%s339 + $0x170] sm:$0xff]
        %v471 = vld [vmem:[%s339 + $0x178] sm:$0xff]
        %v472 = vld [vmem:[%s339 + $0x180] sm:$0xff]
        %v473 = vld [vmem:[%s339 + $0x188] sm:$0xff]
        %v474 = vld [vmem:[%s339 + $0x190] sm:$0xff]
        %v475 = vld [vmem:[%s339 + $0x198] sm:$0xff]
        %v476 = vld [vmem:[%s339 + $0x1a0] sm:$0xff]
        %v477 = vld [vmem:[%s339 + $0x1a8] sm:$0xff]
        %v478 = vld [vmem:[%s339 + $0x1b0] sm:$0xff]
        %v479 = vld [vmem:[%s339 + $0x1b8] sm:$0xff]
        %v480 = vld [vmem:[%s339 + $0x1c0] sm:$0xff]
        %v481 = vld [vmem:[%s339 + $0x1c8] sm:$0xff]
        %v482 = vld [vmem:[%s339 + $0x1d0] sm:$0xff]
        %v483 = vld [vmem:[%s339 + $0x1d8] sm:$0xff]
        %v484 = vld [vmem:[%s339 + $0x1e0] sm:$0xff]
        %v485 = vld [vmem:[%s339 + $0x1e8] sm:$0xff]
        %v486 = vld [vmem:[%s339 + $0x1f0] sm:$0xff]
        %v487 = vld [vmem:[%s339 + $0x1f8] sm:$0xff]
        %v488 = vld [vmem:[%s339 + $0x200] sm:$0xff]
        %v489 = vld [vmem:[%s339 + $0x208] sm:$0xff]
        %v490 = vld [vmem:[%s339 + $0x210] sm:$0xff]
        %v491 = vld [vmem:[%s339 + $0x218] sm:$0xff]
        %v492 = vld [vmem:[%s339 + $0x220] sm:$0xff]
        %v493 = vld [vmem:[%s339 + $0x228] sm:$0xff]
        %v494 = vld [vmem:[%s339 + $0x230] sm:$0xff]
        %v495 = vld [vmem:[%s339 + $0x238] sm:$0xff]
        %v496 = vld [vmem:[%s339 + $0x240] sm:$0xff]
        %v497 = vld [vmem:[%s339 + $0x248] sm:$0xff]
        %v498 = vld [vmem:[%s339 + $0x250] sm:$0xff]
        %v499 = vld [vmem:[%s339 + $0x258] sm:$0xff]
        %v500 = vld [vmem:[%s339 + $0x260] sm:$0xff]
        %v501 = vld [vmem:[%s339 + $0x268] sm:$0xff]
        %v502 = vld [vmem:[%s339 + $0x270] sm:$0xff]
        %v503 = vld [vmem:[%s339 + $0x278] sm:$0xff]
        %v504 = vld [vmem:[%s339 + $0x280] sm:$0xff]
        %v505 = vld [vmem:[%s339 + $0x288] sm:$0xff]
        %v506 = vld [vmem:[%s339 + $0x290] sm:$0xff]
        %v507 = vld [vmem:[%s339 + $0x298] sm:$0xff]
        %v508 = vld [vmem:[%s339 + $0x2a0] sm:$0xff]
        %v509 = vld [vmem:[%s339 + $0x2a8] sm:$0xff]
        %v510 = vld [vmem:[%s339 + $0x2b0] sm:$0xff]
        %v511 = vld [vmem:[%s339 + $0x2b8] sm:$0xff]
        %v512 = vld [vmem:[%s339 + $0x2c0] sm:$0xff]
        %v513 = vld [vmem:[%s339 + $0x2c8] sm:$0xff]
        %v514 = vld [vmem:[%s339 + $0x2d0] sm:$0xff]
        %v515 = vld [vmem:[%s339 + $0x2d8] sm:$0xff]
        %v516 = vld [vmem:[%s339 + $0x2e0] sm:$0xff]
        %v517 = vld [vmem:[%s339 + $0x2e8] sm:$0xff]
        %v518 = vld [vmem:[%s339 + $0x2f0] sm:$0xff]
        %v519 = vld [vmem:[%s339 + $0x2f8] sm:$0xff]
        %v520 = vld [vmem:[%s339 + $0x300] sm:$0xff]
        %v521 = vld [vmem:[%s339 + $0x308] sm:$0xff]
        %v522 = vld [vmem:[%s339 + $0x310] sm:$0xff]
        %v523 = vld [vmem:[%s339 + $0x318] sm:$0xff]
        %v524 = vld [vmem:[%s339 + $0x320] sm:$0xff]
        %v525 = vld [vmem:[%s339 + $0x328] sm:$0xff]
        %v526 = vld [vmem:[%s339 + $0x330] sm:$0xff]
        %v527 = vld [vmem:[%s339 + $0x338] sm:$0xff]
        %v528 = vld [vmem:[%s339 + $0x340] sm:$0xff]
        %v529 = vld [vmem:[%s339 + $0x348] sm:$0xff]
        %v530 = vld [vmem:[%s339 + $0x350] sm:$0xff]
        %v531 = vld [vmem:[%s339 + $0x358] sm:$0xff]
        %v532 = vld [vmem:[%s339 + $0x360] sm:$0xff]
        %v533 = vld [vmem:[%s339 + $0x368] sm:$0xff]
        %v534 = vld [vmem:[%s339 + $0x370] sm:$0xff]
        %v535 = vld [vmem:[%s339 + $0x378] sm:$0xff]
        %v536 = vld [vmem:[%s339 + $0x380] sm:$0xff]
        %v537 = vld [vmem:[%s339 + $0x388] sm:$0xff]
        %v538 = vld [vmem:[%s339 + $0x390] sm:$0xff]
        %v539 = vld [vmem:[%s339 + $0x398] sm:$0xff]
        %v540 = vld [vmem:[%s339 + $0x3a0] sm:$0xff]
        %v541 = vld [vmem:[%s339 + $0x3a8] sm:$0xff]
        %v542 = vld [vmem:[%s339 + $0x3b0] sm:$0xff]
        %v543 = vld [vmem:[%s339 + $0x3b8] sm:$0xff]
        %v544 = vld [vmem:[%s339 + $0x3c0] sm:$0xff]
        %v545 = vld [vmem:[%s339 + $0x3c8] sm:$0xff]
        %v546 = vld [vmem:[%s339 + $0x3d0] sm:$0xff]
        %v547 = vld [vmem:[%s339 + $0x3d8] sm:$0xff]
        %v548 = vld [vmem:[%s339 + $0x3e0] sm:$0xff]
        %v549 = vld [vmem:[%s339 + $0x3e8] sm:$0xff]
        %v550 = vld [vmem:[%s339 + $0x3f0] sm:$0xff]
        %v551 = vld [vmem:[%s339 + $0x3f8] sm:$0xff]
        %552 = vmatprep.subr.mxu0 %v425
        %553 = vmatpush1.msra.mxu0 %v424
        %554 = vmatprep.subr.mxu0 %v427
        %555 = vmatpush1.msra.mxu0 %v426
        %556 = vmatprep.subr.mxu0 %v429
        %557 = vmatpush1.msra.mxu0 %v428
        %558 = vmatprep.subr.mxu0 %v431
        %559 = vmatpush1.msra.mxu0 %v430
        %560 = vmatprep.subr.mxu0 %v433
        %561 = vmatpush1.msra.mxu0 %v432
        %562 = vmatprep.subr.mxu0 %v435
        %563 = vmatpush1.msra.mxu0 %v434
        %564 = vmatprep.subr.mxu0 %v437
        %565 = vmatpush1.msra.mxu0 %v436
        %566 = vmatprep.subr.mxu0 %v439
        %567 = vmatpush1.msra.mxu0 %v438
        %568 = vmatprep.subr.mxu0 %v441
        %569 = vmatpush1.msra.mxu0 %v440
        %570 = vmatprep.subr.mxu0 %v443
        %571 = vmatpush1.msra.mxu0 %v442
        %572 = vmatprep.subr.mxu0 %v445
        %573 = vmatpush1.msra.mxu0 %v444
        %574 = vmatprep.subr.mxu0 %v447
        %575 = vmatpush1.msra.mxu0 %v446
        %576 = vmatprep.subr.mxu0 %v449
        %577 = vmatpush1.msra.mxu0 %v448
        %578 = vmatprep.subr.mxu0 %v451
        %579 = vmatpush1.msra.mxu0 %v450
        %580 = vmatprep.subr.mxu0 %v453
        %581 = vmatpush1.msra.mxu0 %v452
        %582 = vmatprep.subr.mxu0 %v455
        %583 = vmatpush1.msra.mxu0 %v454
        %584 = vmatprep.subr.mxu0 %v457
        %585 = vmatpush1.msra.mxu0 %v456
        %586 = vmatprep.subr.mxu0 %v459
        %587 = vmatpush1.msra.mxu0 %v458
        %588 = vmatprep.subr.mxu0 %v461
        %589 = vmatpush1.msra.mxu0 %v460
        %590 = vmatprep.subr.mxu0 %v463
        %591 = vmatpush1.msra.mxu0 %v462
        %592 = vmatprep.subr.mxu0 %v465
        %593 = vmatpush1.msra.mxu0 %v464
        %594 = vmatprep.subr.mxu0 %v467
        %595 = vmatpush1.msra.mxu0 %v466
        %596 = vmatprep.subr.mxu0 %v469
        %597 = vmatpush1.msra.mxu0 %v468
        %598 = vmatprep.subr.mxu0 %v471
        %599 = vmatpush1.msra.mxu0 %v470
        %600 = vmatprep.subr.mxu0 %v473
        %601 = vmatpush1.msra.mxu0 %v472
        %602 = vmatprep.subr.mxu0 %v475
        %603 = vmatpush1.msra.mxu0 %v474
        %604 = vmatprep.subr.mxu0 %v477
        %605 = vmatpush1.msra.mxu0 %v476
        %606 = vmatprep.subr.mxu0 %v479
        %607 = vmatpush1.msra.mxu0 %v478
        %608 = vmatprep.subr.mxu0 %v481
        %609 = vmatpush1.msra.mxu0 %v480
        %610 = vmatprep.subr.mxu0 %v483
        %611 = vmatpush1.msra.mxu0 %v482
        %612 = vmatprep.subr.mxu0 %v485
        %613 = vmatpush1.msra.mxu0 %v484
        %614 = vmatprep.subr.mxu0 %v487
        %615 = vmatpush1.msra.mxu0 %v486
        %616 = vmatprep.mubr.f32.mxu0 %v393
        %617 = vmatmul.mubr.f32.gmra.mrb[0].mxu0 %v392
        %v618 = vpop.f32.mrb[0].mxu0
        %v619 = vadd.f32 0.0, %v618
        %v620 = vpop.f32.mrb[0].mxu0
        %v621 = vadd.f32 0.0, %v620
        %622 = vmatprep.mubr.f32.mxu0 %v397
        %623 = vmatmul.mubr.f32.gmra.mrb[0].mxu0 %v396
        %v624 = vpop.f32.mrb[0].mxu0
        %v625 = vadd.f32 0.0, %v624
        %v626 = vpop.f32.mrb[0].mxu0
        %v627 = vadd.f32 0.0, %v626
        %628 = vmatprep.mubr.f32.mxu0 %v401
        %629 = vmatmul.mubr.f32.gmra.mrb[0].mxu0 %v400
        %v630 = vpop.f32.mrb[0].mxu0
        %v631 = vadd.f32 0.0, %v630
        %v632 = vpop.f32.mrb[0].mxu0
        %v633 = vadd.f32 0.0, %v632
        %634 = vmatprep.mubr.f32.mxu0 %v405
        %635 = vmatmul.mubr.f32.gmra.mrb[0].mxu0 %v404
        %v636 = vpop.f32.mrb[0].mxu0
        %v637 = vadd.f32 0.0, %v636
        %v638 = vpop.f32.mrb[0].mxu0
        %v639 = vadd.f32 0.0, %v638
        %640 = vmatprep.mubr.f32.mxu0 %v409
        %641 = vmatmul.mubr.f32.gmra.mrb[0].mxu0 %v408
        %v642 = vpop.f32.mrb[0].mxu0
        %v643 = vadd.f32 0.0, %v642
        %v644 = vpop.f32.mrb[0].mxu0
        %v645 = vadd.f32 0.0, %v644
        %646 = vmatprep.mubr.f32.mxu0 %v413
        %647 = vmatmul.mubr.f32.gmra.mrb[0].mxu0 %v412
        %v648 = vpop.f32.mrb[0].mxu0
        %v649 = vadd.f32 0.0, %v648
        %v650 = vpop.f32.mrb[0].mxu0
        %v651 = vadd.f32 0.0, %v650
        %652 = vmatprep.mubr.f32.mxu0 %v417
        %653 = vmatmul.mubr.f32.gmra.mrb[0].mxu0 %v416
        %v654 = vpop.f32.mrb[0].mxu0
        %v655 = vadd.f32 0.0, %v654
        %v656 = vpop.f32.mrb[0].mxu0
        %v657 = vadd.f32 0.0, %v656
        %658 = vmatprep.mubr.f32.mxu0 %v421
        %659 = vmatmul.mubr.f32.gmra.mrb[0].mxu0 %v420
        %v660 = vpop.f32.mrb[0].mxu0
        %v661 = vadd.f32 0.0, %v660
        %v662 = vpop.f32.mrb[0].mxu0
        %v663 = vadd.f32 0.0, %v662
        %664 = vdwg.mxu0
        %665 = vmatprep.subr.mxu0 %v489
        %666 = vmatpush1.msra.mxu0 %v488
        %667 = vmatprep.subr.mxu0 %v491
        %668 = vmatpush1.msra.mxu0 %v490
        %669 = vmatprep.subr.mxu0 %v493
        %670 = vmatpush1.msra.mxu0 %v492
        %671 = vmatprep.subr.mxu0 %v495
        %672 = vmatpush1.msra.mxu0 %v494
        %673 = vmatprep.subr.mxu0 %v497
        %674 = vmatpush1.msra.mxu0 %v496
        %675 = vmatprep.subr.mxu0 %v499
        %676 = vmatpush1.msra.mxu0 %v498
        %677 = vmatprep.subr.mxu0 %v501
        %678 = vmatpush1.msra.mxu0 %v500
        %679 = vmatprep.subr.mxu0 %v503
        %680 = vmatpush1.msra.mxu0 %v502
        %681 = vmatprep.subr.mxu0 %v505
        %682 = vmatpush1.msra.mxu0 %v504
        %683 = vmatprep.subr.mxu0 %v507
        %684 = vmatpush1.msra.mxu0 %v506
        %685 = vmatprep.subr.mxu0 %v509
        %686 = vmatpush1.msra.mxu0 %v508
        %687 = vmatprep.subr.mxu0 %v511
        %688 = vmatpush1.msra.mxu0 %v510
        %689 = vmatprep.subr.mxu0 %v513
        %690 = vmatpush1.msra.mxu0 %v512
        %691 = vmatprep.subr.mxu0 %v515
        %692 = vmatpush1.msra.mxu0 %v514
        %693 = vmatprep.subr.mxu0 %v517
        %694 = vmatpush1.msra.mxu0 %v516
        %695 = vmatprep.subr.mxu0 %v519
        %696 = vmatpush1.msra.mxu0 %v518
        %697 = vmatprep.subr.mxu0 %v521
        %698 = vmatpush1.msra.mxu0 %v520
        %699 = vmatprep.subr.mxu0 %v523
        %700 = vmatpush1.msra.mxu0 %v522
        %701 = vmatprep.subr.mxu0 %v525
        %702 = vmatpush1.msra.mxu0 %v524
        %703 = vmatprep.subr.mxu0 %v527
        %704 = vmatpush1.msra.mxu0 %v526
        %705 = vmatprep.subr.mxu0 %v529
        %706 = vmatpush1.msra.mxu0 %v528
        %707 = vmatprep.subr.mxu0 %v531
        %708 = vmatpush1.msra.mxu0 %v530
        %709 = vmatprep.subr.mxu0 %v533
        %710 = vmatpush1.msra.mxu0 %v532
        %711 = vmatprep.subr.mxu0 %v535
        %712 = vmatpush1.msra.mxu0 %v534
        %713 = vmatprep.subr.mxu0 %v537
        %714 = vmatpush1.msra.mxu0 %v536
        %715 = vmatprep.subr.mxu0 %v539
        %716 = vmatpush1.msra.mxu0 %v538
        %717 = vmatprep.subr.mxu0 %v541
        %718 = vmatpush1.msra.mxu0 %v540
        %719 = vmatprep.subr.mxu0 %v543
        %720 = vmatpush1.msra.mxu0 %v542
        %721 = vmatprep.subr.mxu0 %v545
        %722 = vmatpush1.msra.mxu0 %v544
        %723 = vmatprep.subr.mxu0 %v547
        %724 = vmatpush1.msra.mxu0 %v546
        %725 = vmatprep.subr.mxu0 %v549
        %726 = vmatpush1.msra.mxu0 %v548
        %727 = vmatprep.subr.mxu0 %v551
        %728 = vmatpush1.msra.mxu0 %v550
        %729 = vmatprep.mubr.f32.mxu0 %v395
        %730 = vmatmul.mubr.f32.gmra.mrb[0].mxu0 %v394
        %v731 = vpop.f32.mrb[0].mxu0
        %v732 = vadd.f32 %v619, %v731
        %v733 = vpop.f32.mrb[0].mxu0
        %v734 = vadd.f32 %v621, %v733
        %735 = vmatprep.mubr.f32.mxu0 %v399
        %736 = vmatmul.mubr.f32.gmra.mrb[0].mxu0 %v398
        %v737 = vpop.f32.mrb[0].mxu0
        %v738 = vadd.f32 %v625, %v737
        %v739 = vpop.f32.mrb[0].mxu0
        %v740 = vadd.f32 %v627, %v739
        %741 = vmatprep.mubr.f32.mxu0 %v403
        %742 = vmatmul.mubr.f32.gmra.mrb[0].mxu0 %v402
        %v743 = vpop.f32.mrb[0].mxu0
        %v744 = vadd.f32 %v631, %v743
        %v745 = vpop.f32.mrb[0].mxu0
        %v746 = vadd.f32 %v633, %v745
        %747 = vmatprep.mubr.f32.mxu0 %v407
        %748 = vmatmul.mubr.f32.gmra.mrb[0].mxu0 %v406
        %v749 = vpop.f32.mrb[0].mxu0
        %v750 = vadd.f32 %v637, %v749
        %v751 = vpop.f32.mrb[0].mxu0
        %v752 = vadd.f32 %v639, %v751
        %753 = vmatprep.mubr.f32.mxu0 %v411
        %754 = vmatmul.mubr.f32.gmra.mrb[0].mxu0 %v410
        %v755 = vpop.f32.mrb[0].mxu0
        %v756 = vadd.f32 %v643, %v755
        %v757 = vpop.f32.mrb[0].mxu0
        %v758 = vadd.f32 %v645, %v757
        %759 = vmatprep.mubr.f32.mxu0 %v415
        %760 = vmatmul.mubr.f32.gmra.mrb[0].mxu0 %v414
        %v761 = vpop.f32.mrb[0].mxu0
        %v762 = vadd.f32 %v649, %v761
        %v763 = vpop.f32.mrb[0].mxu0
        %v764 = vadd.f32 %v651, %v763
        %765 = vmatprep.mubr.f32.mxu0 %v419
        %766 = vmatmul.mubr.f32.gmra.mrb[0].mxu0 %v418
        %v767 = vpop.f32.mrb[0].mxu0
        %v768 = vadd.f32 %v655, %v767
        %v769 = vpop.f32.mrb[0].mxu0
        %v770 = vadd.f32 %v657, %v769
        %771 = vmatprep.mubr.f32.mxu0 %v423
        %772 = vmatmul.mubr.f32.gmra.mrb[0].mxu0 %v422
        %v773 = vpop.f32.mrb[0].mxu0
        %v774 = vadd.f32 %v661, %v773
        %v775 = vpop.f32.mrb[0].mxu0
        %v776 = vadd.f32 %v663, %v775
        %777 = vdwg.mxu0
        %v778 = vadd.f32 %v376, %v732
        %v779 = vadd.f32 %v377, %v734
        %v780 = vadd.f32 %v378, %v738
        %v781 = vadd.f32 %v379, %v740
        %v782 = vadd.f32 %v380, %v744
        %v783 = vadd.f32 %v381, %v746
        %v784 = vadd.f32 %v382, %v750
        %v785 = vadd.f32 %v383, %v752
        %v786 = vadd.f32 %v384, %v756
        %v787 = vadd.f32 %v385, %v758
        %v788 = vadd.f32 %v386, %v762
        %v789 = vadd.f32 %v387, %v764
        %v790 = vadd.f32 %v388, %v768
        %v791 = vadd.f32 %v389, %v770
        %v792 = vadd.f32 %v390, %v774
        %v793 = vadd.f32 %v391, %v776
        %794 = vst [vmem:[#allocation2] sm:$0xff] %v778
        %795 = vst [vmem:[#allocation2 + $0x8] sm:$0xff] %v779
        %796 = vst [vmem:[#allocation2 + $0x10] sm:$0xff] %v780
        %797 = vst [vmem:[#allocation2 + $0x18] sm:$0xff] %v781
        %798 = vst [vmem:[#allocation2 + $0x20] sm:$0xff] %v782
        %799 = vst [vmem:[#allocation2 + $0x28] sm:$0xff] %v783
        %800 = vst [vmem:[#allocation2 + $0x30] sm:$0xff] %v784
        %801 = vst [vmem:[#allocation2 + $0x38] sm:$0xff] %v785
        %802 = vst [vmem:[#allocation2 + $0x40] sm:$0xff] %v786
        %803 = vst [vmem:[#allocation2 + $0x48] sm:$0xff] %v787
        %804 = vst [vmem:[#allocation2 + $0x50] sm:$0xff] %v788
        %805 = vst [vmem:[#allocation2 + $0x58] sm:$0xff] %v789
        %806 = vst [vmem:[#allocation2 + $0x60] sm:$0xff] %v790
        %807 = vst [vmem:[#allocation2 + $0x68] sm:$0xff] %v791
        %808 = vst [vmem:[#allocation2 + $0x70] sm:$0xff] %v792
        %809 = vst [vmem:[#allocation2 + $0x78] sm:$0xff] %v793
        %p810 = scmp.eq.s32.totalorder %s22, 1
        // Predicated region
        $region60: #{block_forward.9} parent=50 // pred_check
          %p811 = pneg %p810
        $region61: #{block_forward.9} parent=50 // pred_check_branch
          %813 = sbr.rel (%p811) target = $region63
        $region62: #{block_forward.9} parent=50 // pred_region
          %v814 = vld [vmem:[#allocation2] sm:$0xff]
          %v815 = vld [vmem:[#allocation2 + $0x8] sm:$0xff]
          %v816 = vld [vmem:[#allocation2 + $0x10] sm:$0xff]
          %v817 = vld [vmem:[#allocation2 + $0x18] sm:$0xff]
          %v818 = vld [vmem:[#allocation2 + $0x20] sm:$0xff]
          %v819 = vld [vmem:[#allocation2 + $0x28] sm:$0xff]
          %v820 = vld [vmem:[#allocation2 + $0x30] sm:$0xff]
          %v821 = vld [vmem:[#allocation2 + $0x38] sm:$0xff]
          %v822 = vld [vmem:[#allocation2 + $0x40] sm:$0xff]
          %v823 = vld [vmem:[#allocation2 + $0x48] sm:$0xff]
          %v824 = vld [vmem:[#allocation2 + $0x50] sm:$0xff]
          %v825 = vld [vmem:[#allocation2 + $0x58] sm:$0xff]
          %v826 = vld [vmem:[#allocation2 + $0x60] sm:$0xff]
          %v827 = vld [vmem:[#allocation2 + $0x68] sm:$0xff]
          %v828 = vld [vmem:[#allocation2 + $0x70] sm:$0xff]
          %v829 = vld [vmem:[#allocation2 + $0x78] sm:$0xff]
          %v830 = vld [vmem:[%s351] sm:$0xff]
          %v831 = vld [vmem:[%s351 + $0x8] sm:$0xff]
          %v832 = vld [vmem:[%s351 + $0x10] sm:$0xff]
          %v833 = vld [vmem:[%s351 + $0x18] sm:$0xff]
          %v834 = vld [vmem:[%s351 + $0x20] sm:$0xff]
          %v835 = vld [vmem:[%s351 + $0x28] sm:$0xff]
          %v836 = vld [vmem:[%s351 + $0x30] sm:$0xff]
          %v837 = vld [vmem:[%s351 + $0x38] sm:$0xff]
          %v838 = vld [vmem:[%s351 + $0x40] sm:$0xff]
          %v839 = vld [vmem:[%s351 + $0x48] sm:$0xff]
          %v840 = vld [vmem:[%s351 + $0x50] sm:$0xff]
          %v841 = vld [vmem:[%s351 + $0x58] sm:$0xff]
          %v842 = vld [vmem:[%s351 + $0x60] sm:$0xff]
          %v843 = vld [vmem:[%s351 + $0x68] sm:$0xff]
          %v844 = vld [vmem:[%s351 + $0x70] sm:$0xff]
          %v845 = vld [vmem:[%s351 + $0x78] sm:$0xff]
          %v846 = vadd.f32 %v814, %v830
          %v847 = vadd.f32 %v815, %v831
          %v848 = vadd.f32 %v816, %v832
          %v849 = vadd.f32 %v817, %v833
          %v850 = vadd.f32 %v818, %v834
          %v851 = vadd.f32 %v819, %v835
          %v852 = vadd.f32 %v820, %v836
          %v853 = vadd.f32 %v821, %v837
          %v854 = vadd.f32 %v822, %v838
          %v855 = vadd.f32 %v823, %v839
          %v856 = vadd.f32 %v824, %v840
          %v857 = vadd.f32 %v825, %v841
          %v858 = vadd.f32 %v826, %v842
          %v859 = vadd.f32 %v827, %v843
          %v860 = vadd.f32 %v828, %v844
          %v861 = vadd.f32 %v829, %v845
          %862 = vst [vmem:[#allocation4] sm:$0xff] %v846
          %863 = vst [vmem:[#allocation4 + $0x8] sm:$0xff] %v847
          %864 = vst [vmem:[#allocation4 + $0x10] sm:$0xff] %v848
          %865 = vst [vmem:[#allocation4 + $0x18] sm:$0xff] %v849
          %866 = vst [vmem:[#allocation4 + $0x20] sm:$0xff] %v850
          %867 = vst [vmem:[#allocation4 + $0x28] sm:$0xff] %v851
          %868 = vst [vmem:[#allocation4 + $0x30] sm:$0xff] %v852
          %869 = vst [vmem:[#allocation4 + $0x38] sm:$0xff] %v853
          %870 = vst [vmem:[#allocation4 + $0x40] sm:$0xff] %v854
          %871 = vst [vmem:[#allocation4 + $0x48] sm:$0xff] %v855
          %872 = vst [vmem:[#allocation4 + $0x50] sm:$0xff] %v856
          %873 = vst [vmem:[#allocation4 + $0x58] sm:$0xff] %v857
          %874 = vst [vmem:[#allocation4 + $0x60] sm:$0xff] %v858
          %875 = vst [vmem:[#allocation4 + $0x68] sm:$0xff] %v859
          %876 = vst [vmem:[#allocation4 + $0x70] sm:$0xff] %v860
          %877 = vst [vmem:[#allocation4 + $0x78] sm:$0xff] %v861
        $region63: #{block_forward.9} parent=50 // pred_fallthru
          _
        // Predicated region
        $region64: #{block_forward.9} parent=50 // pred_check
          %p878 = pneg %p138
        $region65: #{block_forward.9} parent=50 // pred_check_branch
          %880 = sbr.rel (%p878) target = $region67
        $region66: #{block_forward.9} parent=50 // pred_region
          %s881 = smul.u32 8, %s20
          %s882 = smul.u32 2, %s21
          %s884 = ssub.s32 2048, 2048
          %885 = vsyncadd [#allocation5], %s884
          %s886 = smul.addr %s881, 2
          %s887 = sadd.s32 %s882, %s886
          %s888 = smul.addr %s887, 128
          %s889 = scalar_lea.hbm %s3, %s888
          %s890 = sshll.u32 [#allocation4], 4
          %s891 = int_to_ptr.vmem [resolvable:$true] %s890
          %896 = dma.vmem_to_hbm [thread:$0]  %s891, 2048, %s889, [#allocation5], 256, 256, 16
        $region67: #{block_forward.9} parent=50 // pred_fallthru
          _
        // Predicated region
        $region68: #{block_forward.9} parent=50 // pred_check
          %p897 = pneg %p138
        $region69: #{block_forward.9} parent=50 // pred_check_branch
          %899 = sbr.rel (%p897) target = $region71
        $region70: #{block_forward.9} parent=50 // pred_region
          %900 = dma.done [#allocation5], 2048
        $region71: #{block_forward.9} parent=50 // pred_fallthru
          _
      $region51: #{block_forward.9} parent=5 // pred_fallthru
        _
      %p901 = scmp.le.s32.totalorder 2, %s10
      // Predicated region
      $region72: #{block_forward.9} parent=5 // pred_check
        %p902 = pneg %p901
      $region73: #{block_forward.9} parent=5 // pred_check_branch
        %904 = sbr.rel (%p902) target = $region75
      $region74: #{block_forward.9} parent=5 // pred_region
        %s905 = ssub.s32 %s10, 2
      $region75: #{block_forward.9} parent=5 // pred_fallthru
        _
    $region6: #{block_forward.9} parent=1 // loop_footer
      %s14 = sadd.s32 1, %s10
    $region7: #{block_forward.9} parent=1 // loop_footer_branch
      %9 = sbr.rel target = $region3
    $region8: #{block_forward.9} parent=1 // loop_exit
      _
    %906 = vsyncpa [#allocation5], 1
    %s907 = scalar_lea.sflag [#allocation5], 1
    %908 = vsyncpa %s907, 1

</llo_original>
